<compile_context>
chip_gen: v7x
topology: tpu7x:2x2x1
jax: 0.10.0
libtpu: 0.0.40
codegen_flags: <defaults>
</compile_context>

<pallas_src>
import functools
import math

import jax
import jax.numpy as jnp
from jax.experimental import pallas as pl
from jax.experimental.pallas import tpu as pltpu


def _norm_groups(channels: int) -> int:
    """Replicates normalization() group-count logic from the reference."""
    groups = 32
    if channels <= 16:
        groups = 8
    elif channels <= 64:
        groups = 16
    while channels % groups != 0:
        groups //= 2
    assert groups > 2
    return groups


def _vmem_limit_bytes() -> int:
    """Per-generation VMEM budget with headroom (v7x ~48 MiB, v5e/v6e ~112 MiB)."""
    try:
        cap_mib = int(pltpu.get_tpu_info().vmem_capacity_bytes) // (1024 * 1024)
    except Exception:  # pragma: no cover - conservative fallback
        cap_mib = 64
    return int(max(32, min(cap_mib - 16, 112)) * 1024 * 1024)


# ---------------- fused Pallas kernel ----------------

def _fused_encoder_kernel(x_ref, wi_ref, bi_ref, m_cg_ref, m_gc_ref,
                          rmask_ref, kbias_ref, gamma_ref, beta_ref,
                          wqkv_ref, bqkv_ref, wproj_ref, bproj_ref,
                          o_ref, *, num_heads, groups, eps, t_valid):
    n = pl.program_id(1)                    # attention-block index (arbitrary axis)
    t_pad, C = o_ref.shape
    ch = C // num_heads
    cg = C // groups
    padded = (t_valid != t_pad)             # static Python bool

    # ---- init 1x1 conv: only at the first block step of each batch element.
    # o_ref's block index is constant over n, so it is the VMEM-resident carry.
    @pl.when(n == 0)
    def _():
        h0 = jnp.dot(x_ref[...], wi_ref[...],
                     preferred_element_type=jnp.float32) + bi_ref[...]
        if padded:
            h0 = h0 * rmask_ref[...]        # keep padded rows exactly zero
        o_ref[...] = h0

    h = o_ref[...]                          # [T_pad, C] f32, padded rows == 0

    # ---- GroupNorm32 (f32 stats, biased variance); do_activation=False.
    # Per-channel sublane sums folded into per-group stats with tiny 0/1 matmuls
    # (masks are host-built, loop-invariant VMEM residents).
    count = float(cg * t_valid)
    s1 = jnp.sum(h, axis=0, keepdims=True)                                      # [1, C]
    mean_g = jnp.dot(s1, m_cg_ref[...],
                     preferred_element_type=jnp.float32) * (1.0 / count)        # [1, G]
    mean_c = jnp.dot(mean_g, m_gc_ref[...], preferred_element_type=jnp.float32)  # [1, C]
    xc = h - mean_c
    d = xc * rmask_ref[...] if padded else xc
    s2 = jnp.sum(d * d, axis=0, keepdims=True)                                  # [1, C]
    var_g = jnp.dot(s2, m_cg_ref[...],
                    preferred_element_type=jnp.float32) * (1.0 / count)         # [1, G]
    rstd_c = jnp.dot(jax.lax.rsqrt(var_g + eps), m_gc_ref[...],
                     preferred_element_type=jnp.float32)                        # [1, C]
    xn = xc * rstd_c * gamma_ref[...] + beta_ref[...]                           # [T_pad, C]

    # ---- qkv 1x1 conv. q-scale is pre-folded into the q columns of W/b on the
    # host; bias added in f32, then the whole intermediate drops to bf16.
    # Columns are host-reordered to q-major | k-major | v-major.
    qkv = (jnp.dot(xn.astype(jnp.bfloat16), wqkv_ref[...],
                   preferred_element_type=jnp.float32)
           + bqkv_ref[...]).astype(jnp.bfloat16)                                # [T_pad, 3C]

    # ---- multi-head attention: one f32 [T_pad, T_pad] score buffer live per head.
    heads_out = []
    for head in range(num_heads):
        lo = head * ch
        q = qkv[:, lo:lo + ch]                                  # scaled q  [T_pad, ch]
        k = qkv[:, C + lo:C + lo + ch]                          # k         [T_pad, ch]
        v = qkv[:, 2 * C + lo:2 * C + lo + ch]                  # v         [T_pad, ch]

        s = jax.lax.dot_general(q, k, (((1,), (1,)), ((), ())),
                                preferred_element_type=jnp.float32)             # [T_pad, T_pad]
        if padded:
            s = s + kbias_ref[...]          # mask padded keys (-1e30)
        s = s - jnp.max(s, axis=-1, keepdims=True)
        e = jnp.exp(s)
        p = (e * pl.reciprocal(jnp.sum(e, axis=-1, keepdims=True),
                               approx=True)).astype(jnp.bfloat16)
        heads_out.append(jnp.dot(p, v, preferred_element_type=jnp.float32)
                         .astype(jnp.bfloat16))                                 # [T_pad, ch]

    # ---- single proj_out matmul over the full C contraction (no per-head matmuls)
    a_all = jnp.concatenate(heads_out, axis=-1)                                 # [T_pad, C] bf16
    proj = jnp.dot(a_all, wproj_ref[...],
                   preferred_element_type=jnp.float32) + bproj_ref[...]         # [T_pad, C]

    out = xn + proj                          # residual over normalized x (x_proj = Identity)
    if padded:
        out = out * rmask_ref[...]           # re-zero padded rows for the next block
    o_ref[...] = out                         # carried in VMEM; HBM writeback once per batch


# ---------------- wrapper ----------------

def conditioning_encoder(x, kparams, num_attn_heads=4):
    """x: [B, spec_dim, T] float32 -> [B, embedding_dim, T] float32."""
    B, spec_dim, T = x.shape
    C = kparams["init_w_t"].shape[1]
    NB = kparams["wqkv_t"].shape[0]
    groups = _norm_groups(C)
    cg = C // groups
    t_pad = ((T + 127) // 128) * 128         # lane-dense time axis

    x_t = jnp.transpose(x, (0, 2, 1)).astype(jnp.bfloat16)      # [B, T, spec_dim]
    if t_pad != T:
        x_t = jnp.pad(x_t, ((0, 0), (0, t_pad - T), (0, 0)))

    # Loop-invariant constants, built once and kept VMEM-resident in the kernel.
    cid = jnp.arange(C)
    m_cg = (cid[:, None] // cg == jnp.arange(groups)[None, :]).astype(jnp.float32)  # [C, G]
    m_gc = jnp.transpose(m_cg)                                                       # [G, C]
    valid = jnp.arange(t_pad) < T
    rmask = valid.astype(jnp.float32)[:, None]                                       # [T_pad, 1]
    kbias = jnp.where(valid, 0.0, -1e30).astype(jnp.float32)[None, :]                # [1, T_pad]

    kernel = functools.partial(_fused_encoder_kernel, num_heads=num_attn_heads,
                               groups=groups, eps=1e-5, t_valid=T)

    out_t = pl.pallas_call(
        kernel,
        out_shape=jax.ShapeDtypeStruct((B, t_pad, C), jnp.float32),
        grid=(B, NB),
        in_specs=[
            pl.BlockSpec((None, t_pad, spec_dim), lambda b, n: (b, 0, 0)),  # x (resident over n)
            pl.BlockSpec((spec_dim, C), lambda b, n: (0, 0)),               # W_init^T
            pl.BlockSpec((1, C), lambda b, n: (0, 0)),                      # b_init
            pl.BlockSpec((C, groups), lambda b, n: (0, 0)),                 # group mask C->G
            pl.BlockSpec((groups, C), lambda b, n: (0, 0)),                 # group mask G->C
            pl.BlockSpec((t_pad, 1), lambda b, n: (0, 0)),                  # valid-row mask
            pl.BlockSpec((1, t_pad), lambda b, n: (0, 0)),                  # key bias
            pl.BlockSpec((None, 1, C), lambda b, n: (n, 0, 0)),             # gamma[n]
            pl.BlockSpec((None, 1, C), lambda b, n: (n, 0, 0)),             # beta[n]
            pl.BlockSpec((None, C, 3 * C), lambda b, n: (n, 0, 0)),         # W_qkv^T[n]
            pl.BlockSpec((None, 1, 3 * C), lambda b, n: (n, 0, 0)),         # b_qkv[n]
            pl.BlockSpec((None, C, C), lambda b, n: (n, 0, 0)),             # W_proj^T[n]
            pl.BlockSpec((None, 1, C), lambda b, n: (n, 0, 0)),             # b_proj[n]
        ],
        out_specs=pl.BlockSpec((None, t_pad, C), lambda b, n: (b, 0, 0)),   # VMEM-resident carry
        compiler_params=pltpu.CompilerParams(
            dimension_semantics=("parallel", "arbitrary"),
            vmem_limit_bytes=_vmem_limit_bytes()),
    )(
        x_t,
        kparams["init_w_t"], kparams["init_b"],
        m_cg, m_gc, rmask, kbias,
        kparams["gamma"], kparams["beta"],
        kparams["wqkv_t"], kparams["bqkv"],
        kparams["wproj_t"], kparams["bproj"],
    )
    return jnp.transpose(out_t[:, :T, :], (0, 2, 1))             # [B, C, T]


# ---------------- parameter preparation (host-side, done once) ----------------

def prepare_params(raw, num_attn_heads):
    """Torch-layout params -> kernel layout.

    Torch layout (raw):
      init_w [E, S], init_b [E], wqkv [NB, 3E, E] (rows head-major q|k|v per head),
      bqkv [NB, 3E], gamma/beta [NB, E], wproj [NB, E, E], bproj [NB, E].

    Kernel layout: pre-transposed weights (bf16), qkv columns reordered to
    q-major|k-major|v-major, q-scale (1/sqrt(ch)) folded into the q columns.
    """
    NB, threeC, C = raw["wqkv"].shape
    assert threeC == 3 * C
    H = num_attn_heads
    ch = C // H
    scale = 1.0 / math.sqrt(ch)              # (ch**-0.25)**2 folded into q

    # [NB, C, 3C] with columns in torch (head, qkv, ch) order -> (qkv, head, ch)
    wqkv_t = jnp.transpose(raw["wqkv"], (0, 2, 1)).reshape(NB, C, H, 3, ch)
    wqkv_t = jnp.transpose(wqkv_t, (0, 1, 3, 2, 4)).reshape(NB, C, 3 * C)
    bqkv = jnp.transpose(raw["bqkv"].reshape(NB, H, 3, ch),
                         (0, 2, 1, 3)).reshape(NB, 1, 3 * C)
    qscale = jnp.concatenate([jnp.full((C,), scale, jnp.float32),
                              jnp.ones((2 * C,), jnp.float32)])
    wqkv_t = wqkv_t * qscale[None, None, :]
    bqkv = bqkv * qscale[None, None, :]

    return {
        "init_w_t": jnp.transpose(raw["init_w"]).astype(jnp.bfloat16),   # [S, E]
        "init_b": raw["init_b"][None, :].astype(jnp.float32),            # [1, E]
        "gamma": raw["gamma"][:, None, :].astype(jnp.float32),           # [NB, 1, E]
        "beta": raw["beta"][:, None, :].astype(jnp.float32),             # [NB, 1, E]
        "wqkv_t": wqkv_t.astype(jnp.bfloat16),                           # [NB, E, 3E]
        "bqkv": bqkv.astype(jnp.float32),                                # [NB, 1, 3E]
        "wproj_t": jnp.transpose(raw["wproj"], (0, 2, 1)).astype(jnp.bfloat16),  # [NB, E, E]
        "bproj": raw["bproj"][:, None, :].astype(jnp.float32),           # [NB, 1, E]
    }


def init_params(key, spec_dim, embedding_dim, attn_blocks=6, zero_proj=True):
    """Deterministic synthetic parameters in torch layout.

    zero_proj=True matches the module's zero_module(proj_out) init; set False to
    exercise the attention/proj path numerically in tests.
    """
    C = embedding_dim

    def uniform(k, shape, fan_in):
        bound = 1.0 / math.sqrt(fan_in)
        return jax.random.uniform(k, shape, jnp.float32, -bound, bound)

    keys = jax.random.split(key, 6)
    if zero_proj:
        wproj = jnp.zeros((attn_blocks, C, C), jnp.float32)
        bproj = jnp.zeros((attn_blocks, C), jnp.float32)
    else:
        wproj = uniform(keys[4], (attn_blocks, C, C), C)
        bproj = uniform(keys[5], (attn_blocks, C), C)
    return {
        "init_w": uniform(keys[0], (C, spec_dim), spec_dim),
        "init_b": uniform(keys[1], (C,), spec_dim),
        "gamma": jnp.ones((attn_blocks, C), jnp.float32),
        "beta": jnp.zeros((attn_blocks, C), jnp.float32),
        "wqkv": uniform(keys[2], (attn_blocks, 3 * C, C), C),
        "bqkv": uniform(keys[3], (attn_blocks, 3 * C), C),
        "wproj": wproj,
        "bproj": bproj,
    }


# ---------------- pure-JAX f32 reference (mirrors the PyTorch module) ----------------

def reference_encoder(x, raw, num_attn_heads):
    Wi, bi = raw["init_w"], raw["init_b"]
    h = jnp.einsum("es,bst->bet", Wi, x) + bi[None, :, None]
    NB = raw["wqkv"].shape[0]
    B, C, T = h.shape
    groups = _norm_groups(C)
    ch = C // num_attn_heads
    scale = 1.0 / math.sqrt(math.sqrt(ch))
    eps = 1e-5
    for n in range(NB):
        hg = h.reshape(B, groups, C // groups, T)
        mean = hg.mean(axis=(2, 3), keepdims=True)
        var = ((hg - mean) ** 2).mean(axis=(2, 3), keepdims=True)
        xn = ((hg - mean) / jnp.sqrt(var + eps)).reshape(B, C, T)
        xn = xn * raw["gamma"][n][None, :, None] + raw["beta"][n][None, :, None]
        qkv = jnp.einsum("oc,bct->bot", raw["wqkv"][n], xn) + raw["bqkv"][n][None, :, None]
        qkv = qkv.reshape(B * num_attn_heads, 3 * ch, T)
        q, k, v = qkv[:, :ch], qkv[:, ch:2 * ch], qkv[:, 2 * ch:]
        w = jnp.einsum("bct,bcs->bts", q * scale, k * scale)
        w = jax.nn.softmax(w, axis=-1)
        a = jnp.einsum("bts,bcs->bct", w, v).reshape(B, C, T)
        proj = jnp.einsum("oc,bct->bot", raw["wproj"][n], a) + raw["bproj"][n][None, :, None]
        h = xn + proj
    return h


if __name__ == "__main__":
    B, spec_dim, T = 2, 16, 24      # T not a multiple of 128 -> exercises pad/mask path
    embedding_dim = 128             # lane-dense channels: groups=32 (4 ch/group), ch=32/head
    num_attn_heads = 4
    attn_blocks = 6

    key = jax.random.PRNGKey(0)
    kx, kp = jax.random.split(key)
    x = jax.random.normal(kx, (B, spec_dim, T), jnp.float32)
    # zero_proj=False so the attention/proj path is numerically exercised (the real
    # model zero-inits proj_out; that case is trivially covered too).
    raw = init_params(kp, spec_dim, embedding_dim, attn_blocks, zero_proj=False)
    kparams = prepare_params(raw, num_attn_heads)

    enc = jax.jit(functools.partial(conditioning_encoder,
                                    num_attn_heads=num_attn_heads))
    out = jax.block_until_ready(enc(x, kparams))

    assert out.shape == (B, embedding_dim, T), out.shape
    assert bool(jnp.all(jnp.isfinite(out)))

    # Loose-tolerance check vs the f32 reference (kernel uses bf16 MXU operands and
    # an approx softmax reciprocal -> small numeric deviation is expected).
    ref = reference_encoder(x, raw, num_attn_heads)
    rel_err = float(jnp.max(jnp.abs(out - ref)) / (jnp.max(jnp.abs(ref)) + 1e-6))
    assert rel_err < 0.1, f"kernel vs reference relative error too large: {rel_err}"

    print("KERNEL_OK")
</pallas_src>

<mosaic_0001>
module attributes {stable_mosaic.version = 11 : i64} {
  func.func @_fused_encoder_kernel(%arg0: i32, %arg1: i32, %arg2: memref<1x128x16xbf16, #tpu.memory_space<vmem>>, %arg3: memref<16x128xbf16, #tpu.memory_space<vmem>>, %arg4: memref<1x128xf32, #tpu.memory_space<vmem>>, %arg5: memref<128x32xf32, #tpu.memory_space<vmem>>, %arg6: memref<32x128xf32, #tpu.memory_space<vmem>>, %arg7: memref<128x1xf32, #tpu.memory_space<vmem>>, %arg8: memref<1x128xf32, #tpu.memory_space<vmem>>, %arg9: memref<1x1x128xf32, #tpu.memory_space<vmem>>, %arg10: memref<1x1x128xf32, #tpu.memory_space<vmem>>, %arg11: memref<1x128x384xbf16, #tpu.memory_space<vmem>>, %arg12: memref<1x1x384xf32, #tpu.memory_space<vmem>>, %arg13: memref<1x128x128xbf16, #tpu.memory_space<vmem>>, %arg14: memref<1x1x128xf32, #tpu.memory_space<vmem>>, %arg15: memref<1x128x128xf32, #tpu.memory_space<vmem>>) attributes {dimension_semantics = [#tpu.dimension_semantics<parallel>, #tpu.dimension_semantics<arbitrary>], iteration_bounds = array<i64: 2, 6>, scalar_prefetch = 0 : i64, scratch_operands = 0 : i64, tpu.core_type = #tpu.core_type<tc>, window_params = [{transform_indices = @transform_0, window_bounds = array<i64: 1, 128, 16>}, {pipeline_mode = #tpu.pipeline_mode<synchronous>, transform_indices = @transform_1, window_bounds = array<i64: 16, 128>}, {pipeline_mode = #tpu.pipeline_mode<synchronous>, transform_indices = @transform_2, window_bounds = array<i64: 1, 128>}, {pipeline_mode = #tpu.pipeline_mode<synchronous>, transform_indices = @transform_3, window_bounds = array<i64: 128, 32>}, {pipeline_mode = #tpu.pipeline_mode<synchronous>, transform_indices = @transform_4, window_bounds = array<i64: 32, 128>}, {pipeline_mode = #tpu.pipeline_mode<synchronous>, transform_indices = @transform_5, window_bounds = array<i64: 128, 1>}, {pipeline_mode = #tpu.pipeline_mode<synchronous>, transform_indices = @transform_6, window_bounds = array<i64: 1, 128>}, {transform_indices = @transform_7, window_bounds = array<i64: 1, 1, 128>}, {transform_indices = @transform_8, window_bounds = array<i64: 1, 1, 128>}, {transform_indices = @transform_9, window_bounds = array<i64: 1, 128, 384>}, {transform_indices = @transform_10, window_bounds = array<i64: 1, 1, 384>}, {transform_indices = @transform_11, window_bounds = array<i64: 1, 128, 128>}, {transform_indices = @transform_12, window_bounds = array<i64: 1, 1, 128>}, {transform_indices = @transform_13, window_bounds = array<i64: 1, 128, 128>}]} {
    %c0_i32 = arith.constant 0 : i32
    %0 = arith.cmpi eq, %arg1, %c0_i32 : i32
    %1 = arith.extui %0 : i1 to i32
    %c0_i32_0 = arith.constant 0 : i32
    %2 = arith.cmpi ne, %1, %c0_i32_0 : i32
    scf.if %2 {
      %c0_70 = arith.constant 0 : index
      %c0_71 = arith.constant 0 : index
      %c0_72 = arith.constant 0 : index
      %144 = vector.load %arg2[%c0_70, %c0_71, %c0_72] : memref<1x128x16xbf16, #tpu.memory_space<vmem>>, vector<1x128x16xbf16>
      %145 = vector.shape_cast %144 : vector<1x128x16xbf16> to vector<128x16xbf16>
      %c0_73 = arith.constant 0 : index
      %c0_74 = arith.constant 0 : index
      %146 = vector.load %arg3[%c0_73, %c0_74] : memref<16x128xbf16, #tpu.memory_space<vmem>>, vector<16x128xbf16>
      %cst_75 = arith.constant dense<0.000000e+00> : vector<128x128xf32>
      %147 = tpu.matmul %145, %146, %cst_75 {dimension_numbers = #tpu.dot_dimension_numbers<[1], [0], [0], [1], [0, 0, 1, 1], [], []>} : vector<128x16xbf16>, vector<16x128xbf16>, vector<128x128xf32> -> vector<128x128xf32>
      %c0_76 = arith.constant 0 : index
      %c0_77 = arith.constant 0 : index
      %148 = vector.load %arg4[%c0_76, %c0_77] : memref<1x128xf32, #tpu.memory_space<vmem>>, vector<1x128xf32>
      %149 = vector.broadcast %148 : vector<1x128xf32> to vector<128x128xf32>
      %150 = arith.addf %147, %149 : vector<128x128xf32>
      %c0_78 = arith.constant 0 : index
      %c0_79 = arith.constant 0 : index
      %151 = vector.load %arg7[%c0_78, %c0_79] : memref<128x1xf32, #tpu.memory_space<vmem>>, vector<128x1xf32>
      %152 = vector.broadcast %151 : vector<128x1xf32> to vector<128x128xf32>
      %153 = arith.mulf %150, %152 : vector<128x128xf32>
      %c0_80 = arith.constant 0 : index
      %c0_81 = arith.constant 0 : index
      %c0_82 = arith.constant 0 : index
      %154 = vector.load %arg15[%c0_80, %c0_81, %c0_82] : memref<1x128x128xf32, #tpu.memory_space<vmem>>, vector<1x128x128xf32>
      %155 = vector.shape_cast %154 : vector<1x128x128xf32> to vector<128x128xf32>
      %156 = vector.shape_cast %153 : vector<128x128xf32> to vector<1x128x128xf32>
      tpu.vector_store %arg15[%c0_80, %c0_81, %c0_82], %156 {strides = array<i32>} : memref<1x128x128xf32, #tpu.memory_space<vmem>>, vector<1x128x128xf32>,
    } else {
    }
    %c0 = arith.constant 0 : index
    %c0_1 = arith.constant 0 : index
    %c0_2 = arith.constant 0 : index
    %3 = vector.load %arg15[%c0, %c0_1, %c0_2] : memref<1x128x128xf32, #tpu.memory_space<vmem>>, vector<1x128x128xf32>
    %4 = vector.shape_cast %3 : vector<1x128x128xf32> to vector<128x128xf32>
    %cst = arith.constant dense<0.000000e+00> : vector<128xf32>
    %5 = vector.multi_reduction <add>, %4, %cst [0] : vector<128x128xf32> to vector<128xf32>
    %6 = vector.shape_cast %5 : vector<128xf32> to vector<1x128xf32>
    %c0_3 = arith.constant 0 : index
    %c0_4 = arith.constant 0 : index
    %7 = vector.load %arg5[%c0_3, %c0_4] : memref<128x32xf32, #tpu.memory_space<vmem>>, vector<128x32xf32>
    %cst_5 = arith.constant dense<0.000000e+00> : vector<1x32xf32>
    %8 = tpu.matmul %6, %7, %cst_5 {dimension_numbers = #tpu.dot_dimension_numbers<[1], [0], [0], [1], [0, 0, 1, 1], [], []>} : vector<1x128xf32>, vector<128x32xf32>, vector<1x32xf32> -> vector<1x32xf32>
    %cst_6 = arith.constant 0.010416667 : f32
    %9 = vector.broadcast %cst_6 : f32 to vector<1x32xf32>
    %10 = arith.mulf %8, %9 : vector<1x32xf32>
    %c0_7 = arith.constant 0 : index
    %c0_8 = arith.constant 0 : index
    %11 = vector.load %arg6[%c0_7, %c0_8] : memref<32x128xf32, #tpu.memory_space<vmem>>, vector<32x128xf32>
    %cst_9 = arith.constant dense<0.000000e+00> : vector<1x128xf32>
    %12 = tpu.matmul %10, %11, %cst_9 {dimension_numbers = #tpu.dot_dimension_numbers<[1], [0], [0], [1], [0, 0, 1, 1], [], []>} : vector<1x32xf32>, vector<32x128xf32>, vector<1x128xf32> -> vector<1x128xf32>
    %13 = vector.broadcast %12 : vector<1x128xf32> to vector<128x128xf32>
    %14 = arith.subf %4, %13 : vector<128x128xf32>
    %c0_10 = arith.constant 0 : index
    %c0_11 = arith.constant 0 : index
    %15 = vector.load %arg7[%c0_10, %c0_11] : memref<128x1xf32, #tpu.memory_space<vmem>>, vector<128x1xf32>
    %16 = vector.broadcast %15 : vector<128x1xf32> to vector<128x128xf32>
    %17 = arith.mulf %14, %16 : vector<128x128xf32>
    %18 = arith.mulf %17, %17 : vector<128x128xf32>
    %cst_12 = arith.constant dense<0.000000e+00> : vector<128xf32>
    %19 = vector.multi_reduction <add>, %18, %cst_12 [0] : vector<128x128xf32> to vector<128xf32>
    %20 = vector.shape_cast %19 : vector<128xf32> to vector<1x128xf32>
    %c0_13 = arith.constant 0 : index
    %c0_14 = arith.constant 0 : index
    %21 = vector.load %arg5[%c0_13, %c0_14] : memref<128x32xf32, #tpu.memory_space<vmem>>, vector<128x32xf32>
    %cst_15 = arith.constant dense<0.000000e+00> : vector<1x32xf32>
    %22 = tpu.matmul %20, %21, %cst_15 {dimension_numbers = #tpu.dot_dimension_numbers<[1], [0], [0], [1], [0, 0, 1, 1], [], []>} : vector<1x128xf32>, vector<128x32xf32>, vector<1x32xf32> -> vector<1x32xf32>
    %cst_16 = arith.constant 0.010416667 : f32
    %23 = vector.broadcast %cst_16 : f32 to vector<1x32xf32>
    %24 = arith.mulf %22, %23 : vector<1x32xf32>
    %cst_17 = arith.constant 9.99999974E-6 : f32
    %25 = vector.broadcast %cst_17 : f32 to vector<1x32xf32>
    %26 = arith.addf %24, %25 : vector<1x32xf32>
    %27 = math.rsqrt %26 : vector<1x32xf32>
    %c0_18 = arith.constant 0 : index
    %c0_19 = arith.constant 0 : index
    %28 = vector.load %arg6[%c0_18, %c0_19] : memref<32x128xf32, #tpu.memory_space<vmem>>, vector<32x128xf32>
    %cst_20 = arith.constant dense<0.000000e+00> : vector<1x128xf32>
    %29 = tpu.matmul %27, %28, %cst_20 {dimension_numbers = #tpu.dot_dimension_numbers<[1], [0], [0], [1], [0, 0, 1, 1], [], []>} : vector<1x32xf32>, vector<32x128xf32>, vector<1x128xf32> -> vector<1x128xf32>
    %30 = vector.broadcast %29 : vector<1x128xf32> to vector<128x128xf32>
    %31 = arith.mulf %14, %30 : vector<128x128xf32>
    %c0_21 = arith.constant 0 : index
    %c0_22 = arith.constant 0 : index
    %c0_23 = arith.constant 0 : index
    %32 = vector.load %arg9[%c0_21, %c0_22, %c0_23] : memref<1x1x128xf32, #tpu.memory_space<vmem>>, vector<1x1x128xf32>
    %33 = vector.shape_cast %32 : vector<1x1x128xf32> to vector<1x128xf32>
    %34 = vector.broadcast %33 : vector<1x128xf32> to vector<128x128xf32>
    %35 = arith.mulf %31, %34 : vector<128x128xf32>
    %c0_24 = arith.constant 0 : index
    %c0_25 = arith.constant 0 : index
    %c0_26 = arith.constant 0 : index
    %36 = vector.load %arg10[%c0_24, %c0_25, %c0_26] : memref<1x1x128xf32, #tpu.memory_space<vmem>>, vector<1x1x128xf32>
    %37 = vector.shape_cast %36 : vector<1x1x128xf32> to vector<1x128xf32>
    %38 = vector.broadcast %37 : vector<1x128xf32> to vector<128x128xf32>
    %39 = arith.addf %35, %38 : vector<128x128xf32>
    %40 = arith.truncf %39 : vector<128x128xf32> to vector<128x128xbf16>
    %c0_27 = arith.constant 0 : index
    %c0_28 = arith.constant 0 : index
    %c0_29 = arith.constant 0 : index
    %41 = vector.load %arg11[%c0_27, %c0_28, %c0_29] : memref<1x128x384xbf16, #tpu.memory_space<vmem>>, vector<1x128x384xbf16>
    %42 = vector.shape_cast %41 : vector<1x128x384xbf16> to vector<128x384xbf16>
    %cst_30 = arith.constant dense<0.000000e+00> : vector<128x384xf32>
    %43 = tpu.matmul %40, %42, %cst_30 {dimension_numbers = #tpu.dot_dimension_numbers<[1], [0], [0], [1], [0, 0, 1, 1], [], []>} : vector<128x128xbf16>, vector<128x384xbf16>, vector<128x384xf32> -> vector<128x384xf32>
    %c0_31 = arith.constant 0 : index
    %c0_32 = arith.constant 0 : index
    %c0_33 = arith.constant 0 : index
    %44 = vector.load %arg12[%c0_31, %c0_32, %c0_33] : memref<1x1x384xf32, #tpu.memory_space<vmem>>, vector<1x1x384xf32>
    %45 = vector.shape_cast %44 : vector<1x1x384xf32> to vector<1x384xf32>
    %46 = vector.broadcast %45 : vector<1x384xf32> to vector<128x384xf32>
    %47 = arith.addf %43, %46 : vector<128x384xf32>
    %48 = arith.truncf %47 : vector<128x384xf32> to vector<128x384xbf16>
    %49 = vector.extract_strided_slice %48 {offsets = [0, 0], sizes = [128, 32], strides = [1, 1]} : vector<128x384xbf16> to vector<128x32xbf16>
    %50 = vector.extract_strided_slice %48 {offsets = [0, 128], sizes = [128, 32], strides = [1, 1]} : vector<128x384xbf16> to vector<128x32xbf16>
    %51 = vector.extract_strided_slice %48 {offsets = [0, 256], sizes = [128, 32], strides = [1, 1]} : vector<128x384xbf16> to vector<128x32xbf16>
    %cst_34 = arith.constant dense<0.000000e+00> : vector<128x128xf32>
    %52 = tpu.matmul %49, %50, %cst_34 {dimension_numbers = #tpu.dot_dimension_numbers<[1], [1], [0], [0], [0, 0, 1, 0], [], []>} : vector<128x32xbf16>, vector<128x32xbf16>, vector<128x128xf32> -> vector<128x128xf32>
    %c0_35 = arith.constant 0 : index
    %c0_36 = arith.constant 0 : index
    %53 = vector.load %arg8[%c0_35, %c0_36] : memref<1x128xf32, #tpu.memory_space<vmem>>, vector<1x128xf32>
    %54 = vector.broadcast %53 : vector<1x128xf32> to vector<128x128xf32>
    %55 = arith.addf %52, %54 : vector<128x128xf32>
    %cst_37 = arith.constant dense<0xFF800000> : vector<128xf32>
    %56 = vector.multi_reduction <maximumf>, %55, %cst_37 [1] : vector<128x128xf32> to vector<128xf32>
    %57 = vector.shape_cast %56 : vector<128xf32> to vector<128x1xf32>
    %58 = vector.broadcast %57 : vector<128x1xf32> to vector<128x128xf32>
    %59 = arith.subf %55, %58 : vector<128x128xf32>
    %60 = math.exp %59 : vector<128x128xf32>
    %cst_38 = arith.constant dense<0.000000e+00> : vector<128xf32>
    %61 = vector.multi_reduction <add>, %60, %cst_38 [1] : vector<128x128xf32> to vector<128xf32>
    %62 = vector.shape_cast %61 : vector<128xf32> to vector<128x1xf32>
    %63 = tpu.reciprocal %62 {approx = true} : vector<128x1xf32> -> vector<128x1xf32>
    %64 = vector.broadcast %63 : vector<128x1xf32> to vector<128x128xf32>
    %65 = arith.mulf %60, %64 : vector<128x128xf32>
    %66 = arith.truncf %65 : vector<128x128xf32> to vector<128x128xbf16>
    %cst_39 = arith.constant dense<0.000000e+00> : vector<128x32xf32>
    %67 = tpu.matmul %66, %51, %cst_39 {dimension_numbers = #tpu.dot_dimension_numbers<[1], [0], [0], [1], [0, 0, 1, 1], [], []>} : vector<128x128xbf16>, vector<128x32xbf16>, vector<128x32xf32> -> vector<128x32xf32>
    %68 = arith.truncf %67 : vector<128x32xf32> to vector<128x32xbf16>
    %69 = vector.extract_strided_slice %48 {offsets = [0, 32], sizes = [128, 32], strides = [1, 1]} : vector<128x384xbf16> to vector<128x32xbf16>
    %70 = vector.extract_strided_slice %48 {offsets = [0, 160], sizes = [128, 32], strides = [1, 1]} : vector<128x384xbf16> to vector<128x32xbf16>
    %71 = vector.extract_strided_slice %48 {offsets = [0, 288], sizes = [128, 32], strides = [1, 1]} : vector<128x384xbf16> to vector<128x32xbf16>
    %cst_40 = arith.constant dense<0.000000e+00> : vector<128x128xf32>
    %72 = tpu.matmul %69, %70, %cst_40 {dimension_numbers = #tpu.dot_dimension_numbers<[1], [1], [0], [0], [0, 0, 1, 0], [], []>} : vector<128x32xbf16>, vector<128x32xbf16>, vector<128x128xf32> -> vector<128x128xf32>
    %c0_41 = arith.constant 0 : index
    %c0_42 = arith.constant 0 : index
    %73 = vector.load %arg8[%c0_41, %c0_42] : memref<1x128xf32, #tpu.memory_space<vmem>>, vector<1x128xf32>
    %74 = vector.broadcast %73 : vector<1x128xf32> to vector<128x128xf32>
    %75 = arith.addf %72, %74 : vector<128x128xf32>
    %cst_43 = arith.constant dense<0xFF800000> : vector<128xf32>
    %76 = vector.multi_reduction <maximumf>, %75, %cst_43 [1] : vector<128x128xf32> to vector<128xf32>
    %77 = vector.shape_cast %76 : vector<128xf32> to vector<128x1xf32>
    %78 = vector.broadcast %77 : vector<128x1xf32> to vector<128x128xf32>
    %79 = arith.subf %75, %78 : vector<128x128xf32>
    %80 = math.exp %79 : vector<128x128xf32>
    %cst_44 = arith.constant dense<0.000000e+00> : vector<128xf32>
    %81 = vector.multi_reduction <add>, %80, %cst_44 [1] : vector<128x128xf32> to vector<128xf32>
    %82 = vector.shape_cast %81 : vector<128xf32> to vector<128x1xf32>
    %83 = tpu.reciprocal %82 {approx = true} : vector<128x1xf32> -> vector<128x1xf32>
    %84 = vector.broadcast %83 : vector<128x1xf32> to vector<128x128xf32>
    %85 = arith.mulf %80, %84 : vector<128x128xf32>
    %86 = arith.truncf %85 : vector<128x128xf32> to vector<128x128xbf16>
    %cst_45 = arith.constant dense<0.000000e+00> : vector<128x32xf32>
    %87 = tpu.matmul %86, %71, %cst_45 {dimension_numbers = #tpu.dot_dimension_numbers<[1], [0], [0], [1], [0, 0, 1, 1], [], []>} : vector<128x128xbf16>, vector<128x32xbf16>, vector<128x32xf32> -> vector<128x32xf32>
    %88 = arith.truncf %87 : vector<128x32xf32> to vector<128x32xbf16>
    %89 = vector.extract_strided_slice %48 {offsets = [0, 64], sizes = [128, 32], strides = [1, 1]} : vector<128x384xbf16> to vector<128x32xbf16>
    %90 = vector.extract_strided_slice %48 {offsets = [0, 192], sizes = [128, 32], strides = [1, 1]} : vector<128x384xbf16> to vector<128x32xbf16>
    %91 = vector.extract_strided_slice %48 {offsets = [0, 320], sizes = [128, 32], strides = [1, 1]} : vector<128x384xbf16> to vector<128x32xbf16>
    %cst_46 = arith.constant dense<0.000000e+00> : vector<128x128xf32>
    %92 = tpu.matmul %89, %90, %cst_46 {dimension_numbers = #tpu.dot_dimension_numbers<[1], [1], [0], [0], [0, 0, 1, 0], [], []>} : vector<128x32xbf16>, vector<128x32xbf16>, vector<128x128xf32> -> vector<128x128xf32>
    %c0_47 = arith.constant 0 : index
    %c0_48 = arith.constant 0 : index
    %93 = vector.load %arg8[%c0_47, %c0_48] : memref<1x128xf32, #tpu.memory_space<vmem>>, vector<1x128xf32>
    %94 = vector.broadcast %93 : vector<1x128xf32> to vector<128x128xf32>
    %95 = arith.addf %92, %94 : vector<128x128xf32>
    %cst_49 = arith.constant dense<0xFF800000> : vector<128xf32>
    %96 = vector.multi_reduction <maximumf>, %95, %cst_49 [1] : vector<128x128xf32> to vector<128xf32>
    %97 = vector.shape_cast %96 : vector<128xf32> to vector<128x1xf32>
    %98 = vector.broadcast %97 : vector<128x1xf32> to vector<128x128xf32>
    %99 = arith.subf %95, %98 : vector<128x128xf32>
    %100 = math.exp %99 : vector<128x128xf32>
    %cst_50 = arith.constant dense<0.000000e+00> : vector<128xf32>
    %101 = vector.multi_reduction <add>, %100, %cst_50 [1] : vector<128x128xf32> to vector<128xf32>
    %102 = vector.shape_cast %101 : vector<128xf32> to vector<128x1xf32>
    %103 = tpu.reciprocal %102 {approx = true} : vector<128x1xf32> -> vector<128x1xf32>
    %104 = vector.broadcast %103 : vector<128x1xf32> to vector<128x128xf32>
    %105 = arith.mulf %100, %104 : vector<128x128xf32>
    %106 = arith.truncf %105 : vector<128x128xf32> to vector<128x128xbf16>
    %cst_51 = arith.constant dense<0.000000e+00> : vector<128x32xf32>
    %107 = tpu.matmul %106, %91, %cst_51 {dimension_numbers = #tpu.dot_dimension_numbers<[1], [0], [0], [1], [0, 0, 1, 1], [], []>} : vector<128x128xbf16>, vector<128x32xbf16>, vector<128x32xf32> -> vector<128x32xf32>
    %108 = arith.truncf %107 : vector<128x32xf32> to vector<128x32xbf16>
    %109 = vector.extract_strided_slice %48 {offsets = [0, 96], sizes = [128, 32], strides = [1, 1]} : vector<128x384xbf16> to vector<128x32xbf16>
    %110 = vector.extract_strided_slice %48 {offsets = [0, 224], sizes = [128, 32], strides = [1, 1]} : vector<128x384xbf16> to vector<128x32xbf16>
    %111 = vector.extract_strided_slice %48 {offsets = [0, 352], sizes = [128, 32], strides = [1, 1]} : vector<128x384xbf16> to vector<128x32xbf16>
    %cst_52 = arith.constant dense<0.000000e+00> : vector<128x128xf32>
    %112 = tpu.matmul %109, %110, %cst_52 {dimension_numbers = #tpu.dot_dimension_numbers<[1], [1], [0], [0], [0, 0, 1, 0], [], []>} : vector<128x32xbf16>, vector<128x32xbf16>, vector<128x128xf32> -> vector<128x128xf32>
    %c0_53 = arith.constant 0 : index
    %c0_54 = arith.constant 0 : index
    %113 = vector.load %arg8[%c0_53, %c0_54] : memref<1x128xf32, #tpu.memory_space<vmem>>, vector<1x128xf32>
    %114 = vector.broadcast %113 : vector<1x128xf32> to vector<128x128xf32>
    %115 = arith.addf %112, %114 : vector<128x128xf32>
    %cst_55 = arith.constant dense<0xFF800000> : vector<128xf32>
    %116 = vector.multi_reduction <maximumf>, %115, %cst_55 [1] : vector<128x128xf32> to vector<128xf32>
    %117 = vector.shape_cast %116 : vector<128xf32> to vector<128x1xf32>
    %118 = vector.broadcast %117 : vector<128x1xf32> to vector<128x128xf32>
    %119 = arith.subf %115, %118 : vector<128x128xf32>
    %120 = math.exp %119 : vector<128x128xf32>
    %cst_56 = arith.constant dense<0.000000e+00> : vector<128xf32>
    %121 = vector.multi_reduction <add>, %120, %cst_56 [1] : vector<128x128xf32> to vector<128xf32>
    %122 = vector.shape_cast %121 : vector<128xf32> to vector<128x1xf32>
    %123 = tpu.reciprocal %122 {approx = true} : vector<128x1xf32> -> vector<128x1xf32>
    %124 = vector.broadcast %123 : vector<128x1xf32> to vector<128x128xf32>
    %125 = arith.mulf %120, %124 : vector<128x128xf32>
    %126 = arith.truncf %125 : vector<128x128xf32> to vector<128x128xbf16>
    %cst_57 = arith.constant dense<0.000000e+00> : vector<128x32xf32>
    %127 = tpu.matmul %126, %111, %cst_57 {dimension_numbers = #tpu.dot_dimension_numbers<[1], [0], [0], [1], [0, 0, 1, 1], [], []>} : vector<128x128xbf16>, vector<128x32xbf16>, vector<128x32xf32> -> vector<128x32xf32>
    %128 = arith.truncf %127 : vector<128x32xf32> to vector<128x32xbf16>
    %129 = tpu.concatenate %68, %88, %108, %128 in 1 : vector<128x32xbf16>, vector<128x32xbf16>, vector<128x32xbf16>, vector<128x32xbf16> -> vector<128x128xbf16>
    %c0_58 = arith.constant 0 : index
    %c0_59 = arith.constant 0 : index
    %c0_60 = arith.constant 0 : index
    %130 = vector.load %arg13[%c0_58, %c0_59, %c0_60] : memref<1x128x128xbf16, #tpu.memory_space<vmem>>, vector<1x128x128xbf16>
    %131 = vector.shape_cast %130 : vector<1x128x128xbf16> to vector<128x128xbf16>
    %cst_61 = arith.constant dense<0.000000e+00> : vector<128x128xf32>
    %132 = tpu.matmul %129, %131, %cst_61 {dimension_numbers = #tpu.dot_dimension_numbers<[1], [0], [0], [1], [0, 0, 1, 1], [], []>} : vector<128x128xbf16>, vector<128x128xbf16>, vector<128x128xf32> -> vector<128x128xf32>
    %c0_62 = arith.constant 0 : index
    %c0_63 = arith.constant 0 : index
    %c0_64 = arith.constant 0 : index
    %133 = vector.load %arg14[%c0_62, %c0_63, %c0_64] : memref<1x1x128xf32, #tpu.memory_space<vmem>>, vector<1x1x128xf32>
    %134 = vector.shape_cast %133 : vector<1x1x128xf32> to vector<1x128xf32>
    %135 = vector.broadcast %134 : vector<1x128xf32> to vector<128x128xf32>
    %136 = arith.addf %132, %135 : vector<128x128xf32>
    %137 = arith.addf %39, %136 : vector<128x128xf32>
    %c0_65 = arith.constant 0 : index
    %c0_66 = arith.constant 0 : index
    %138 = vector.load %arg7[%c0_65, %c0_66] : memref<128x1xf32, #tpu.memory_space<vmem>>, vector<128x1xf32>
    %139 = vector.broadcast %138 : vector<128x1xf32> to vector<128x128xf32>
    %140 = arith.mulf %137, %139 : vector<128x128xf32>
    %c0_67 = arith.constant 0 : index
    %c0_68 = arith.constant 0 : index
    %c0_69 = arith.constant 0 : index
    %141 = vector.load %arg15[%c0_67, %c0_68, %c0_69] : memref<1x128x128xf32, #tpu.memory_space<vmem>>, vector<1x128x128xf32>
    %142 = vector.shape_cast %141 : vector<1x128x128xf32> to vector<128x128xf32>
    %143 = vector.shape_cast %140 : vector<128x128xf32> to vector<1x128x128xf32>
    tpu.vector_store %arg15[%c0_67, %c0_68, %c0_69], %143 {strides = array<i32>} : memref<1x128x128xf32, #tpu.memory_space<vmem>>, vector<1x128x128xf32>,
    return
  }
  func.func @transform_0(%arg0: i32, %arg1: i32) -> (i32, i32, i32) {
    %c0_i32 = arith.constant 0 : i32
    %c0_i32_0 = arith.constant 0 : i32
    %c0_i32_1 = arith.constant 0 : i32
    return %arg0, %c0_i32, %c0_i32_0 : i32, i32, i32
  }
  func.func @transform_1(%arg0: i32, %arg1: i32) -> (i32, i32) {
    %c0_i32 = arith.constant 0 : i32
    %c0_i32_0 = arith.constant 0 : i32
    %c0_i32_1 = arith.constant 0 : i32
    return %c0_i32, %c0_i32_0 : i32, i32
  }
  func.func @transform_2(%arg0: i32, %arg1: i32) -> (i32, i32) {
    %c0_i32 = arith.constant 0 : i32
    %c0_i32_0 = arith.constant 0 : i32
    %c0_i32_1 = arith.constant 0 : i32
    return %c0_i32, %c0_i32_0 : i32, i32
  }
  func.func @transform_3(%arg0: i32, %arg1: i32) -> (i32, i32) {
    %c0_i32 = arith.constant 0 : i32
    %c0_i32_0 = arith.constant 0 : i32
    %c0_i32_1 = arith.constant 0 : i32
    return %c0_i32, %c0_i32_0 : i32, i32
  }
  func.func @transform_4(%arg0: i32, %arg1: i32) -> (i32, i32) {
    %c0_i32 = arith.constant 0 : i32
    %c0_i32_0 = arith.constant 0 : i32
    %c0_i32_1 = arith.constant 0 : i32
    return %c0_i32, %c0_i32_0 : i32, i32
  }
  func.func @transform_5(%arg0: i32, %arg1: i32) -> (i32, i32) {
    %c0_i32 = arith.constant 0 : i32
    %c0_i32_0 = arith.constant 0 : i32
    %c0_i32_1 = arith.constant 0 : i32
    return %c0_i32, %c0_i32_0 : i32, i32
  }
  func.func @transform_6(%arg0: i32, %arg1: i32) -> (i32, i32) {
    %c0_i32 = arith.constant 0 : i32
    %c0_i32_0 = arith.constant 0 : i32
    %c0_i32_1 = arith.constant 0 : i32
    return %c0_i32, %c0_i32_0 : i32, i32
  }
  func.func @transform_7(%arg0: i32, %arg1: i32) -> (i32, i32, i32) {
    %c0_i32 = arith.constant 0 : i32
    %c0_i32_0 = arith.constant 0 : i32
    %c0_i32_1 = arith.constant 0 : i32
    return %arg1, %c0_i32, %c0_i32_0 : i32, i32, i32
  }
  func.func @transform_8(%arg0: i32, %arg1: i32) -> (i32, i32, i32) {
    %c0_i32 = arith.constant 0 : i32
    %c0_i32_0 = arith.constant 0 : i32
    %c0_i32_1 = arith.constant 0 : i32
    return %arg1, %c0_i32, %c0_i32_0 : i32, i32, i32
  }
  func.func @transform_9(%arg0: i32, %arg1: i32) -> (i32, i32, i32) {
    %c0_i32 = arith.constant 0 : i32
    %c0_i32_0 = arith.constant 0 : i32
    %c0_i32_1 = arith.constant 0 : i32
    return %arg1, %c0_i32, %c0_i32_0 : i32, i32, i32
  }
  func.func @transform_10(%arg0: i32, %arg1: i32) -> (i32, i32, i32) {
    %c0_i32 = arith.constant 0 : i32
    %c0_i32_0 = arith.constant 0 : i32
    %c0_i32_1 = arith.constant 0 : i32
    return %arg1, %c0_i32, %c0_i32_0 : i32, i32, i32
  }
  func.func @transform_11(%arg0: i32, %arg1: i32) -> (i32, i32, i32) {
    %c0_i32 = arith.constant 0 : i32
    %c0_i32_0 = arith.constant 0 : i32
    %c0_i32_1 = arith.constant 0 : i32
    return %arg1, %c0_i32, %c0_i32_0 : i32, i32, i32
  }
  func.func @transform_12(%arg0: i32, %arg1: i32) -> (i32, i32, i32) {
    %c0_i32 = arith.constant 0 : i32
    %c0_i32_0 = arith.constant 0 : i32
    %c0_i32_1 = arith.constant 0 : i32
    return %arg1, %c0_i32, %c0_i32_0 : i32, i32, i32
  }
  func.func @transform_13(%arg0: i32, %arg1: i32) -> (i32, i32, i32) {
    %c0_i32 = arith.constant 0 : i32
    %c0_i32_0 = arith.constant 0 : i32
    %c0_i32_1 = arith.constant 0 : i32
    return %arg0, %c0_i32, %c0_i32_0 : i32, i32, i32
  }
}

</mosaic_0001>

<llo_original>
// kernel: conditioning_encoder.1
$region0: #{conditioning_encoder.1}
  #allocation0 [shape = 'u32[]', space=smem, size = 0x4, offset = 0x4, fixed_abs, tag = 'smem constant byte address 0x4 - core index']
  #allocation1 [shape = 'u32[144,128]{1,0:T(1,128)}', space=vmem, size = 0x12000, scoped, tag = 'internal scratch']
  %s0 = inlined_call_operand.vmem [shape: bf16[2,128,16], index: 0, kind: input, shape index: {}]
  %s1 = inlined_call_operand.vmem [shape: bf16[16,128], index: 1, kind: input, shape index: {}]
  %s2 = inlined_call_operand.vmem [shape: f32[1,128], index: 2, kind: input, shape index: {}]
  %s3 = inlined_call_operand.vmem [shape: f32[128,32], index: 3, kind: input, shape index: {}]
  %s4 = inlined_call_operand.vmem [shape: f32[32,128], index: 4, kind: input, shape index: {}]
  %s5 = inlined_call_operand.vmem [shape: f32[128,1], index: 5, kind: input, shape index: {}]
  %s6 = inlined_call_operand.vmem [shape: f32[1,128], index: 6, kind: input, shape index: {}]
  %s7 = inlined_call_operand.vmem [shape: f32[6,1,128], index: 7, kind: input, shape index: {}]
  %s8 = inlined_call_operand.vmem [shape: f32[6,1,128], index: 8, kind: input, shape index: {}]
  %s9 = inlined_call_operand.hbm [shape: bf16[6,128,384], index: 9, kind: input, shape index: {}]
  %s10 = inlined_call_operand.vmem [shape: f32[6,1,384], index: 10, kind: input, shape index: {}]
  %s11 = inlined_call_operand.vmem [shape: bf16[6,128,128], index: 11, kind: input, shape index: {}]
  %s12 = inlined_call_operand.vmem [shape: f32[6,1,128], index: 12, kind: input, shape index: {}]
  %s13 = inlined_call_operand.vmem [shape: f32[2,128,128], index: 13, kind: output, shape index: {}]
  %s14 = sld [smem:[#allocation0]]
  $region93: #{conditioning_encoder.1} parent=0
    _
  %s16 = ssub.s32 1, %s14
  %s17 = scalar_select 0, %s16, %s14
  $region1: #{conditioning_encoder.1} parent=0
    #allocation2 [shape = 'u8[196608]{0}', space=vmem, size = 0x30000, scoped, tag = 'input window, operand 9']
    #allocation3 [shape = 's32[2]{0}', space=sflag, size = 0x8, scoped, tag = 'scoped memory for conditioning_encoder.1']
    %18 = vsyncpa [#allocation3], 0
    %s19 = scalar_lea.sflag [#allocation3], 1
    %20 = vsyncpa %s19, 0
    loop: start=0, step=1, limit=14
    $region2: #{conditioning_encoder.1} parent=1 // loop_pre_header
      _
    $region3: #{conditioning_encoder.1} parent=1 // loop_header
      %s22 = sphi 0, %s26
      %p23 = scmp.ge.s32.totalorder %s22, 14
      %s29 = sphi 0, %s41
      %s30 = sphi 0, %s37
      %s31 = sphi 0, %s29
      %s32 = sphi 0, %s30
      %s33 = sphi 0, %s31
      %s34 = sphi 0, %s32
      %s44 = sphi 0, %s46
      %s47 = sphi 0, %s44
      %s48 = sphi 0, %s47
      %s64 = sphi 0, %s48
      %s68 = sphi 0, %s68
      %s70 = sphi 0, %s68
      %s71 = sphi 0, %s70
      %s85 = sphi 0, %s71
      %s89 = sphi 0, %s89
      %s91 = sphi 0, %s89
      %s92 = sphi 0, %s91
      %s106 = sphi 0, %s92
      %s110 = sphi 0, %s110
      %s112 = sphi 0, %s110
      %s113 = sphi 0, %s112
      %s127 = sphi 0, %s113
      %s131 = sphi 0, %s131
      %s133 = sphi 0, %s131
      %s134 = sphi 0, %s133
      %s148 = sphi 0, %s134
      %s152 = sphi 0, %s152
      %s154 = sphi 0, %s152
      %s155 = sphi 0, %s154
      %s169 = sphi 0, %s155
      %s173 = sphi 0, %s173
      %s175 = sphi 0, %s173
      %s176 = sphi 0, %s175
      %s190 = sphi 0, %s176
      %s196 = sphi 0, %s198
      %s199 = sphi 0, %s196
      %s200 = sphi 0, %s199
      %s216 = sphi 0, %s200
      %s222 = sphi 0, %s224
      %s225 = sphi 0, %s222
      %s226 = sphi 0, %s225
      %s242 = sphi 0, %s226
      %s248 = sphi 0, %s250
      %s251 = sphi 0, %s248
      %s252 = sphi 0, %s251
      %s268 = sphi 0, %s252
      %s274 = sphi 0, %s276
      %s277 = sphi 0, %s274
      %s278 = sphi 0, %s277
      %s294 = sphi 0, %s278
      %s300 = sphi 0, %s302
      %s303 = sphi 0, %s300
      %s304 = sphi 0, %s303
      %s320 = sphi 0, %s304
      %s326 = sphi 0, %s328
      %s329 = sphi 0, %s326
      %s330 = sphi 0, %s329
      %s346 = sphi 0, %s330
      %s352 = sphi 0, %s354
      %s355 = sphi 0, %s352
      %s356 = sphi 0, %s355
      %s372 = sphi 0, %s356
    $region4: #{conditioning_encoder.1} parent=1 // loop_header_branch
      %25 = sbr.rel (%p23) target = $region8
    $region5: #{conditioning_encoder.1} parent=1 // loop_body
      %s27 = ssub.s32 %s22, 1
      %s28 = ssub.s32 %s22, 2
      %s35 = sadd.s32 1, %s30
      %p36 = scmp.ge.s32.totalorder %s35, 6
      %s37 = scalar_select %p36, 0, %s35
      %s38 = sadd.s32 1, %s29
      %s39 = scalar_select %p36, %s38, %s29
      %p40 = scmp.ge.s32.totalorder %s39, 2
      %s41 = scalar_select %p40, 0, %s39
      %s42 = ssub.s32 %s29, %s41
      %p43 = scmp.eq.s32.totalorder %s42, 0
      %s45 = sadd.s32 %s44, 1
      %s46 = scalar_select %p43, %s44, %s45
      %p49 = pneg %p43
      %p50 = scmp.eq.s32.totalorder %s22, 11
      %p51 = por %p49, %p50
      %p52 = scmp.ne.s32.totalorder %s44, %s47
      %p53 = scmp.eq.s32.totalorder %s22, 0
      %p54 = por %p52, %p53
      %p55 = scmp.ne.s32.totalorder %s44, %s47
      %p56 = scmp.eq.s32.totalorder %s27, 11
      %p57 = por %p55, %p56
      %p58 = scmp.ne.s32.totalorder %s47, %s48
      %p59 = scmp.eq.s32.totalorder %s27, 0
      %p60 = por %p58, %p59
      %p61 = scmp.ne.s32.totalorder %s47, %s48
      %p62 = scmp.eq.s32.totalorder %s28, 11
      %p63 = por %p61, %p62
      %p65 = scmp.ne.s32.totalorder %s48, %s64
      %p66 = scmp.eq.s32.totalorder %s28, 0
      %p67 = por %p65, %p66
      %s69 = sadd.s32 %s68, 1
      %p72 = scmp.eq.s32.totalorder %s22, 11
      %p73 = scmp.ne.s32.totalorder %s68, %s70
      %p74 = scmp.eq.s32.totalorder %s22, 0
      %p75 = por %p73, %p74
      %p76 = scmp.ne.s32.totalorder %s68, %s70
      %p77 = scmp.eq.s32.totalorder %s27, 11
      %p78 = por %p76, %p77
      %p79 = scmp.ne.s32.totalorder %s70, %s71
      %p80 = scmp.eq.s32.totalorder %s27, 0
      %p81 = por %p79, %p80
      %p82 = scmp.ne.s32.totalorder %s70, %s71
      %p83 = scmp.eq.s32.totalorder %s28, 11
      %p84 = por %p82, %p83
      %p86 = scmp.ne.s32.totalorder %s71, %s85
      %p87 = scmp.eq.s32.totalorder %s28, 0
      %p88 = por %p86, %p87
      %s90 = sadd.s32 %s89, 1
      %p93 = scmp.eq.s32.totalorder %s22, 11
      %p94 = scmp.ne.s32.totalorder %s89, %s91
      %p95 = scmp.eq.s32.totalorder %s22, 0
      %p96 = por %p94, %p95
      %p97 = scmp.ne.s32.totalorder %s89, %s91
      %p98 = scmp.eq.s32.totalorder %s27, 11
      %p99 = por %p97, %p98
      %p100 = scmp.ne.s32.totalorder %s91, %s92
      %p101 = scmp.eq.s32.totalorder %s27, 0
      %p102 = por %p100, %p101
      %p103 = scmp.ne.s32.totalorder %s91, %s92
      %p104 = scmp.eq.s32.totalorder %s28, 11
      %p105 = por %p103, %p104
      %p107 = scmp.ne.s32.totalorder %s92, %s106
      %p108 = scmp.eq.s32.totalorder %s28, 0
      %p109 = por %p107, %p108
      %s111 = sadd.s32 %s110, 1
      %p114 = scmp.eq.s32.totalorder %s22, 11
      %p115 = scmp.ne.s32.totalorder %s110, %s112
      %p116 = scmp.eq.s32.totalorder %s22, 0
      %p117 = por %p115, %p116
      %p118 = scmp.ne.s32.totalorder %s110, %s112
      %p119 = scmp.eq.s32.totalorder %s27, 11
      %p120 = por %p118, %p119
      %p121 = scmp.ne.s32.totalorder %s112, %s113
      %p122 = scmp.eq.s32.totalorder %s27, 0
      %p123 = por %p121, %p122
      %p124 = scmp.ne.s32.totalorder %s112, %s113
      %p125 = scmp.eq.s32.totalorder %s28, 11
      %p126 = por %p124, %p125
      %p128 = scmp.ne.s32.totalorder %s113, %s127
      %p129 = scmp.eq.s32.totalorder %s28, 0
      %p130 = por %p128, %p129
      %s132 = sadd.s32 %s131, 1
      %p135 = scmp.eq.s32.totalorder %s22, 11
      %p136 = scmp.ne.s32.totalorder %s131, %s133
      %p137 = scmp.eq.s32.totalorder %s22, 0
      %p138 = por %p136, %p137
      %p139 = scmp.ne.s32.totalorder %s131, %s133
      %p140 = scmp.eq.s32.totalorder %s27, 11
      %p141 = por %p139, %p140
      %p142 = scmp.ne.s32.totalorder %s133, %s134
      %p143 = scmp.eq.s32.totalorder %s27, 0
      %p144 = por %p142, %p143
      %p145 = scmp.ne.s32.totalorder %s133, %s134
      %p146 = scmp.eq.s32.totalorder %s28, 11
      %p147 = por %p145, %p146
      %p149 = scmp.ne.s32.totalorder %s134, %s148
      %p150 = scmp.eq.s32.totalorder %s28, 0
      %p151 = por %p149, %p150
      %s153 = sadd.s32 %s152, 1
      %p156 = scmp.eq.s32.totalorder %s22, 11
      %p157 = scmp.ne.s32.totalorder %s152, %s154
      %p158 = scmp.eq.s32.totalorder %s22, 0
      %p159 = por %p157, %p158
      %p160 = scmp.ne.s32.totalorder %s152, %s154
      %p161 = scmp.eq.s32.totalorder %s27, 11
      %p162 = por %p160, %p161
      %p163 = scmp.ne.s32.totalorder %s154, %s155
      %p164 = scmp.eq.s32.totalorder %s27, 0
      %p165 = por %p163, %p164
      %p166 = scmp.ne.s32.totalorder %s154, %s155
      %p167 = scmp.eq.s32.totalorder %s28, 11
      %p168 = por %p166, %p167
      %p170 = scmp.ne.s32.totalorder %s155, %s169
      %p171 = scmp.eq.s32.totalorder %s28, 0
      %p172 = por %p170, %p171
      %s174 = sadd.s32 %s173, 1
      %p177 = scmp.eq.s32.totalorder %s22, 11
      %p178 = scmp.ne.s32.totalorder %s173, %s175
      %p179 = scmp.eq.s32.totalorder %s22, 0
      %p180 = por %p178, %p179
      %p181 = scmp.ne.s32.totalorder %s173, %s175
      %p182 = scmp.eq.s32.totalorder %s27, 11
      %p183 = por %p181, %p182
      %p184 = scmp.ne.s32.totalorder %s175, %s176
      %p185 = scmp.eq.s32.totalorder %s27, 0
      %p186 = por %p184, %p185
      %p187 = scmp.ne.s32.totalorder %s175, %s176
      %p188 = scmp.eq.s32.totalorder %s28, 11
      %p189 = por %p187, %p188
      %p191 = scmp.ne.s32.totalorder %s176, %s190
      %p192 = scmp.eq.s32.totalorder %s28, 0
      %p193 = por %p191, %p192
      %s194 = ssub.s32 %s30, %s37
      %p195 = scmp.eq.s32.totalorder %s194, 0
      %s197 = sadd.s32 %s196, 1
      %s198 = scalar_select %p195, %s196, %s197
      %p201 = pneg %p195
      %p202 = scmp.eq.s32.totalorder %s22, 11
      %p203 = por %p201, %p202
      %p204 = scmp.ne.s32.totalorder %s196, %s199
      %p205 = scmp.eq.s32.totalorder %s22, 0
      %p206 = por %p204, %p205
      %p207 = scmp.ne.s32.totalorder %s196, %s199
      %p208 = scmp.eq.s32.totalorder %s27, 11
      %p209 = por %p207, %p208
      %p210 = scmp.ne.s32.totalorder %s199, %s200
      %p211 = scmp.eq.s32.totalorder %s27, 0
      %p212 = por %p210, %p211
      %p213 = scmp.ne.s32.totalorder %s199, %s200
      %p214 = scmp.eq.s32.totalorder %s28, 11
      %p215 = por %p213, %p214
      %p217 = scmp.ne.s32.totalorder %s200, %s216
      %p218 = scmp.eq.s32.totalorder %s28, 0
      %p219 = por %p217, %p218
      %s220 = ssub.s32 %s30, %s37
      %p221 = scmp.eq.s32.totalorder %s220, 0
      %s223 = sadd.s32 %s222, 1
      %s224 = scalar_select %p221, %s222, %s223
      %p227 = pneg %p221
      %p228 = scmp.eq.s32.totalorder %s22, 11
      %p229 = por %p227, %p228
      %p230 = scmp.ne.s32.totalorder %s222, %s225
      %p231 = scmp.eq.s32.totalorder %s22, 0
      %p232 = por %p230, %p231
      %p233 = scmp.ne.s32.totalorder %s222, %s225
      %p234 = scmp.eq.s32.totalorder %s27, 11
      %p235 = por %p233, %p234
      %p236 = scmp.ne.s32.totalorder %s225, %s226
      %p237 = scmp.eq.s32.totalorder %s27, 0
      %p238 = por %p236, %p237
      %p239 = scmp.ne.s32.totalorder %s225, %s226
      %p240 = scmp.eq.s32.totalorder %s28, 11
      %p241 = por %p239, %p240
      %p243 = scmp.ne.s32.totalorder %s226, %s242
      %p244 = scmp.eq.s32.totalorder %s28, 0
      %p245 = por %p243, %p244
      %s246 = ssub.s32 %s30, %s37
      %p247 = scmp.eq.s32.totalorder %s246, 0
      %s249 = sadd.s32 %s248, 1
      %s250 = scalar_select %p247, %s248, %s249
      %p253 = pneg %p247
      %p254 = scmp.eq.s32.totalorder %s22, 11
      %p255 = por %p253, %p254
      %p256 = scmp.ne.s32.totalorder %s248, %s251
      %p257 = scmp.eq.s32.totalorder %s22, 0
      %p258 = por %p256, %p257
      %p259 = scmp.ne.s32.totalorder %s248, %s251
      %p260 = scmp.eq.s32.totalorder %s27, 11
      %p261 = por %p259, %p260
      %p262 = scmp.ne.s32.totalorder %s251, %s252
      %p263 = scmp.eq.s32.totalorder %s27, 0
      %p264 = por %p262, %p263
      %p265 = scmp.ne.s32.totalorder %s251, %s252
      %p266 = scmp.eq.s32.totalorder %s28, 11
      %p267 = por %p265, %p266
      %p269 = scmp.ne.s32.totalorder %s252, %s268
      %p270 = scmp.eq.s32.totalorder %s28, 0
      %p271 = por %p269, %p270
      %s272 = ssub.s32 %s30, %s37
      %p273 = scmp.eq.s32.totalorder %s272, 0
      %s275 = sadd.s32 %s274, 1
      %s276 = scalar_select %p273, %s274, %s275
      %p279 = pneg %p273
      %p280 = scmp.eq.s32.totalorder %s22, 11
      %p281 = por %p279, %p280
      %p282 = scmp.ne.s32.totalorder %s274, %s277
      %p283 = scmp.eq.s32.totalorder %s22, 0
      %p284 = por %p282, %p283
      %p285 = scmp.ne.s32.totalorder %s274, %s277
      %p286 = scmp.eq.s32.totalorder %s27, 11
      %p287 = por %p285, %p286
      %p288 = scmp.ne.s32.totalorder %s277, %s278
      %p289 = scmp.eq.s32.totalorder %s27, 0
      %p290 = por %p288, %p289
      %p291 = scmp.ne.s32.totalorder %s277, %s278
      %p292 = scmp.eq.s32.totalorder %s28, 11
      %p293 = por %p291, %p292
      %p295 = scmp.ne.s32.totalorder %s278, %s294
      %p296 = scmp.eq.s32.totalorder %s28, 0
      %p297 = por %p295, %p296
      %s298 = ssub.s32 %s30, %s37
      %p299 = scmp.eq.s32.totalorder %s298, 0
      %s301 = sadd.s32 %s300, 1
      %s302 = scalar_select %p299, %s300, %s301
      %p305 = pneg %p299
      %p306 = scmp.eq.s32.totalorder %s22, 11
      %p307 = por %p305, %p306
      %p308 = scmp.ne.s32.totalorder %s300, %s303
      %p309 = scmp.eq.s32.totalorder %s22, 0
      %p310 = por %p308, %p309
      %p311 = scmp.ne.s32.totalorder %s300, %s303
      %p312 = scmp.eq.s32.totalorder %s27, 11
      %p313 = por %p311, %p312
      %p314 = scmp.ne.s32.totalorder %s303, %s304
      %p315 = scmp.eq.s32.totalorder %s27, 0
      %p316 = por %p314, %p315
      %p317 = scmp.ne.s32.totalorder %s303, %s304
      %p318 = scmp.eq.s32.totalorder %s28, 11
      %p319 = por %p317, %p318
      %p321 = scmp.ne.s32.totalorder %s304, %s320
      %p322 = scmp.eq.s32.totalorder %s28, 0
      %p323 = por %p321, %p322
      %s324 = ssub.s32 %s30, %s37
      %p325 = scmp.eq.s32.totalorder %s324, 0
      %s327 = sadd.s32 %s326, 1
      %s328 = scalar_select %p325, %s326, %s327
      %p331 = pneg %p325
      %p332 = scmp.eq.s32.totalorder %s22, 11
      %p333 = por %p331, %p332
      %p334 = scmp.ne.s32.totalorder %s326, %s329
      %p335 = scmp.eq.s32.totalorder %s22, 0
      %p336 = por %p334, %p335
      %p337 = scmp.ne.s32.totalorder %s326, %s329
      %p338 = scmp.eq.s32.totalorder %s27, 11
      %p339 = por %p337, %p338
      %p340 = scmp.ne.s32.totalorder %s329, %s330
      %p341 = scmp.eq.s32.totalorder %s27, 0
      %p342 = por %p340, %p341
      %p343 = scmp.ne.s32.totalorder %s329, %s330
      %p344 = scmp.eq.s32.totalorder %s28, 11
      %p345 = por %p343, %p344
      %p347 = scmp.ne.s32.totalorder %s330, %s346
      %p348 = scmp.eq.s32.totalorder %s28, 0
      %p349 = por %p347, %p348
      %s350 = ssub.s32 %s29, %s41
      %p351 = scmp.eq.s32.totalorder %s350, 0
      %s353 = sadd.s32 %s352, 1
      %s354 = scalar_select %p351, %s352, %s353
      %p357 = pneg %p351
      %p358 = scmp.eq.s32.totalorder %s22, 11
      %p359 = por %p357, %p358
      %p360 = scmp.ne.s32.totalorder %s352, %s355
      %p361 = scmp.eq.s32.totalorder %s22, 0
      %p362 = por %p360, %p361
      %p363 = scmp.ne.s32.totalorder %s352, %s355
      %p364 = scmp.eq.s32.totalorder %s27, 11
      %p365 = por %p363, %p364
      %p366 = scmp.ne.s32.totalorder %s355, %s356
      %p367 = scmp.eq.s32.totalorder %s27, 0
      %p368 = por %p366, %p367
      %p369 = scmp.ne.s32.totalorder %s355, %s356
      %p370 = scmp.eq.s32.totalorder %s28, 11
      %p371 = por %p369, %p370
      %p373 = scmp.ne.s32.totalorder %s356, %s372
      %p374 = scmp.eq.s32.totalorder %s28, 0
      %p375 = por %p373, %p374
      %p376 = scmp.le.s32.totalorder 1, %s22
      %p377 = scmp.lt.s32.totalorder %s22, 13
      %p378 = pnand %p376, %p377
      %p379 = pneg %p378
      // Predicated region
      $region9: #{conditioning_encoder.1} parent=5 // pred_check
        _
      $region10: #{conditioning_encoder.1} parent=5 // pred_check_branch
        %381 = sbr.rel (%p378) target = $region12
      $region11: #{conditioning_encoder.1} parent=5 // pred_region
        %s382 = ssub.s32 %s22, 1
        // Predicated region
        $region13: #{conditioning_encoder.1} parent=11 // pred_check
          %p383 = pneg %p81
        $region14: #{conditioning_encoder.1} parent=11 // pred_check_branch
          %385 = sbr.rel (%p383) target = $region16
        $region15: #{conditioning_encoder.1} parent=11 // pred_region
          _
        $region16: #{conditioning_encoder.1} parent=11 // pred_fallthru
          _
        // Predicated region
        $region17: #{conditioning_encoder.1} parent=11 // pred_check
          %p386 = pneg %p102
        $region18: #{conditioning_encoder.1} parent=11 // pred_check_branch
          %388 = sbr.rel (%p386) target = $region20
        $region19: #{conditioning_encoder.1} parent=11 // pred_region
          _
        $region20: #{conditioning_encoder.1} parent=11 // pred_fallthru
          _
        // Predicated region
        $region21: #{conditioning_encoder.1} parent=11 // pred_check
          %p389 = pneg %p123
        $region22: #{conditioning_encoder.1} parent=11 // pred_check_branch
          %391 = sbr.rel (%p389) target = $region24
        $region23: #{conditioning_encoder.1} parent=11 // pred_region
          _
        $region24: #{conditioning_encoder.1} parent=11 // pred_fallthru
          _
        // Predicated region
        $region25: #{conditioning_encoder.1} parent=11 // pred_check
          %p392 = pneg %p144
        $region26: #{conditioning_encoder.1} parent=11 // pred_check_branch
          %394 = sbr.rel (%p392) target = $region28
        $region27: #{conditioning_encoder.1} parent=11 // pred_region
          _
        $region28: #{conditioning_encoder.1} parent=11 // pred_fallthru
          _
        // Predicated region
        $region29: #{conditioning_encoder.1} parent=11 // pred_check
          %p395 = pneg %p165
        $region30: #{conditioning_encoder.1} parent=11 // pred_check_branch
          %397 = sbr.rel (%p395) target = $region32
        $region31: #{conditioning_encoder.1} parent=11 // pred_region
          _
        $region32: #{conditioning_encoder.1} parent=11 // pred_fallthru
          _
        // Predicated region
        $region33: #{conditioning_encoder.1} parent=11 // pred_check
          %p398 = pneg %p186
        $region34: #{conditioning_encoder.1} parent=11 // pred_check_branch
          %400 = sbr.rel (%p398) target = $region36
        $region35: #{conditioning_encoder.1} parent=11 // pred_region
          _
        $region36: #{conditioning_encoder.1} parent=11 // pred_fallthru
          _
      $region12: #{conditioning_encoder.1} parent=5 // pred_fallthru
        _
      %p401 = scmp.lt.s32.totalorder %s22, 12
      // Predicated region
      $region37: #{conditioning_encoder.1} parent=5 // pred_check
        %p402 = pneg %p401
      $region38: #{conditioning_encoder.1} parent=5 // pred_check_branch
        %404 = sbr.rel (%p402) target = $region40
      $region39: #{conditioning_encoder.1} parent=5 // pred_region
        // Predicated region
        $region41: #{conditioning_encoder.1} parent=39 // pred_check
          %p405 = pneg %p54
        $region42: #{conditioning_encoder.1} parent=39 // pred_check_branch
          %407 = sbr.rel (%p405) target = $region44
        $region43: #{conditioning_encoder.1} parent=39 // pred_region
          %p408 = scmp.lt.s32.totalorder %s29, 1
          %s409 = scalar_select %p408, %s29, 1
          %s410 = smul.addr %s409, 16
          %s411 = smul.addr %s410, 4
          %s412 = scalar_lea.vmem %s0, %s411
        $region44: #{conditioning_encoder.1} parent=39 // pred_fallthru
          _
        // Predicated region
        $region45: #{conditioning_encoder.1} parent=39 // pred_check
          %p413 = pneg %p206
        $region46: #{conditioning_encoder.1} parent=39 // pred_check_branch
          %415 = sbr.rel (%p413) target = $region48
        $region47: #{conditioning_encoder.1} parent=39 // pred_region
          %p416 = scmp.lt.s32.totalorder %s30, 5
          %s417 = scalar_select %p416, %s30, 5
          %s418 = scalar_lea.vmem %s7, %s417
        $region48: #{conditioning_encoder.1} parent=39 // pred_fallthru
          _
        // Predicated region
        $region49: #{conditioning_encoder.1} parent=39 // pred_check
          %p419 = pneg %p232
        $region50: #{conditioning_encoder.1} parent=39 // pred_check_branch
          %421 = sbr.rel (%p419) target = $region52
        $region51: #{conditioning_encoder.1} parent=39 // pred_region
          %p422 = scmp.lt.s32.totalorder %s30, 5
          %s423 = scalar_select %p422, %s30, 5
          %s424 = scalar_lea.vmem %s8, %s423
        $region52: #{conditioning_encoder.1} parent=39 // pred_fallthru
          _
        // Predicated region
        $region53: #{conditioning_encoder.1} parent=39 // pred_check
          %p425 = pneg %p258
        $region54: #{conditioning_encoder.1} parent=39 // pred_check_branch
          %427 = sbr.rel (%p425) target = $region56
        $region55: #{conditioning_encoder.1} parent=39 // pred_region
          %s428 = sand.u32 %s248, 1
          %s429 = scalar_lea.sflag [#allocation3], %s428
          %s430 = sand.u32 %s248, 1
          %s431 = smul.addr %s430, 192
          %s432 = scalar_lea.vmem [#allocation2], %s431
          %s434 = ssub.s32 3072, 3072
          %435 = vsyncadd %s429, %s434
          %s436 = smul.addr %s30, 48
          %s437 = smul.addr %s436, 64
          %s438 = scalar_lea.hbm %s9, %s437
          %s439 = sshll.u32 %s432, 4
          %s440 = int_to_ptr.vmem [resolvable:$true] %s439
          %445 = dma.hbm_to_vmem [thread:$0]  %s438, 3072, %s440, %s429, 192, 192, 12
        $region56: #{conditioning_encoder.1} parent=39 // pred_fallthru
          _
        // Predicated region
        $region57: #{conditioning_encoder.1} parent=39 // pred_check
          %p446 = pneg %p284
        $region58: #{conditioning_encoder.1} parent=39 // pred_check_branch
          %448 = sbr.rel (%p446) target = $region60
        $region59: #{conditioning_encoder.1} parent=39 // pred_region
          %p449 = scmp.lt.s32.totalorder %s30, 5
          %s450 = scalar_select %p449, %s30, 5
          %s451 = smul.addr %s450, 3
          %s452 = scalar_lea.vmem %s10, %s451
        $region60: #{conditioning_encoder.1} parent=39 // pred_fallthru
          _
        // Predicated region
        $region61: #{conditioning_encoder.1} parent=39 // pred_check
          %p453 = pneg %p310
        $region62: #{conditioning_encoder.1} parent=39 // pred_check_branch
          %455 = sbr.rel (%p453) target = $region64
        $region63: #{conditioning_encoder.1} parent=39 // pred_region
          %p456 = scmp.lt.s32.totalorder %s30, 5
          %s457 = scalar_select %p456, %s30, 5
          %s458 = smul.addr %s457, 16
          %s459 = smul.addr %s458, 4
          %s460 = scalar_lea.vmem %s11, %s459
        $region64: #{conditioning_encoder.1} parent=39 // pred_fallthru
          _
        // Predicated region
        $region65: #{conditioning_encoder.1} parent=39 // pred_check
          %p461 = pneg %p336
        $region66: #{conditioning_encoder.1} parent=39 // pred_check_branch
          %463 = sbr.rel (%p461) target = $region68
        $region67: #{conditioning_encoder.1} parent=39 // pred_region
          %p464 = scmp.lt.s32.totalorder %s30, 5
          %s465 = scalar_select %p464, %s30, 5
          %s466 = scalar_lea.vmem %s12, %s465
        $region68: #{conditioning_encoder.1} parent=39 // pred_fallthru
          _
      $region40: #{conditioning_encoder.1} parent=5 // pred_fallthru
        _
      %p467 = scmp.le.s32.totalorder 1, %s22
      %p468 = scmp.lt.s32.totalorder %s22, 13
      %p469 = pnand %p467, %p468
      %p470 = pneg %p469
      // Predicated region
      $region69: #{conditioning_encoder.1} parent=5 // pred_check
        _
      $region70: #{conditioning_encoder.1} parent=5 // pred_check_branch
        %472 = sbr.rel (%p469) target = $region72
      $region71: #{conditioning_encoder.1} parent=5 // pred_region
        %s473 = ssub.s32 %s22, 1
        %s474 = sand.u32 %s251, 1
        %s475 = scalar_lea.sflag [#allocation3], %s474
        %s476 = sand.u32 %s251, 1
        %s477 = smul.addr %s476, 192
        %s478 = scalar_lea.vmem [#allocation2], %s477
        // Predicated region
        $region73: #{conditioning_encoder.1} parent=71 // pred_check
          %p479 = pneg %p264
        $region74: #{conditioning_encoder.1} parent=71 // pred_check_branch
          %481 = sbr.rel (%p479) target = $region76
        $region75: #{conditioning_encoder.1} parent=71 // pred_region
          %482 = dma.done %s475, 3072
        $region76: #{conditioning_encoder.1} parent=71 // pred_fallthru
          _
        %p483 = scmp.lt.s32.totalorder %s31, 1
        %s484 = scalar_select %p483, %s31, 1
        %s485 = smul.addr %s484, 16
        %s486 = smul.addr %s485, 4
        %s487 = scalar_lea.vmem %s0, %s486
        %p488 = pneg %p60
        %p489 = pneg %p57
        %p490 = pneg %p81
        %p491 = pneg %p78
        %p492 = pneg %p102
        %p493 = pneg %p99
        %p494 = pneg %p123
        %p495 = pneg %p120
        %p496 = pneg %p144
        %p497 = pneg %p141
        %p498 = pneg %p165
        %p499 = pneg %p162
        %p500 = pneg %p186
        %p501 = pneg %p183
        %p502 = scmp.lt.s32.totalorder %s32, 5
        %s503 = scalar_select %p502, %s32, 5
        %s504 = scalar_lea.vmem %s7, %s503
        %p505 = pneg %p212
        %p506 = pneg %p209
        %p507 = scmp.lt.s32.totalorder %s32, 5
        %s508 = scalar_select %p507, %s32, 5
        %s509 = scalar_lea.vmem %s8, %s508
        %p510 = pneg %p238
        %p511 = pneg %p235
        %s512 = sand.u32 %s251, 1
        %s513 = scalar_lea.sflag [#allocation3], %s512
        %s514 = sand.u32 %s251, 1
        %s515 = smul.addr %s514, 192
        %s516 = scalar_lea.vmem [#allocation2], %s515
        %p517 = pneg %p264
        %p518 = pneg %p261
        %p519 = scmp.lt.s32.totalorder %s32, 5
        %s520 = scalar_select %p519, %s32, 5
        %s521 = smul.addr %s520, 3
        %s522 = scalar_lea.vmem %s10, %s521
        %p523 = pneg %p290
        %p524 = pneg %p287
        %p525 = scmp.lt.s32.totalorder %s32, 5
        %s526 = scalar_select %p525, %s32, 5
        %s527 = smul.addr %s526, 16
        %s528 = smul.addr %s527, 4
        %s529 = scalar_lea.vmem %s11, %s528
        %p530 = pneg %p316
        %p531 = pneg %p313
        %p532 = scmp.lt.s32.totalorder %s32, 5
        %s533 = scalar_select %p532, %s32, 5
        %s534 = scalar_lea.vmem %s12, %s533
        %p535 = pneg %p342
        %p536 = pneg %p339
        %p537 = pneg %p368
        %p538 = pneg %p365
        %p539 = scmp.lt.s32.totalorder %s31, 1
        %s540 = scalar_select %p539, %s31, 1
        %s541 = smul.addr %s540, 16
        %s542 = smul.addr %s541, 8
        %s543 = scalar_lea.vmem %s13, %s542
        %p544 = scmp.lt.s32.totalorder %s31, 1
        %s545 = scalar_select %p544, %s31, 1
        %s546 = smul.addr %s545, 16
        %s547 = smul.addr %s546, 4
        %s548 = scalar_lea.vmem %s0, %s547
        %p549 = scmp.lt.s32.totalorder %s32, 5
        %s550 = scalar_select %p549, %s32, 5
        %s551 = scalar_lea.vmem %s7, %s550
        %p552 = scmp.lt.s32.totalorder %s32, 5
        %s553 = scalar_select %p552, %s32, 5
        %s554 = scalar_lea.vmem %s8, %s553
        %p555 = scmp.lt.s32.totalorder %s32, 5
        %s556 = scalar_select %p555, %s32, 5
        %s557 = smul.addr %s556, 3
        %s558 = scalar_lea.vmem %s10, %s557
        %p559 = scmp.lt.s32.totalorder %s32, 5
        %s560 = scalar_select %p559, %s32, 5
        %s561 = smul.addr %s560, 16
        %s562 = smul.addr %s561, 4
        %s563 = scalar_lea.vmem %s11, %s562
        %p564 = scmp.lt.s32.totalorder %s32, 5
        %s565 = scalar_select %p564, %s32, 5
        %s566 = scalar_lea.vmem %s12, %s565
        %p567 = scmp.lt.s32.totalorder %s31, 1
        %s568 = scalar_select %p567, %s31, 1
        %s569 = smul.addr %s568, 16
        %s570 = smul.addr %s569, 8
        %s571 = scalar_lea.vmem %s13, %s570
        %p573 = scmp.eq.s32.totalorder %s32, 0
        // Predicated region
        $region77: #{conditioning_encoder.1} parent=71 // pred_check
          %p574 = pneg %p573
        $region78: #{conditioning_encoder.1} parent=71 // pred_check_branch
          %576 = sbr.rel (%p574) target = $region80
        $region79: #{conditioning_encoder.1} parent=71 // pred_region
          %v577 = vld [vmem:[%s548] sm:$0xf]
          %v578 = vld [vmem:[%s548 + $0x4] sm:$0xf]
          %v579 = vld [vmem:[%s548 + $0x8] sm:$0xf]
          %v580 = vld [vmem:[%s548 + $0xc] sm:$0xf]
          %v581 = vld [vmem:[%s548 + $0x10] sm:$0xf]
          %v582 = vld [vmem:[%s548 + $0x14] sm:$0xf]
          %v583 = vld [vmem:[%s548 + $0x18] sm:$0xf]
          %v584 = vld [vmem:[%s548 + $0x1c] sm:$0xf]
          %v585 = vld [vmem:[%s548 + $0x20] sm:$0xf]
          %v586 = vld [vmem:[%s548 + $0x24] sm:$0xf]
          %v587 = vld [vmem:[%s548 + $0x28] sm:$0xf]
          %v588 = vld [vmem:[%s548 + $0x2c] sm:$0xf]
          %v589 = vld [vmem:[%s548 + $0x30] sm:$0xf]
          %v590 = vld [vmem:[%s548 + $0x34] sm:$0xf]
          %v591 = vld [vmem:[%s548 + $0x38] sm:$0xf]
          %v592 = vld [vmem:[%s548 + $0x3c] sm:$0xf]
          %v593 = vld [vmem:[%s1] sm:$0xf]
          %v594 = vld [vmem:[%s1 + $0x4] sm:$0xf]
          %v595 = vld [vmem:[%s2] sm:$0x1]
          %v597 = vlaneseq
          %v598 = vshrl.u32 %v597, 7
          %v599 = vsub.s32 0, %v598
          %v600 = vrot.slane %v595, %v599
          %v618 = vunpack.c.l.b16 %v577
          %v619 = vunpack.c.l.b16 %v578
          %v620 = vunpack.c.l.b16 %v579
          %v621 = vunpack.c.l.b16 %v580
          %v622 = vunpack.c.l.b16 %v581
          %v623 = vunpack.c.l.b16 %v582
          %v624 = vunpack.c.l.b16 %v583
          %v625 = vunpack.c.l.b16 %v584
          %v626 = vunpack.c.l.b16 %v585
          %v627 = vunpack.c.l.b16 %v586
          %v628 = vunpack.c.l.b16 %v587
          %v629 = vunpack.c.l.b16 %v588
          %v630 = vunpack.c.l.b16 %v589
          %v631 = vunpack.c.l.b16 %v590
          %v632 = vunpack.c.l.b16 %v591
          %v633 = vunpack.c.l.b16 %v592
          %v634 = vpack.c.b16 %v619, %v618
          %v635 = vpack.c.b16 %v621, %v620
          %v636 = vpack.c.b16 %v623, %v622
          %v637 = vpack.c.b16 %v625, %v624
          %v638 = vpack.c.b16 %v627, %v626
          %v639 = vpack.c.b16 %v629, %v628
          %v640 = vpack.c.b16 %v631, %v630
          %v641 = vpack.c.b16 %v633, %v632
          %v644 = vunpack.c.l.b16 %v593
          %v645 = vunpack.c.l.b16 %v594
          %v646 = vpack.c.b16 %v645, %v644
          %vm648 = vcmask 130048
          %v650 = vsel %vm648, %v634, 0
          %v653 = vsel %vm648, %v635, 0
          %v656 = vsel %vm648, %v636, 0
          %v659 = vsel %vm648, %v637, 0
          %v662 = vsel %vm648, %v638, 0
          %v665 = vsel %vm648, %v639, 0
          %v668 = vsel %vm648, %v640, 0
          %v671 = vsel %vm648, %v641, 0
          %673 = vmatprep.subr.bf16.mxu0 0
          %674 = vmatpush1.bf16.msra.mxu0 %v646
          %675 = vmatprep.subr.bf16.mxu0 0
          %676 = vmatpush1.bf16.msra.mxu0 0
          %677 = vmatprep.subr.bf16.mxu0 0
          %678 = vmatpush1.bf16.msra.mxu0 0
          %679 = vmatprep.subr.bf16.mxu0 0
          %680 = vmatpush1.bf16.msra.mxu0 0
          %681 = vmatprep.subr.bf16.mxu0 0
          %682 = vmatpush1.bf16.msra.mxu0 0
          %683 = vmatprep.subr.bf16.mxu0 0
          %684 = vmatpush1.bf16.msra.mxu0 0
          %685 = vmatprep.subr.bf16.mxu0 0
          %686 = vmatpush1.bf16.msra.mxu0 0
          %687 = vmatprep.subr.bf16.mxu0 0
          %688 = vmatpush1.bf16.msra.mxu0 0
          %689 = vmatprep.subr.bf16.mxu0 0
          %690 = vmatpush1.bf16.msra.mxu0 0
          %691 = vmatprep.subr.bf16.mxu0 0
          %692 = vmatpush1.bf16.msra.mxu0 0
          %693 = vmatprep.subr.bf16.mxu0 0
          %694 = vmatpush1.bf16.msra.mxu0 0
          %695 = vmatprep.subr.bf16.mxu0 0
          %696 = vmatpush1.bf16.msra.mxu0 0
          %697 = vmatprep.subr.bf16.mxu0 0
          %698 = vmatpush1.bf16.msra.mxu0 0
          %699 = vmatprep.subr.bf16.mxu0 0
          %700 = vmatpush1.bf16.msra.mxu0 0
          %701 = vmatprep.subr.bf16.mxu0 0
          %702 = vmatpush1.bf16.msra.mxu0 0
          %703 = vmatprep.subr.bf16.mxu0 0
          %704 = vmatpush1.bf16.msra.mxu0 0
          %705 = vmatprep.mubr.bf16.mxu0 0
          %706 = vmatmul.mubr.bf16.gmra.mrb[0].mxu0 %v650
          %v707 = vpop.f32.mrb[0].mxu0
          %v708 = vadd.f32 %v600, %v707
          %v709 = vpop.f32.mrb[0].mxu0
          %v710 = vpop.f32.mrb[0].mxu0
          %v711 = vadd.f32 %v600, %v710
          %v712 = vpop.f32.mrb[0].mxu0
          %713 = vmatprep.mubr.bf16.mxu0 0
          %714 = vmatmul.mubr.bf16.gmra.mrb[0].mxu0 %v653
          %v715 = vpop.f32.mrb[0].mxu0
          %v716 = vadd.f32 %v600, %v715
          %v717 = vpop.f32.mrb[0].mxu0
          %v718 = vpop.f32.mrb[0].mxu0
          %v719 = vadd.f32 %v600, %v718
          %v720 = vpop.f32.mrb[0].mxu0
          %721 = vmatprep.mubr.bf16.mxu0 0
          %722 = vmatmul.mubr.bf16.gmra.mrb[0].mxu0 %v656
          %v723 = vpop.f32.mrb[0].mxu0
          %v724 = vadd.f32 %v600, %v723
          %v725 = vpop.f32.mrb[0].mxu0
          %v726 = vpop.f32.mrb[0].mxu0
          %v727 = vadd.f32 %v600, %v726
          %v728 = vpop.f32.mrb[0].mxu0
          %729 = vmatprep.mubr.bf16.mxu0 0
          %730 = vmatmul.mubr.bf16.gmra.mrb[0].mxu0 %v659
          %v731 = vpop.f32.mrb[0].mxu0
          %v732 = vadd.f32 %v600, %v731
          %v733 = vpop.f32.mrb[0].mxu0
          %v734 = vpop.f32.mrb[0].mxu0
          %v735 = vadd.f32 %v600, %v734
          %v736 = vpop.f32.mrb[0].mxu0
          %737 = vmatprep.mubr.bf16.mxu0 0
          %738 = vmatmul.mubr.bf16.gmra.mrb[0].mxu0 %v662
          %v739 = vpop.f32.mrb[0].mxu0
          %v740 = vadd.f32 %v600, %v739
          %v741 = vpop.f32.mrb[0].mxu0
          %v742 = vpop.f32.mrb[0].mxu0
          %v743 = vadd.f32 %v600, %v742
          %v744 = vpop.f32.mrb[0].mxu0
          %745 = vmatprep.mubr.bf16.mxu0 0
          %746 = vmatmul.mubr.bf16.gmra.mrb[0].mxu0 %v665
          %v747 = vpop.f32.mrb[0].mxu0
          %v748 = vadd.f32 %v600, %v747
          %v749 = vpop.f32.mrb[0].mxu0
          %v750 = vpop.f32.mrb[0].mxu0
          %v751 = vadd.f32 %v600, %v750
          %v752 = vpop.f32.mrb[0].mxu0
          %753 = vmatprep.mubr.bf16.mxu0 0
          %754 = vmatmul.mubr.bf16.gmra.mrb[0].mxu0 %v668
          %v755 = vpop.f32.mrb[0].mxu0
          %v756 = vadd.f32 %v600, %v755
          %v757 = vpop.f32.mrb[0].mxu0
          %v758 = vpop.f32.mrb[0].mxu0
          %v759 = vadd.f32 %v600, %v758
          %v760 = vpop.f32.mrb[0].mxu0
          %761 = vmatprep.mubr.bf16.mxu0 0
          %762 = vmatmul.mubr.bf16.gmra.mrb[0].mxu0 %v671
          %v763 = vpop.f32.mrb[0].mxu0
          %v764 = vadd.f32 %v600, %v763
          %v765 = vpop.f32.mrb[0].mxu0
          %v766 = vpop.f32.mrb[0].mxu0
          %v767 = vadd.f32 %v600, %v766
          %v768 = vpop.f32.mrb[0].mxu0
          %769 = vdwg.mxu0
          %v770 = vld [vmem:[%s5] sm:$0xff]
          %v771 = vld [vmem:[%s5 + $0x8] sm:$0xff]
          %v772 = vld [vmem:[%s5 + $0x10] sm:$0xff]
          %v773 = vld [vmem:[%s5 + $0x18] sm:$0xff]
          %v774 = vld [vmem:[%s5 + $0x20] sm:$0xff]
          %v775 = vld [vmem:[%s5 + $0x28] sm:$0xff]
          %v776 = vld [vmem:[%s5 + $0x30] sm:$0xff]
          %v777 = vld [vmem:[%s5 + $0x38] sm:$0xff]
          %v778 = vld [vmem:[%s5 + $0x40] sm:$0xff]
          %v779 = vld [vmem:[%s5 + $0x48] sm:$0xff]
          %v780 = vld [vmem:[%s5 + $0x50] sm:$0xff]
          %v781 = vld [vmem:[%s5 + $0x58] sm:$0xff]
          %v782 = vld [vmem:[%s5 + $0x60] sm:$0xff]
          %v783 = vld [vmem:[%s5 + $0x68] sm:$0xff]
          %v784 = vld [vmem:[%s5 + $0x70] sm:$0xff]
          %v785 = vld [vmem:[%s5 + $0x78] sm:$0xff]
          %787 = vset.pattern.permute.xlu0 0
          %788 = vperm.xlu0 %787, %v770
          %v789 = vpop.permute.xlu0 %788
          %792 = vset.pattern.permute.xlu0 0
          %793 = vperm.xlu0 %792, %v771
          %v794 = vpop.permute.xlu0 %793
          %797 = vset.pattern.permute.xlu0 0
          %798 = vperm.xlu0 %797, %v772
          %v799 = vpop.permute.xlu0 %798
          %802 = vset.pattern.permute.xlu0 0
          %803 = vperm.xlu0 %802, %v773
          %v804 = vpop.permute.xlu0 %803
          %807 = vset.pattern.permute.xlu0 0
          %808 = vperm.xlu0 %807, %v774
          %v809 = vpop.permute.xlu0 %808
          %812 = vset.pattern.permute.xlu0 0
          %813 = vperm.xlu0 %812, %v775
          %v814 = vpop.permute.xlu0 %813
          %817 = vset.pattern.permute.xlu0 0
          %818 = vperm.xlu0 %817, %v776
          %v819 = vpop.permute.xlu0 %818
          %822 = vset.pattern.permute.xlu0 0
          %823 = vperm.xlu0 %822, %v777
          %v824 = vpop.permute.xlu0 %823
          %827 = vset.pattern.permute.xlu0 0
          %828 = vperm.xlu0 %827, %v778
          %v829 = vpop.permute.xlu0 %828
          %832 = vset.pattern.permute.xlu0 0
          %833 = vperm.xlu0 %832, %v779
          %v834 = vpop.permute.xlu0 %833
          %837 = vset.pattern.permute.xlu0 0
          %838 = vperm.xlu0 %837, %v780
          %v839 = vpop.permute.xlu0 %838
          %842 = vset.pattern.permute.xlu0 0
          %843 = vperm.xlu0 %842, %v781
          %v844 = vpop.permute.xlu0 %843
          %847 = vset.pattern.permute.xlu0 0
          %848 = vperm.xlu0 %847, %v782
          %v849 = vpop.permute.xlu0 %848
          %852 = vset.pattern.permute.xlu0 0
          %853 = vperm.xlu0 %852, %v783
          %v854 = vpop.permute.xlu0 %853
          %857 = vset.pattern.permute.xlu0 0
          %858 = vperm.xlu0 %857, %v784
          %v859 = vpop.permute.xlu0 %858
          %862 = vset.pattern.permute.xlu0 0
          %863 = vperm.xlu0 %862, %v785
          %v864 = vpop.permute.xlu0 %863
          %v866 = vmul.f32 %v708, %v789
          %v867 = vmul.f32 %v711, %v794
          %v868 = vmul.f32 %v716, %v799
          %v869 = vmul.f32 %v719, %v804
          %v870 = vmul.f32 %v724, %v809
          %v871 = vmul.f32 %v727, %v814
          %v872 = vmul.f32 %v732, %v819
          %v873 = vmul.f32 %v735, %v824
          %v874 = vmul.f32 %v740, %v829
          %v875 = vmul.f32 %v743, %v834
          %v876 = vmul.f32 %v748, %v839
          %v877 = vmul.f32 %v751, %v844
          %v878 = vmul.f32 %v756, %v849
          %v879 = vmul.f32 %v759, %v854
          %v880 = vmul.f32 %v764, %v859
          %v881 = vmul.f32 %v767, %v864
          %882 = vst [vmem:[%s571] sm:$0xff] %v866
          %883 = vst [vmem:[%s571 + $0x8] sm:$0xff] %v867
          %884 = vst [vmem:[%s571 + $0x10] sm:$0xff] %v868
          %885 = vst [vmem:[%s571 + $0x18] sm:$0xff] %v869
          %886 = vst [vmem:[%s571 + $0x20] sm:$0xff] %v870
          %887 = vst [vmem:[%s571 + $0x28] sm:$0xff] %v871
          %888 = vst [vmem:[%s571 + $0x30] sm:$0xff] %v872
          %889 = vst [vmem:[%s571 + $0x38] sm:$0xff] %v873
          %890 = vst [vmem:[%s571 + $0x40] sm:$0xff] %v874
          %891 = vst [vmem:[%s571 + $0x48] sm:$0xff] %v875
          %892 = vst [vmem:[%s571 + $0x50] sm:$0xff] %v876
          %893 = vst [vmem:[%s571 + $0x58] sm:$0xff] %v877
          %894 = vst [vmem:[%s571 + $0x60] sm:$0xff] %v878
          %895 = vst [vmem:[%s571 + $0x68] sm:$0xff] %v879
          %896 = vst [vmem:[%s571 + $0x70] sm:$0xff] %v880
          %897 = vst [vmem:[%s571 + $0x78] sm:$0xff] %v881
        $region80: #{conditioning_encoder.1} parent=71 // pred_fallthru
          _
        %v898 = vld [vmem:[%s571] sm:$0xff]
        %v899 = vld [vmem:[%s571 + $0x8] sm:$0xff]
        %v900 = vld [vmem:[%s571 + $0x10] sm:$0xff]
        %v901 = vld [vmem:[%s571 + $0x18] sm:$0xff]
        %v902 = vld [vmem:[%s571 + $0x20] sm:$0xff]
        %v903 = vld [vmem:[%s571 + $0x28] sm:$0xff]
        %v904 = vld [vmem:[%s571 + $0x30] sm:$0xff]
        %v905 = vld [vmem:[%s571 + $0x38] sm:$0xff]
        %v906 = vld [vmem:[%s571 + $0x40] sm:$0xff]
        %v907 = vld [vmem:[%s571 + $0x48] sm:$0xff]
        %v908 = vld [vmem:[%s571 + $0x50] sm:$0xff]
        %v909 = vld [vmem:[%s571 + $0x58] sm:$0xff]
        %v910 = vld [vmem:[%s571 + $0x60] sm:$0xff]
        %v911 = vld [vmem:[%s571 + $0x68] sm:$0xff]
        %v912 = vld [vmem:[%s571 + $0x70] sm:$0xff]
        %v913 = vld [vmem:[%s571 + $0x78] sm:$0xff]
        %v914 = vadd.f32 %v898, %v899
        %v915 = vadd.f32 %v914, %v900
        %v916 = vadd.f32 %v915, %v901
        %v917 = vadd.f32 %v916, %v902
        %v918 = vadd.f32 %v917, %v903
        %v919 = vadd.f32 %v918, %v904
        %v920 = vadd.f32 %v919, %v905
        %v921 = vadd.f32 %v920, %v906
        %v922 = vadd.f32 %v921, %v907
        %v923 = vadd.f32 %v922, %v908
        %v924 = vadd.f32 %v923, %v909
        %v925 = vadd.f32 %v924, %v910
        %v926 = vadd.f32 %v925, %v911
        %v927 = vadd.f32 %v926, %v912
        %v928 = vadd.f32 %v927, %v913
        %v929 = vrot.slane %v928, 4
        %v930 = vadd.f32 %v928, %v929
        %v931 = vrot.slane %v930, 2
        %v932 = vadd.f32 %v930, %v931
        %v933 = vrot.slane %v932, 1
        %v934 = vadd.f32 %v932, %v933
        %v935 = vld [vmem:[%s3] sm:$0xff]
        %v936 = vld [vmem:[%s3 + $0x8] sm:$0xff]
        %v937 = vld [vmem:[%s3 + $0x10] sm:$0xff]
        %v938 = vld [vmem:[%s3 + $0x18] sm:$0xff]
        %v939 = vld [vmem:[%s3 + $0x20] sm:$0xff]
        %v940 = vld [vmem:[%s3 + $0x28] sm:$0xff]
        %v941 = vld [vmem:[%s3 + $0x30] sm:$0xff]
        %v942 = vld [vmem:[%s3 + $0x38] sm:$0xff]
        %v943 = vld [vmem:[%s3 + $0x40] sm:$0xff]
        %v944 = vld [vmem:[%s3 + $0x48] sm:$0xff]
        %v945 = vld [vmem:[%s3 + $0x50] sm:$0xff]
        %v946 = vld [vmem:[%s3 + $0x58] sm:$0xff]
        %v947 = vld [vmem:[%s3 + $0x60] sm:$0xff]
        %v948 = vld [vmem:[%s3 + $0x68] sm:$0xff]
        %v949 = vld [vmem:[%s3 + $0x70] sm:$0xff]
        %v950 = vld [vmem:[%s3 + $0x78] sm:$0xff]
        %951 = vmatprep.subr.mxu0 0.0
        %952 = vmatpush1.msra.mxu0 %v935
        %953 = vmatprep.subr.mxu0 0.0
        %954 = vmatpush1.msra.mxu0 %v936
        %955 = vmatprep.subr.mxu0 0.0
        %956 = vmatpush1.msra.mxu0 %v937
        %957 = vmatprep.subr.mxu0 0.0
        %958 = vmatpush1.msra.mxu0 %v938
        %959 = vmatprep.subr.mxu0 0.0
        %960 = vmatpush1.msra.mxu0 %v939
        %961 = vmatprep.subr.mxu0 0.0
        %962 = vmatpush1.msra.mxu0 %v940
        %963 = vmatprep.subr.mxu0 0.0
        %964 = vmatpush1.msra.mxu0 %v941
        %965 = vmatprep.subr.mxu0 0.0
        %966 = vmatpush1.msra.mxu0 %v942
        %967 = vmatprep.subr.mxu0 0.0
        %968 = vmatpush1.msra.mxu0 %v943
        %969 = vmatprep.subr.mxu0 0.0
        %970 = vmatpush1.msra.mxu0 %v944
        %971 = vmatprep.subr.mxu0 0.0
        %972 = vmatpush1.msra.mxu0 %v945
        %973 = vmatprep.subr.mxu0 0.0
        %974 = vmatpush1.msra.mxu0 %v946
        %975 = vmatprep.subr.mxu0 0.0
        %976 = vmatpush1.msra.mxu0 %v947
        %977 = vmatprep.subr.mxu0 0.0
        %978 = vmatpush1.msra.mxu0 %v948
        %979 = vmatprep.subr.mxu0 0.0
        %980 = vmatpush1.msra.mxu0 %v949
        %981 = vmatprep.subr.mxu0 0.0
        %982 = vmatpush1.msra.mxu0 %v950
        %983 = vmatprep.subr.mxu0 0.0
        %984 = vmatpush1.msra.mxu0 0.0
        %985 = vmatprep.subr.mxu0 0.0
        %986 = vmatpush1.msra.mxu0 0.0
        %987 = vmatprep.subr.mxu0 0.0
        %988 = vmatpush1.msra.mxu0 0.0
        %989 = vmatprep.subr.mxu0 0.0
        %990 = vmatpush1.msra.mxu0 0.0
        %991 = vmatprep.subr.mxu0 0.0
        %992 = vmatpush1.msra.mxu0 0.0
        %993 = vmatprep.subr.mxu0 0.0
        %994 = vmatpush1.msra.mxu0 0.0
        %995 = vmatprep.subr.mxu0 0.0
        %996 = vmatpush1.msra.mxu0 0.0
        %997 = vmatprep.subr.mxu0 0.0
        %998 = vmatpush1.msra.mxu0 0.0
        %999 = vmatprep.subr.mxu0 0.0
        %1000 = vmatpush1.msra.mxu0 0.0
        %1001 = vmatprep.subr.mxu0 0.0
        %1002 = vmatpush1.msra.mxu0 0.0
        %1003 = vmatprep.subr.mxu0 0.0
        %1004 = vmatpush1.msra.mxu0 0.0
        %1005 = vmatprep.subr.mxu0 0.0
        %1006 = vmatpush1.msra.mxu0 0.0
        %1007 = vmatprep.subr.mxu0 0.0
        %1008 = vmatpush1.msra.mxu0 0.0
        %1009 = vmatprep.subr.mxu0 0.0
        %1010 = vmatpush1.msra.mxu0 0.0
        %1011 = vmatprep.subr.mxu0 0.0
        %1012 = vmatpush1.msra.mxu0 0.0
        %1013 = vmatprep.subr.mxu0 0.0
        %1014 = vmatpush1.msra.mxu0 0.0
        %1015 = vmatprep.mubr.f32.mxu0 0.0
        %1016 = vmatmul.mubr.f32.gmra.mrb[0].mxu0 %v934
        %v1017 = vpop.f32.mrb[0].mxu0
        %v1018 = vadd.f32 0.0, %v1017
        %v1019 = vpop.f32.mrb[0].mxu0
        %1020 = vdwg.mxu0
        %v1021 = vmul.f32 %v1018, 0.010416667
        %v1022 = vld [vmem:[%s4] sm:$0xff]
        %v1023 = vld [vmem:[%s4 + $0x8] sm:$0xff]
        %v1024 = vld [vmem:[%s4 + $0x10] sm:$0xff]
        %v1025 = vld [vmem:[%s4 + $0x18] sm:$0xff]
        %vm1026 = vcmask 261120
        %v1028 = vsel %vm1026, %v1021, 0
        %1030 = vmatprep.subr.mxu0 0.0
        %1031 = vmatpush1.msra.mxu0 %v1022
        %1032 = vmatprep.subr.mxu0 0.0
        %1033 = vmatpush1.msra.mxu0 %v1023
        %1034 = vmatprep.subr.mxu0 0.0
        %1035 = vmatpush1.msra.mxu0 %v1024
        %1036 = vmatprep.subr.mxu0 0.0
        %1037 = vmatpush1.msra.mxu0 %v1025
        %1038 = vmatprep.subr.mxu0 0.0
        %1039 = vmatpush1.msra.mxu0 0.0
        %1040 = vmatprep.subr.mxu0 0.0
        %1041 = vmatpush1.msra.mxu0 0.0
        %1042 = vmatprep.subr.mxu0 0.0
        %1043 = vmatpush1.msra.mxu0 0.0
        %1044 = vmatprep.subr.mxu0 0.0
        %1045 = vmatpush1.msra.mxu0 0.0
        %1046 = vmatprep.subr.mxu0 0.0
        %1047 = vmatpush1.msra.mxu0 0.0
        %1048 = vmatprep.subr.mxu0 0.0
        %1049 = vmatpush1.msra.mxu0 0.0
        %1050 = vmatprep.subr.mxu0 0.0
        %1051 = vmatpush1.msra.mxu0 0.0
        %1052 = vmatprep.subr.mxu0 0.0
        %1053 = vmatpush1.msra.mxu0 0.0
        %1054 = vmatprep.subr.mxu0 0.0
        %1055 = vmatpush1.msra.mxu0 0.0
        %1056 = vmatprep.subr.mxu0 0.0
        %1057 = vmatpush1.msra.mxu0 0.0
        %1058 = vmatprep.subr.mxu0 0.0
        %1059 = vmatpush1.msra.mxu0 0.0
        %1060 = vmatprep.subr.mxu0 0.0
        %1061 = vmatpush1.msra.mxu0 0.0
        %1062 = vmatprep.subr.mxu0 0.0
        %1063 = vmatpush1.msra.mxu0 0.0
        %1064 = vmatprep.subr.mxu0 0.0
        %1065 = vmatpush1.msra.mxu0 0.0
        %1066 = vmatprep.subr.mxu0 0.0
        %1067 = vmatpush1.msra.mxu0 0.0
        %1068 = vmatprep.subr.mxu0 0.0
        %1069 = vmatpush1.msra.mxu0 0.0
        %1070 = vmatprep.subr.mxu0 0.0
        %1071 = vmatpush1.msra.mxu0 0.0
        %1072 = vmatprep.subr.mxu0 0.0
        %1073 = vmatpush1.msra.mxu0 0.0
        %1074 = vmatprep.subr.mxu0 0.0
        %1075 = vmatpush1.msra.mxu0 0.0
        %1076 = vmatprep.subr.mxu0 0.0
        %1077 = vmatpush1.msra.mxu0 0.0
        %1078 = vmatprep.subr.mxu0 0.0
        %1079 = vmatpush1.msra.mxu0 0.0
        %1080 = vmatprep.subr.mxu0 0.0
        %1081 = vmatpush1.msra.mxu0 0.0
        %1082 = vmatprep.subr.mxu0 0.0
        %1083 = vmatpush1.msra.mxu0 0.0
        %1084 = vmatprep.subr.mxu0 0.0
        %1085 = vmatpush1.msra.mxu0 0.0
        %1086 = vmatprep.subr.mxu0 0.0
        %1087 = vmatpush1.msra.mxu0 0.0
        %1088 = vmatprep.subr.mxu0 0.0
        %1089 = vmatpush1.msra.mxu0 0.0
        %1090 = vmatprep.subr.mxu0 0.0
        %1091 = vmatpush1.msra.mxu0 0.0
        %1092 = vmatprep.subr.mxu0 0.0
        %1093 = vmatpush1.msra.mxu0 0.0
        %1094 = vmatprep.mubr.f32.mxu0 0.0
        %1095 = vmatmul.mubr.f32.gmra.mrb[0].mxu0 %v1028
        %v1096 = vpop.f32.mrb[0].mxu0
        %v1097 = vadd.f32 0.0, %v1096
        %v1098 = vpop.f32.mrb[0].mxu0
        %1099 = vdwg.mxu0
        %v1100 = vlaneseq
        %v1101 = vshrl.u32 %v1100, 7
        %v1102 = vsub.s32 0, %v1101
        %v1103 = vrot.slane %v1097, %v1102
        %v1104 = vsub.f32 %v898, %v1103
        %v1105 = vsub.f32 %v899, %v1103
        %v1106 = vsub.f32 %v900, %v1103
        %v1107 = vsub.f32 %v901, %v1103
        %v1108 = vsub.f32 %v902, %v1103
        %v1109 = vsub.f32 %v903, %v1103
        %v1110 = vsub.f32 %v904, %v1103
        %v1111 = vsub.f32 %v905, %v1103
        %v1112 = vsub.f32 %v906, %v1103
        %v1113 = vsub.f32 %v907, %v1103
        %v1114 = vsub.f32 %v908, %v1103
        %v1115 = vsub.f32 %v909, %v1103
        %v1116 = vsub.f32 %v910, %v1103
        %v1117 = vsub.f32 %v911, %v1103
        %v1118 = vsub.f32 %v912, %v1103
        %v1119 = vsub.f32 %v913, %v1103
        %v1120 = vld [vmem:[%s5] sm:$0xff]
        %v1121 = vld [vmem:[%s5 + $0x8] sm:$0xff]
        %v1122 = vld [vmem:[%s5 + $0x10] sm:$0xff]
        %v1123 = vld [vmem:[%s5 + $0x18] sm:$0xff]
        %v1124 = vld [vmem:[%s5 + $0x20] sm:$0xff]
        %v1125 = vld [vmem:[%s5 + $0x28] sm:$0xff]
        %v1126 = vld [vmem:[%s5 + $0x30] sm:$0xff]
        %v1127 = vld [vmem:[%s5 + $0x38] sm:$0xff]
        %v1128 = vld [vmem:[%s5 + $0x40] sm:$0xff]
        %v1129 = vld [vmem:[%s5 + $0x48] sm:$0xff]
        %v1130 = vld [vmem:[%s5 + $0x50] sm:$0xff]
        %v1131 = vld [vmem:[%s5 + $0x58] sm:$0xff]
        %v1132 = vld [vmem:[%s5 + $0x60] sm:$0xff]
        %v1133 = vld [vmem:[%s5 + $0x68] sm:$0xff]
        %v1134 = vld [vmem:[%s5 + $0x70] sm:$0xff]
        %v1135 = vld [vmem:[%s5 + $0x78] sm:$0xff]
        %1137 = vset.pattern.permute.xlu0 0
        %1138 = vperm.xlu0 %1137, %v1120
        %v1139 = vpop.permute.xlu0 %1138
        %1142 = vset.pattern.permute.xlu0 0
        %1143 = vperm.xlu0 %1142, %v1121
        %v1144 = vpop.permute.xlu0 %1143
        %1147 = vset.pattern.permute.xlu0 0
        %1148 = vperm.xlu0 %1147, %v1122
        %v1149 = vpop.permute.xlu0 %1148
        %1152 = vset.pattern.permute.xlu0 0
        %1153 = vperm.xlu0 %1152, %v1123
        %v1154 = vpop.permute.xlu0 %1153
        %1157 = vset.pattern.permute.xlu0 0
        %1158 = vperm.xlu0 %1157, %v1124
        %v1159 = vpop.permute.xlu0 %1158
        %1162 = vset.pattern.permute.xlu0 0
        %1163 = vperm.xlu0 %1162, %v1125
        %v1164 = vpop.permute.xlu0 %1163
        %1167 = vset.pattern.permute.xlu0 0
        %1168 = vperm.xlu0 %1167, %v1126
        %v1169 = vpop.permute.xlu0 %1168
        %1172 = vset.pattern.permute.xlu0 0
        %1173 = vperm.xlu0 %1172, %v1127
        %v1174 = vpop.permute.xlu0 %1173
        %1177 = vset.pattern.permute.xlu0 0
        %1178 = vperm.xlu0 %1177, %v1128
        %v1179 = vpop.permute.xlu0 %1178
        %1182 = vset.pattern.permute.xlu0 0
        %1183 = vperm.xlu0 %1182, %v1129
        %v1184 = vpop.permute.xlu0 %1183
        %1187 = vset.pattern.permute.xlu0 0
        %1188 = vperm.xlu0 %1187, %v1130
        %v1189 = vpop.permute.xlu0 %1188
        %1192 = vset.pattern.permute.xlu0 0
        %1193 = vperm.xlu0 %1192, %v1131
        %v1194 = vpop.permute.xlu0 %1193
        %1197 = vset.pattern.permute.xlu0 0
        %1198 = vperm.xlu0 %1197, %v1132
        %v1199 = vpop.permute.xlu0 %1198
        %1202 = vset.pattern.permute.xlu0 0
        %1203 = vperm.xlu0 %1202, %v1133
        %v1204 = vpop.permute.xlu0 %1203
        %1207 = vset.pattern.permute.xlu0 0
        %1208 = vperm.xlu0 %1207, %v1134
        %v1209 = vpop.permute.xlu0 %1208
        %1212 = vset.pattern.permute.xlu0 0
        %1213 = vperm.xlu0 %1212, %v1135
        %v1214 = vpop.permute.xlu0 %1213
        %v1216 = vmul.f32 %v1104, %v1139
        %v1217 = vmul.f32 %v1105, %v1144
        %v1218 = vmul.f32 %v1106, %v1149
        %v1219 = vmul.f32 %v1107, %v1154
        %v1220 = vmul.f32 %v1108, %v1159
        %v1221 = vmul.f32 %v1109, %v1164
        %v1222 = vmul.f32 %v1110, %v1169
        %v1223 = vmul.f32 %v1111, %v1174
        %v1224 = vmul.f32 %v1112, %v1179
        %v1225 = vmul.f32 %v1113, %v1184
        %v1226 = vmul.f32 %v1114, %v1189
        %v1227 = vmul.f32 %v1115, %v1194
        %v1228 = vmul.f32 %v1116, %v1199
        %v1229 = vmul.f32 %v1117, %v1204
        %v1230 = vmul.f32 %v1118, %v1209
        %v1231 = vmul.f32 %v1119, %v1214
        %v1232 = vmul.f32 %v1216, %v1216
        %v1233 = vmul.f32 %v1217, %v1217
        %v1234 = vmul.f32 %v1218, %v1218
        %v1235 = vmul.f32 %v1219, %v1219
        %v1236 = vmul.f32 %v1220, %v1220
        %v1237 = vmul.f32 %v1221, %v1221
        %v1238 = vmul.f32 %v1222, %v1222
        %v1239 = vmul.f32 %v1223, %v1223
        %v1240 = vmul.f32 %v1224, %v1224
        %v1241 = vmul.f32 %v1225, %v1225
        %v1242 = vmul.f32 %v1226, %v1226
        %v1243 = vmul.f32 %v1227, %v1227
        %v1244 = vmul.f32 %v1228, %v1228
        %v1245 = vmul.f32 %v1229, %v1229
        %v1246 = vmul.f32 %v1230, %v1230
        %v1247 = vmul.f32 %v1231, %v1231
        %v1248 = vadd.f32 %v1232, %v1233
        %v1249 = vadd.f32 %v1248, %v1234
        %v1250 = vadd.f32 %v1249, %v1235
        %v1251 = vadd.f32 %v1250, %v1236
        %v1252 = vadd.f32 %v1251, %v1237
        %v1253 = vadd.f32 %v1252, %v1238
        %v1254 = vadd.f32 %v1253, %v1239
        %v1255 = vadd.f32 %v1254, %v1240
        %v1256 = vadd.f32 %v1255, %v1241
        %v1257 = vadd.f32 %v1256, %v1242
        %v1258 = vadd.f32 %v1257, %v1243
        %v1259 = vadd.f32 %v1258, %v1244
        %v1260 = vadd.f32 %v1259, %v1245
        %v1261 = vadd.f32 %v1260, %v1246
        %v1262 = vadd.f32 %v1261, %v1247
        %v1263 = vrot.slane %v1262, 4
        %v1264 = vadd.f32 %v1262, %v1263
        %v1265 = vrot.slane %v1264, 2
        %v1266 = vadd.f32 %v1264, %v1265
        %v1267 = vrot.slane %v1266, 1
        %v1268 = vadd.f32 %v1266, %v1267
        %1269 = vmatprep.subr.mxu0 0.0
        %1270 = vmatpush1.msra.mxu0 %v935
        %1271 = vmatprep.subr.mxu0 0.0
        %1272 = vmatpush1.msra.mxu0 %v936
        %1273 = vmatprep.subr.mxu0 0.0
        %1274 = vmatpush1.msra.mxu0 %v937
        %1275 = vmatprep.subr.mxu0 0.0
        %1276 = vmatpush1.msra.mxu0 %v938
        %1277 = vmatprep.subr.mxu0 0.0
        %1278 = vmatpush1.msra.mxu0 %v939
        %1279 = vmatprep.subr.mxu0 0.0
        %1280 = vmatpush1.msra.mxu0 %v940
        %1281 = vmatprep.subr.mxu0 0.0
        %1282 = vmatpush1.msra.mxu0 %v941
        %1283 = vmatprep.subr.mxu0 0.0
        %1284 = vmatpush1.msra.mxu0 %v942
        %1285 = vmatprep.subr.mxu0 0.0
        %1286 = vmatpush1.msra.mxu0 %v943
        %1287 = vmatprep.subr.mxu0 0.0
        %1288 = vmatpush1.msra.mxu0 %v944
        %1289 = vmatprep.subr.mxu0 0.0
        %1290 = vmatpush1.msra.mxu0 %v945
        %1291 = vmatprep.subr.mxu0 0.0
        %1292 = vmatpush1.msra.mxu0 %v946
        %1293 = vmatprep.subr.mxu0 0.0
        %1294 = vmatpush1.msra.mxu0 %v947
        %1295 = vmatprep.subr.mxu0 0.0
        %1296 = vmatpush1.msra.mxu0 %v948
        %1297 = vmatprep.subr.mxu0 0.0
        %1298 = vmatpush1.msra.mxu0 %v949
        %1299 = vmatprep.subr.mxu0 0.0
        %1300 = vmatpush1.msra.mxu0 %v950
        %1301 = vmatprep.subr.mxu0 0.0
        %1302 = vmatpush1.msra.mxu0 0.0
        %1303 = vmatprep.subr.mxu0 0.0
        %1304 = vmatpush1.msra.mxu0 0.0
        %1305 = vmatprep.subr.mxu0 0.0
        %1306 = vmatpush1.msra.mxu0 0.0
        %1307 = vmatprep.subr.mxu0 0.0
        %1308 = vmatpush1.msra.mxu0 0.0
        %1309 = vmatprep.subr.mxu0 0.0
        %1310 = vmatpush1.msra.mxu0 0.0
        %1311 = vmatprep.subr.mxu0 0.0
        %1312 = vmatpush1.msra.mxu0 0.0
        %1313 = vmatprep.subr.mxu0 0.0
        %1314 = vmatpush1.msra.mxu0 0.0
        %1315 = vmatprep.subr.mxu0 0.0
        %1316 = vmatpush1.msra.mxu0 0.0
        %1317 = vmatprep.subr.mxu0 0.0
        %1318 = vmatpush1.msra.mxu0 0.0
        %1319 = vmatprep.subr.mxu0 0.0
        %1320 = vmatpush1.msra.mxu0 0.0
        %1321 = vmatprep.subr.mxu0 0.0
        %1322 = vmatpush1.msra.mxu0 0.0
        %1323 = vmatprep.subr.mxu0 0.0
        %1324 = vmatpush1.msra.mxu0 0.0
        %1325 = vmatprep.subr.mxu0 0.0
        %1326 = vmatpush1.msra.mxu0 0.0
        %1327 = vmatprep.subr.mxu0 0.0
        %1328 = vmatpush1.msra.mxu0 0.0
        %1329 = vmatprep.subr.mxu0 0.0
        %1330 = vmatpush1.msra.mxu0 0.0
        %1331 = vmatprep.subr.mxu0 0.0
        %1332 = vmatpush1.msra.mxu0 0.0
        %1333 = vmatprep.mubr.f32.mxu0 0.0
        %1334 = vmatmul.mubr.f32.gmra.mrb[0].mxu0 %v1268
        %v1335 = vpop.f32.mrb[0].mxu0
        %v1336 = vadd.f32 0.0, %v1335
        %v1337 = vpop.f32.mrb[0].mxu0
        %1338 = vdwg.mxu0
        %v1339 = vmul.f32 %v1336, 0.010416667
        %v1340 = vadd.f32 %v1339, 1e-05
        %v1341 = vrsqrt.pop %v1340
        %v1343 = vsel %vm1026, %v1341, 0
        %1345 = vmatprep.subr.mxu0 0.0
        %1346 = vmatpush1.msra.mxu0 %v1022
        %1347 = vmatprep.subr.mxu0 0.0
        %1348 = vmatpush1.msra.mxu0 %v1023
        %1349 = vmatprep.subr.mxu0 0.0
        %1350 = vmatpush1.msra.mxu0 %v1024
        %1351 = vmatprep.subr.mxu0 0.0
        %1352 = vmatpush1.msra.mxu0 %v1025
        %1353 = vmatprep.subr.mxu0 0.0
        %1354 = vmatpush1.msra.mxu0 0.0
        %1355 = vmatprep.subr.mxu0 0.0
        %1356 = vmatpush1.msra.mxu0 0.0
        %1357 = vmatprep.subr.mxu0 0.0
        %1358 = vmatpush1.msra.mxu0 0.0
        %1359 = vmatprep.subr.mxu0 0.0
        %1360 = vmatpush1.msra.mxu0 0.0
        %1361 = vmatprep.subr.mxu0 0.0
        %1362 = vmatpush1.msra.mxu0 0.0
        %1363 = vmatprep.subr.mxu0 0.0
        %1364 = vmatpush1.msra.mxu0 0.0
        %1365 = vmatprep.subr.mxu0 0.0
        %1366 = vmatpush1.msra.mxu0 0.0
        %1367 = vmatprep.subr.mxu0 0.0
        %1368 = vmatpush1.msra.mxu0 0.0
        %1369 = vmatprep.subr.mxu0 0.0
        %1370 = vmatpush1.msra.mxu0 0.0
        %1371 = vmatprep.subr.mxu0 0.0
        %1372 = vmatpush1.msra.mxu0 0.0
        %1373 = vmatprep.subr.mxu0 0.0
        %1374 = vmatpush1.msra.mxu0 0.0
        %1375 = vmatprep.subr.mxu0 0.0
        %1376 = vmatpush1.msra.mxu0 0.0
        %1377 = vmatprep.subr.mxu0 0.0
        %1378 = vmatpush1.msra.mxu0 0.0
        %1379 = vmatprep.subr.mxu0 0.0
        %1380 = vmatpush1.msra.mxu0 0.0
        %1381 = vmatprep.subr.mxu0 0.0
        %1382 = vmatpush1.msra.mxu0 0.0
        %1383 = vmatprep.subr.mxu0 0.0
        %1384 = vmatpush1.msra.mxu0 0.0
        %1385 = vmatprep.subr.mxu0 0.0
        %1386 = vmatpush1.msra.mxu0 0.0
        %1387 = vmatprep.subr.mxu0 0.0
        %1388 = vmatpush1.msra.mxu0 0.0
        %1389 = vmatprep.subr.mxu0 0.0
        %1390 = vmatpush1.msra.mxu0 0.0
        %1391 = vmatprep.subr.mxu0 0.0
        %1392 = vmatpush1.msra.mxu0 0.0
        %1393 = vmatprep.subr.mxu0 0.0
        %1394 = vmatpush1.msra.mxu0 0.0
        %1395 = vmatprep.subr.mxu0 0.0
        %1396 = vmatpush1.msra.mxu0 0.0
        %1397 = vmatprep.subr.mxu0 0.0
        %1398 = vmatpush1.msra.mxu0 0.0
        %1399 = vmatprep.subr.mxu0 0.0
        %1400 = vmatpush1.msra.mxu0 0.0
        %1401 = vmatprep.subr.mxu0 0.0
        %1402 = vmatpush1.msra.mxu0 0.0
        %1403 = vmatprep.subr.mxu0 0.0
        %1404 = vmatpush1.msra.mxu0 0.0
        %1405 = vmatprep.subr.mxu0 0.0
        %1406 = vmatpush1.msra.mxu0 0.0
        %1407 = vmatprep.subr.mxu0 0.0
        %1408 = vmatpush1.msra.mxu0 0.0
        %1409 = vmatprep.mubr.f32.mxu0 0.0
        %1410 = vmatmul.mubr.f32.gmra.mrb[0].mxu0 %v1343
        %v1411 = vpop.f32.mrb[0].mxu0
        %v1412 = vadd.f32 0.0, %v1411
        %v1413 = vpop.f32.mrb[0].mxu0
        %1414 = vdwg.mxu0
        %v1415 = vlaneseq
        %v1416 = vshrl.u32 %v1415, 7
        %v1417 = vsub.s32 0, %v1416
        %v1418 = vrot.slane %v1412, %v1417
        %v1419 = vmul.f32 %v1104, %v1418
        %v1420 = vmul.f32 %v1105, %v1418
        %v1421 = vmul.f32 %v1106, %v1418
        %v1422 = vmul.f32 %v1107, %v1418
        %v1423 = vmul.f32 %v1108, %v1418
        %v1424 = vmul.f32 %v1109, %v1418
        %v1425 = vmul.f32 %v1110, %v1418
        %v1426 = vmul.f32 %v1111, %v1418
        %v1427 = vmul.f32 %v1112, %v1418
        %v1428 = vmul.f32 %v1113, %v1418
        %v1429 = vmul.f32 %v1114, %v1418
        %v1430 = vmul.f32 %v1115, %v1418
        %v1431 = vmul.f32 %v1116, %v1418
        %v1432 = vmul.f32 %v1117, %v1418
        %v1433 = vmul.f32 %v1118, %v1418
        %v1434 = vmul.f32 %v1119, %v1418
        %v1435 = vld [vmem:[%s551] sm:$0x1]
        %v1437 = vlaneseq
        %v1438 = vshrl.u32 %v1437, 7
        %v1439 = vsub.s32 0, %v1438
        %v1440 = vrot.slane %v1435, %v1439
        %v1442 = vmul.f32 %v1419, %v1440
        %v1443 = vmul.f32 %v1420, %v1440
        %v1444 = vmul.f32 %v1421, %v1440
        %v1445 = vmul.f32 %v1422, %v1440
        %v1446 = vmul.f32 %v1423, %v1440
        %v1447 = vmul.f32 %v1424, %v1440
        %v1448 = vmul.f32 %v1425, %v1440
        %v1449 = vmul.f32 %v1426, %v1440
        %v1450 = vmul.f32 %v1427, %v1440
        %v1451 = vmul.f32 %v1428, %v1440
        %v1452 = vmul.f32 %v1429, %v1440
        %v1453 = vmul.f32 %v1430, %v1440
        %v1454 = vmul.f32 %v1431, %v1440
        %v1455 = vmul.f32 %v1432, %v1440
        %v1456 = vmul.f32 %v1433, %v1440
        %v1457 = vmul.f32 %v1434, %v1440
        %v1458 = vld [vmem:[%s554] sm:$0x1]
        %v1460 = vlaneseq
        %v1461 = vshrl.u32 %v1460, 7
        %v1462 = vsub.s32 0, %v1461
        %v1463 = vrot.slane %v1458, %v1462
        %v1465 = vadd.f32 %v1442, %v1463
        %v1466 = vadd.f32 %v1443, %v1463
        %v1467 = vadd.f32 %v1444, %v1463
        %v1468 = vadd.f32 %v1445, %v1463
        %v1469 = vadd.f32 %v1446, %v1463
        %v1470 = vadd.f32 %v1447, %v1463
        %v1471 = vadd.f32 %v1448, %v1463
        %v1472 = vadd.f32 %v1449, %v1463
        %v1473 = vadd.f32 %v1450, %v1463
        %v1474 = vadd.f32 %v1451, %v1463
        %v1475 = vadd.f32 %v1452, %v1463
        %v1476 = vadd.f32 %v1453, %v1463
        %v1477 = vadd.f32 %v1454, %v1463
        %v1478 = vadd.f32 %v1455, %v1463
        %v1479 = vadd.f32 %v1456, %v1463
        %v1480 = vadd.f32 %v1457, %v1463
        %v1481 = vpack.c.bf16 %v1466, %v1465
        %v1482 = vpack.c.bf16 %v1468, %v1467
        %v1483 = vpack.c.bf16 %v1470, %v1469
        %v1484 = vpack.c.bf16 %v1472, %v1471
        %v1485 = vpack.c.bf16 %v1474, %v1473
        %v1486 = vpack.c.bf16 %v1476, %v1475
        %v1487 = vpack.c.bf16 %v1478, %v1477
        %v1488 = vpack.c.bf16 %v1480, %v1479
        %v1489 = vld [vmem:[%s478] sm:$0xff]
        %v1490 = vld [vmem:[%s478 + $0x8] sm:$0xf]
        %v1491 = vld [vmem:[%s478 + $0xc] sm:$0xff]
        %v1492 = vld [vmem:[%s478 + $0x14] sm:$0xf]
        %v1493 = vld [vmem:[%s478 + $0x18] sm:$0xff]
        %v1494 = vld [vmem:[%s478 + $0x20] sm:$0xf]
        %v1495 = vld [vmem:[%s478 + $0x24] sm:$0xff]
        %v1496 = vld [vmem:[%s478 + $0x2c] sm:$0xf]
        %v1497 = vld [vmem:[%s478 + $0x30] sm:$0xff]
        %v1498 = vld [vmem:[%s478 + $0x38] sm:$0xf]
        %v1499 = vld [vmem:[%s478 + $0x3c] sm:$0xff]
        %v1500 = vld [vmem:[%s478 + $0x44] sm:$0xf]
        %v1501 = vld [vmem:[%s478 + $0x48] sm:$0xff]
        %v1502 = vld [vmem:[%s478 + $0x50] sm:$0xf]
        %v1503 = vld [vmem:[%s478 + $0x54] sm:$0xff]
        %v1504 = vld [vmem:[%s478 + $0x5c] sm:$0xf]
        %v1505 = vld [vmem:[%s478 + $0x60] sm:$0xff]
        %v1506 = vld [vmem:[%s478 + $0x68] sm:$0xf]
        %v1507 = vld [vmem:[%s478 + $0x6c] sm:$0xff]
        %v1508 = vld [vmem:[%s478 + $0x74] sm:$0xf]
        %v1509 = vld [vmem:[%s478 + $0x78] sm:$0xff]
        %v1510 = vld [vmem:[%s478 + $0x80] sm:$0xf]
        %v1511 = vld [vmem:[%s478 + $0x84] sm:$0xff]
        %v1512 = vld [vmem:[%s478 + $0x8c] sm:$0xf]
        %v1513 = vld [vmem:[%s478 + $0x90] sm:$0xff]
        %v1514 = vld [vmem:[%s478 + $0x98] sm:$0xf]
        %v1515 = vld [vmem:[%s478 + $0x9c] sm:$0xff]
        %v1516 = vld [vmem:[%s478 + $0xa4] sm:$0xf]
        %v1517 = vld [vmem:[%s478 + $0xa8] sm:$0xff]
        %v1518 = vld [vmem:[%s478 + $0xb0] sm:$0xf]
        %v1519 = vld [vmem:[%s478 + $0xb4] sm:$0xff]
        %v1520 = vld [vmem:[%s478 + $0xbc] sm:$0xf]
        %v1521 = vld [vmem:[%s558] sm:$0x7]
        %v1523 = vlaneseq
        %v1524 = vshrl.u32 %v1523, 7
        %v1525 = vsub.s32 0, %v1524
        %v1526 = vrot.slane %v1521, %v1525
        %v1527 = vlaneseq
        %v1528 = vshrl.u32 %v1527, 7
        %v1529 = vsub.s32 1, %v1528
        %v1530 = vrot.slane %v1521, %v1529
        %v1531 = vlaneseq
        %v1532 = vshrl.u32 %v1531, 7
        %v1533 = vsub.s32 2, %v1532
        %v1534 = vrot.slane %v1521, %v1533
        %v1570 = vunpack.c.l.b16 %v1489
        %v1571 = vunpack.c.h.b16 %v1489
        %v1572 = vunpack.c.l.b16 %v1490
        %v1573 = vunpack.c.l.b16 %v1491
        %v1574 = vunpack.c.h.b16 %v1491
        %v1575 = vunpack.c.l.b16 %v1492
        %v1576 = vunpack.c.l.b16 %v1493
        %v1577 = vunpack.c.h.b16 %v1493
        %v1578 = vunpack.c.l.b16 %v1494
        %v1579 = vunpack.c.l.b16 %v1495
        %v1580 = vunpack.c.h.b16 %v1495
        %v1581 = vunpack.c.l.b16 %v1496
        %v1582 = vunpack.c.l.b16 %v1497
        %v1583 = vunpack.c.h.b16 %v1497
        %v1584 = vunpack.c.l.b16 %v1498
        %v1585 = vunpack.c.l.b16 %v1499
        %v1586 = vunpack.c.h.b16 %v1499
        %v1587 = vunpack.c.l.b16 %v1500
        %v1588 = vunpack.c.l.b16 %v1501
        %v1589 = vunpack.c.h.b16 %v1501
        %v1590 = vunpack.c.l.b16 %v1502
        %v1591 = vunpack.c.l.b16 %v1503
        %v1592 = vunpack.c.h.b16 %v1503
        %v1593 = vunpack.c.l.b16 %v1504
        %v1594 = vunpack.c.l.b16 %v1505
        %v1595 = vunpack.c.h.b16 %v1505
        %v1596 = vunpack.c.l.b16 %v1506
        %v1597 = vunpack.c.l.b16 %v1507
        %v1598 = vunpack.c.h.b16 %v1507
        %v1599 = vunpack.c.l.b16 %v1508
        %v1600 = vunpack.c.l.b16 %v1509
        %v1601 = vunpack.c.h.b16 %v1509
        %v1602 = vunpack.c.l.b16 %v1510
        %v1603 = vunpack.c.l.b16 %v1511
        %v1604 = vunpack.c.h.b16 %v1511
        %v1605 = vunpack.c.l.b16 %v1512
        %v1606 = vunpack.c.l.b16 %v1513
        %v1607 = vunpack.c.h.b16 %v1513
        %v1608 = vunpack.c.l.b16 %v1514
        %v1609 = vunpack.c.l.b16 %v1515
        %v1610 = vunpack.c.h.b16 %v1515
        %v1611 = vunpack.c.l.b16 %v1516
        %v1612 = vunpack.c.l.b16 %v1517
        %v1613 = vunpack.c.h.b16 %v1517
        %v1614 = vunpack.c.l.b16 %v1518
        %v1615 = vunpack.c.l.b16 %v1519
        %v1616 = vunpack.c.h.b16 %v1519
        %v1617 = vunpack.c.l.b16 %v1520
        %v1618 = vpack.c.b16 %v1573, %v1570
        %v1619 = vpack.c.b16 %v1574, %v1571
        %v1620 = vpack.c.b16 %v1575, %v1572
        %v1621 = vpack.c.b16 %v1579, %v1576
        %v1622 = vpack.c.b16 %v1580, %v1577
        %v1623 = vpack.c.b16 %v1581, %v1578
        %v1624 = vpack.c.b16 %v1585, %v1582
        %v1625 = vpack.c.b16 %v1586, %v1583
        %v1626 = vpack.c.b16 %v1587, %v1584
        %v1627 = vpack.c.b16 %v1591, %v1588
        %v1628 = vpack.c.b16 %v1592, %v1589
        %v1629 = vpack.c.b16 %v1593, %v1590
        %v1630 = vpack.c.b16 %v1597, %v1594
        %v1631 = vpack.c.b16 %v1598, %v1595
        %v1632 = vpack.c.b16 %v1599, %v1596
        %v1633 = vpack.c.b16 %v1603, %v1600
        %v1634 = vpack.c.b16 %v1604, %v1601
        %v1635 = vpack.c.b16 %v1605, %v1602
        %v1636 = vpack.c.b16 %v1609, %v1606
        %v1637 = vpack.c.b16 %v1610, %v1607
        %v1638 = vpack.c.b16 %v1611, %v1608
        %v1639 = vpack.c.b16 %v1615, %v1612
        %v1640 = vpack.c.b16 %v1616, %v1613
        %v1641 = vpack.c.b16 %v1617, %v1614
        %1666 = vmatprep.subr.bf16.mxu0 %v1619
        %1667 = vmatpush1.bf16.msra.mxu0 %v1618
        %1668 = vmatprep.subr.bf16.mxu0 %v1622
        %1669 = vmatpush1.bf16.msra.mxu0 %v1621
        %1670 = vmatprep.subr.bf16.mxu0 %v1625
        %1671 = vmatpush1.bf16.msra.mxu0 %v1624
        %1672 = vmatprep.subr.bf16.mxu0 %v1628
        %1673 = vmatpush1.bf16.msra.mxu0 %v1627
        %1674 = vmatprep.subr.bf16.mxu0 %v1631
        %1675 = vmatpush1.bf16.msra.mxu0 %v1630
        %1676 = vmatprep.subr.bf16.mxu0 %v1634
        %1677 = vmatpush1.bf16.msra.mxu0 %v1633
        %1678 = vmatprep.subr.bf16.mxu0 %v1637
        %1679 = vmatpush1.bf16.msra.mxu0 %v1636
        %1680 = vmatprep.subr.bf16.mxu0 %v1640
        %1681 = vmatpush1.bf16.msra.mxu0 %v1639
        %1682 = vmatprep.subr.bf16.mxu0 0
        %1683 = vmatpush1.bf16.msra.mxu0 0
        %1684 = vmatprep.subr.bf16.mxu0 0
        %1685 = vmatpush1.bf16.msra.mxu0 0
        %1686 = vmatprep.subr.bf16.mxu0 0
        %1687 = vmatpush1.bf16.msra.mxu0 0
        %1688 = vmatprep.subr.bf16.mxu0 0
        %1689 = vmatpush1.bf16.msra.mxu0 0
        %1690 = vmatprep.subr.bf16.mxu0 0
        %1691 = vmatpush1.bf16.msra.mxu0 0
        %1692 = vmatprep.subr.bf16.mxu0 0
        %1693 = vmatpush1.bf16.msra.mxu0 0
        %1694 = vmatprep.subr.bf16.mxu0 0
        %1695 = vmatpush1.bf16.msra.mxu0 0
        %1696 = vmatprep.subr.bf16.mxu0 0
        %1697 = vmatpush1.bf16.msra.mxu0 0
        %1698 = vmatprep.mubr.bf16.mxu0 0
        %1699 = vmatmul.mubr.bf16.gmra.mrb[0].mxu0 %v1481
        %v1700 = vpop.f32.mrb[0].mxu0
        %v1701 = vadd.f32 %v1526, %v1700
        %v1702 = vpop.f32.mrb[0].mxu0
        %v1703 = vadd.f32 %v1530, %v1702
        %v1704 = vpop.f32.mrb[0].mxu0
        %v1705 = vadd.f32 %v1526, %v1704
        %v1706 = vpop.f32.mrb[0].mxu0
        %v1707 = vadd.f32 %v1530, %v1706
        %1708 = vmatprep.mubr.bf16.mxu0 0
        %1709 = vmatmul.mubr.bf16.gmra.mrb[0].mxu0 %v1482
        %v1710 = vpop.f32.mrb[0].mxu0
        %v1711 = vadd.f32 %v1526, %v1710
        %v1712 = vpop.f32.mrb[0].mxu0
        %v1713 = vadd.f32 %v1530, %v1712
        %v1714 = vpop.f32.mrb[0].mxu0
        %v1715 = vadd.f32 %v1526, %v1714
        %v1716 = vpop.f32.mrb[0].mxu0
        %v1717 = vadd.f32 %v1530, %v1716
        %1718 = vmatprep.mubr.bf16.mxu0 0
        %1719 = vmatmul.mubr.bf16.gmra.mrb[0].mxu0 %v1483
        %v1720 = vpop.f32.mrb[0].mxu0
        %v1721 = vadd.f32 %v1526, %v1720
        %v1722 = vpop.f32.mrb[0].mxu0
        %v1723 = vadd.f32 %v1530, %v1722
        %v1724 = vpop.f32.mrb[0].mxu0
        %v1725 = vadd.f32 %v1526, %v1724
        %v1726 = vpop.f32.mrb[0].mxu0
        %v1727 = vadd.f32 %v1530, %v1726
        %1728 = vmatprep.mubr.bf16.mxu0 0
        %1729 = vmatmul.mubr.bf16.gmra.mrb[0].mxu0 %v1484
        %v1730 = vpop.f32.mrb[0].mxu0
        %v1731 = vadd.f32 %v1526, %v1730
        %v1732 = vpop.f32.mrb[0].mxu0
        %v1733 = vadd.f32 %v1530, %v1732
        %v1734 = vpop.f32.mrb[0].mxu0
        %v1735 = vadd.f32 %v1526, %v1734
        %v1736 = vpop.f32.mrb[0].mxu0
        %v1737 = vadd.f32 %v1530, %v1736
        %1738 = vmatprep.mubr.bf16.mxu0 0
        %1739 = vmatmul.mubr.bf16.gmra.mrb[0].mxu0 %v1485
        %v1740 = vpop.f32.mrb[0].mxu0
        %v1741 = vadd.f32 %v1526, %v1740
        %v1742 = vpop.f32.mrb[0].mxu0
        %v1743 = vadd.f32 %v1530, %v1742
        %v1744 = vpop.f32.mrb[0].mxu0
        %v1745 = vadd.f32 %v1526, %v1744
        %v1746 = vpop.f32.mrb[0].mxu0
        %v1747 = vadd.f32 %v1530, %v1746
        %1748 = vmatprep.mubr.bf16.mxu0 0
        %1749 = vmatmul.mubr.bf16.gmra.mrb[0].mxu0 %v1486
        %v1750 = vpop.f32.mrb[0].mxu0
        %v1751 = vadd.f32 %v1526, %v1750
        %v1752 = vpop.f32.mrb[0].mxu0
        %v1753 = vadd.f32 %v1530, %v1752
        %v1754 = vpop.f32.mrb[0].mxu0
        %v1755 = vadd.f32 %v1526, %v1754
        %v1756 = vpop.f32.mrb[0].mxu0
        %v1757 = vadd.f32 %v1530, %v1756
        %1758 = vmatprep.mubr.bf16.mxu0 0
        %1759 = vmatmul.mubr.bf16.gmra.mrb[0].mxu0 %v1487
        %v1760 = vpop.f32.mrb[0].mxu0
        %v1761 = vadd.f32 %v1526, %v1760
        %v1762 = vpop.f32.mrb[0].mxu0
        %v1763 = vadd.f32 %v1530, %v1762
        %v1764 = vpop.f32.mrb[0].mxu0
        %v1765 = vadd.f32 %v1526, %v1764
        %v1766 = vpop.f32.mrb[0].mxu0
        %v1767 = vadd.f32 %v1530, %v1766
        %1768 = vmatprep.mubr.bf16.mxu0 0
        %1769 = vmatmul.mubr.bf16.gmra.mrb[0].mxu0 %v1488
        %v1770 = vpop.f32.mrb[0].mxu0
        %v1771 = vadd.f32 %v1526, %v1770
        %v1772 = vpop.f32.mrb[0].mxu0
        %v1773 = vadd.f32 %v1530, %v1772
        %v1774 = vpop.f32.mrb[0].mxu0
        %v1775 = vadd.f32 %v1526, %v1774
        %v1776 = vpop.f32.mrb[0].mxu0
        %v1777 = vadd.f32 %v1530, %v1776
        %1778 = vdwg.mxu0
        %1779 = vmatprep.subr.bf16.mxu0 0
        %1780 = vmatpush1.bf16.msra.mxu0 %v1620
        %1781 = vmatprep.subr.bf16.mxu0 0
        %1782 = vmatpush1.bf16.msra.mxu0 %v1623
        %1783 = vmatprep.subr.bf16.mxu0 0
        %1784 = vmatpush1.bf16.msra.mxu0 %v1626
        %1785 = vmatprep.subr.bf16.mxu0 0
        %1786 = vmatpush1.bf16.msra.mxu0 %v1629
        %1787 = vmatprep.subr.bf16.mxu0 0
        %1788 = vmatpush1.bf16.msra.mxu0 %v1632
        %1789 = vmatprep.subr.bf16.mxu0 0
        %1790 = vmatpush1.bf16.msra.mxu0 %v1635
        %1791 = vmatprep.subr.bf16.mxu0 0
        %1792 = vmatpush1.bf16.msra.mxu0 %v1638
        %1793 = vmatprep.subr.bf16.mxu0 0
        %1794 = vmatpush1.bf16.msra.mxu0 %v1641
        %1795 = vmatprep.subr.bf16.mxu0 0
        %1796 = vmatpush1.bf16.msra.mxu0 0
        %1797 = vmatprep.subr.bf16.mxu0 0
        %1798 = vmatpush1.bf16.msra.mxu0 0
        %1799 = vmatprep.subr.bf16.mxu0 0
        %1800 = vmatpush1.bf16.msra.mxu0 0
        %1801 = vmatprep.subr.bf16.mxu0 0
        %1802 = vmatpush1.bf16.msra.mxu0 0
        %1803 = vmatprep.subr.bf16.mxu0 0
        %1804 = vmatpush1.bf16.msra.mxu0 0
        %1805 = vmatprep.subr.bf16.mxu0 0
        %1806 = vmatpush1.bf16.msra.mxu0 0
        %1807 = vmatprep.subr.bf16.mxu0 0
        %1808 = vmatpush1.bf16.msra.mxu0 0
        %1809 = vmatprep.subr.bf16.mxu0 0
        %1810 = vmatpush1.bf16.msra.mxu0 0
        %1811 = vmatprep.mubr.bf16.mxu0 0
        %1812 = vmatmul.mubr.bf16.gmra.mrb[0].mxu0 %v1481
        %v1813 = vpop.f32.mrb[0].mxu0
        %v1814 = vadd.f32 %v1534, %v1813
        %v1815 = vpop.f32.mrb[0].mxu0
        %v1816 = vpop.f32.mrb[0].mxu0
        %v1817 = vadd.f32 %v1534, %v1816
        %v1818 = vpop.f32.mrb[0].mxu0
        %1819 = vmatprep.mubr.bf16.mxu0 0
        %1820 = vmatmul.mubr.bf16.gmra.mrb[0].mxu0 %v1482
        %v1821 = vpop.f32.mrb[0].mxu0
        %v1822 = vadd.f32 %v1534, %v1821
        %v1823 = vpop.f32.mrb[0].mxu0
        %v1824 = vpop.f32.mrb[0].mxu0
        %v1825 = vadd.f32 %v1534, %v1824
        %v1826 = vpop.f32.mrb[0].mxu0
        %1827 = vmatprep.mubr.bf16.mxu0 0
        %1828 = vmatmul.mubr.bf16.gmra.mrb[0].mxu0 %v1483
        %v1829 = vpop.f32.mrb[0].mxu0
        %v1830 = vadd.f32 %v1534, %v1829
        %v1831 = vpop.f32.mrb[0].mxu0
        %v1832 = vpop.f32.mrb[0].mxu0
        %v1833 = vadd.f32 %v1534, %v1832
        %v1834 = vpop.f32.mrb[0].mxu0
        %1835 = vmatprep.mubr.bf16.mxu0 0
        %1836 = vmatmul.mubr.bf16.gmra.mrb[0].mxu0 %v1484
        %v1837 = vpop.f32.mrb[0].mxu0
        %v1838 = vadd.f32 %v1534, %v1837
        %v1839 = vpop.f32.mrb[0].mxu0
        %v1840 = vpop.f32.mrb[0].mxu0
        %v1841 = vadd.f32 %v1534, %v1840
        %v1842 = vpop.f32.mrb[0].mxu0
        %1843 = vmatprep.mubr.bf16.mxu0 0
        %1844 = vmatmul.mubr.bf16.gmra.mrb[0].mxu0 %v1485
        %v1845 = vpop.f32.mrb[0].mxu0
        %v1846 = vadd.f32 %v1534, %v1845
        %v1847 = vpop.f32.mrb[0].mxu0
        %v1848 = vpop.f32.mrb[0].mxu0
        %v1849 = vadd.f32 %v1534, %v1848
        %v1850 = vpop.f32.mrb[0].mxu0
        %1851 = vmatprep.mubr.bf16.mxu0 0
        %1852 = vmatmul.mubr.bf16.gmra.mrb[0].mxu0 %v1486
        %v1853 = vpop.f32.mrb[0].mxu0
        %v1854 = vadd.f32 %v1534, %v1853
        %v1855 = vpop.f32.mrb[0].mxu0
        %v1856 = vpop.f32.mrb[0].mxu0
        %v1857 = vadd.f32 %v1534, %v1856
        %v1858 = vpop.f32.mrb[0].mxu0
        %1859 = vmatprep.mubr.bf16.mxu0 0
        %1860 = vmatmul.mubr.bf16.gmra.mrb[0].mxu0 %v1487
        %v1861 = vpop.f32.mrb[0].mxu0
        %v1862 = vadd.f32 %v1534, %v1861
        %v1863 = vpop.f32.mrb[0].mxu0
        %v1864 = vpop.f32.mrb[0].mxu0
        %v1865 = vadd.f32 %v1534, %v1864
        %v1866 = vpop.f32.mrb[0].mxu0
        %1867 = vmatprep.mubr.bf16.mxu0 0
        %1868 = vmatmul.mubr.bf16.gmra.mrb[0].mxu0 %v1488
        %v1869 = vpop.f32.mrb[0].mxu0
        %v1870 = vadd.f32 %v1534, %v1869
        %v1871 = vpop.f32.mrb[0].mxu0
        %v1872 = vpop.f32.mrb[0].mxu0
        %v1873 = vadd.f32 %v1534, %v1872
        %v1874 = vpop.f32.mrb[0].mxu0
        %1875 = vdwg.mxu0
        %v1876 = vpack.c.bf16 %v1705, %v1701
        %v1877 = vpack.c.bf16 %v1707, %v1703
        %v1878 = vpack.c.bf16 %v1817, %v1814
        %v1879 = vpack.c.bf16 %v1715, %v1711
        %v1880 = vpack.c.bf16 %v1717, %v1713
        %v1881 = vpack.c.bf16 %v1825, %v1822
        %v1882 = vpack.c.bf16 %v1725, %v1721
        %v1883 = vpack.c.bf16 %v1727, %v1723
        %v1884 = vpack.c.bf16 %v1833, %v1830
        %v1885 = vpack.c.bf16 %v1735, %v1731
        %v1886 = vpack.c.bf16 %v1737, %v1733
        %v1887 = vpack.c.bf16 %v1841, %v1838
        %v1888 = vpack.c.bf16 %v1745, %v1741
        %v1889 = vpack.c.bf16 %v1747, %v1743
        %v1890 = vpack.c.bf16 %v1849, %v1846
        %v1891 = vpack.c.bf16 %v1755, %v1751
        %v1892 = vpack.c.bf16 %v1757, %v1753
        %v1893 = vpack.c.bf16 %v1857, %v1854
        %v1894 = vpack.c.bf16 %v1765, %v1761
        %v1895 = vpack.c.bf16 %v1767, %v1763
        %v1896 = vpack.c.bf16 %v1865, %v1862
        %v1897 = vpack.c.bf16 %v1775, %v1771
        %v1898 = vpack.c.bf16 %v1777, %v1773
        %v1899 = vpack.c.bf16 %v1873, %v1870
        %v1900 = vld [vmem:[%s6] sm:$0x1]
        %v1902 = vlaneseq
        %v1903 = vshrl.u32 %v1902, 7
        %v1904 = vsub.s32 0, %v1903
        %v1905 = vrot.slane %v1900, %v1904
        %v1908 = vsel %vm1026, %v1876, 0
        %v1911 = vsel %vm1026, %v1879, 0
        %v1914 = vsel %vm1026, %v1882, 0
        %v1917 = vsel %vm1026, %v1885, 0
        %v1920 = vsel %vm1026, %v1888, 0
        %v1923 = vsel %vm1026, %v1891, 0
        %v1926 = vsel %vm1026, %v1894, 0
        %v1929 = vsel %vm1026, %v1897, 0
        %v1932 = vsel %vm1026, %v1877, 0
        %v1935 = vsel %vm1026, %v1880, 0
        %v1938 = vsel %vm1026, %v1883, 0
        %v1941 = vsel %vm1026, %v1886, 0
        %v1944 = vsel %vm1026, %v1889, 0
        %v1947 = vsel %vm1026, %v1892, 0
        %v1950 = vsel %vm1026, %v1895, 0
        %v1953 = vsel %vm1026, %v1898, 0
        %1955 = vmatprep.subr.bf16.mxu0 0
        %1956 = vmatpush1.bf16.xpose.msra.mxu0 %v1932
        %1957 = vmatprep.subr.bf16.mxu0 0
        %1958 = vmatpush1.bf16.xpose.msra.mxu0 %v1935
        %1959 = vmatprep.subr.bf16.mxu0 0
        %1960 = vmatpush1.bf16.xpose.msra.mxu0 %v1938
        %1961 = vmatprep.subr.bf16.mxu0 0
        %1962 = vmatpush1.bf16.xpose.msra.mxu0 %v1941
        %1963 = vmatprep.subr.bf16.mxu0 0
        %1964 = vmatpush1.bf16.xpose.msra.mxu0 %v1944
        %1965 = vmatprep.subr.bf16.mxu0 0
        %1966 = vmatpush1.bf16.xpose.msra.mxu0 %v1947
        %1967 = vmatprep.subr.bf16.mxu0 0
        %1968 = vmatpush1.bf16.xpose.msra.mxu0 %v1950
        %1969 = vmatprep.subr.bf16.mxu0 0
        %1970 = vmatpush1.bf16.xpose.msra.mxu0 %v1953
        %1971 = vmatprep.subr.bf16.mxu0 0
        %1972 = vmatpush1.bf16.xpose.msra.mxu0 0
        %1973 = vmatprep.subr.bf16.mxu0 0
        %1974 = vmatpush1.bf16.xpose.msra.mxu0 0
        %1975 = vmatprep.subr.bf16.mxu0 0
        %1976 = vmatpush1.bf16.xpose.msra.mxu0 0
        %1977 = vmatprep.subr.bf16.mxu0 0
        %1978 = vmatpush1.bf16.xpose.msra.mxu0 0
        %1979 = vmatprep.subr.bf16.mxu0 0
        %1980 = vmatpush1.bf16.xpose.msra.mxu0 0
        %1981 = vmatprep.subr.bf16.mxu0 0
        %1982 = vmatpush1.bf16.xpose.msra.mxu0 0
        %1983 = vmatprep.subr.bf16.mxu0 0
        %1984 = vmatpush1.bf16.xpose.msra.mxu0 0
        %1985 = vmatprep.subr.bf16.mxu0 0
        %1986 = vmatpush1.bf16.xpose.msra.mxu0 0
        %1987 = vmatprep.mubr.bf16.mxu0 0
        %1988 = vmatmul.mubr.bf16.gmra.mrb[0].mxu0 %v1908
        %v1989 = vpop.f32.mrb[0].mxu0
        %v1990 = vadd.f32 %v1905, %v1989
        %v1991 = vpop.f32.mrb[0].mxu0
        %v1992 = vpop.f32.mrb[0].mxu0
        %v1993 = vadd.f32 %v1905, %v1992
        %v1994 = vpop.f32.mrb[0].mxu0
        %1995 = vmatprep.mubr.bf16.mxu0 0
        %1996 = vmatmul.mubr.bf16.gmra.mrb[0].mxu0 %v1911
        %v1997 = vpop.f32.mrb[0].mxu0
        %v1998 = vadd.f32 %v1905, %v1997
        %v1999 = vpop.f32.mrb[0].mxu0
        %v2000 = vpop.f32.mrb[0].mxu0
        %v2001 = vadd.f32 %v1905, %v2000
        %v2002 = vpop.f32.mrb[0].mxu0
        %2003 = vmatprep.mubr.bf16.mxu0 0
        %2004 = vmatmul.mubr.bf16.gmra.mrb[0].mxu0 %v1914
        %v2005 = vpop.f32.mrb[0].mxu0
        %v2006 = vadd.f32 %v1905, %v2005
        %v2007 = vpop.f32.mrb[0].mxu0
        %v2008 = vpop.f32.mrb[0].mxu0
        %v2009 = vadd.f32 %v1905, %v2008
        %v2010 = vpop.f32.mrb[0].mxu0
        %2011 = vmatprep.mubr.bf16.mxu0 0
        %2012 = vmatmul.mubr.bf16.gmra.mrb[0].mxu0 %v1917
        %v2013 = vpop.f32.mrb[0].mxu0
        %v2014 = vadd.f32 %v1905, %v2013
        %v2015 = vpop.f32.mrb[0].mxu0
        %v2016 = vpop.f32.mrb[0].mxu0
        %v2017 = vadd.f32 %v1905, %v2016
        %v2018 = vpop.f32.mrb[0].mxu0
        %2019 = vmatprep.mubr.bf16.mxu0 0
        %2020 = vmatmul.mubr.bf16.gmra.mrb[0].mxu0 %v1920
        %v2021 = vpop.f32.mrb[0].mxu0
        %v2022 = vadd.f32 %v1905, %v2021
        %v2023 = vpop.f32.mrb[0].mxu0
        %v2024 = vpop.f32.mrb[0].mxu0
        %v2025 = vadd.f32 %v1905, %v2024
        %v2026 = vpop.f32.mrb[0].mxu0
        %2027 = vmatprep.mubr.bf16.mxu0 0
        %2028 = vmatmul.mubr.bf16.gmra.mrb[0].mxu0 %v1923
        %v2029 = vpop.f32.mrb[0].mxu0
        %v2030 = vadd.f32 %v1905, %v2029
        %v2031 = vpop.f32.mrb[0].mxu0
        %v2032 = vpop.f32.mrb[0].mxu0
        %v2033 = vadd.f32 %v1905, %v2032
        %v2034 = vpop.f32.mrb[0].mxu0
        %2035 = vmatprep.mubr.bf16.mxu0 0
        %2036 = vmatmul.mubr.bf16.gmra.mrb[0].mxu0 %v1926
        %v2037 = vpop.f32.mrb[0].mxu0
        %v2038 = vadd.f32 %v1905, %v2037
        %v2039 = vpop.f32.mrb[0].mxu0
        %v2040 = vpop.f32.mrb[0].mxu0
        %v2041 = vadd.f32 %v1905, %v2040
        %v2042 = vpop.f32.mrb[0].mxu0
        %2043 = vmatprep.mubr.bf16.mxu0 0
        %2044 = vmatmul.mubr.bf16.gmra.mrb[0].mxu0 %v1929
        %v2045 = vpop.f32.mrb[0].mxu0
        %v2046 = vadd.f32 %v1905, %v2045
        %v2047 = vpop.f32.mrb[0].mxu0
        %v2048 = vpop.f32.mrb[0].mxu0
        %v2049 = vadd.f32 %v1905, %v2048
        %v2050 = vpop.f32.mrb[0].mxu0
        %2051 = vdwg.mxu0
        %2052 = vmax.xlane.f32.xlu0 %v1990
        %v2053 = vpop.xlane.xlu0 %2052
        %2054 = vmax.xlane.f32.xlu0 %v1993
        %v2055 = vpop.xlane.xlu0 %2054
        %2056 = vmax.xlane.f32.xlu0 %v1998
        %v2057 = vpop.xlane.xlu0 %2056
        %2058 = vmax.xlane.f32.xlu0 %v2001
        %v2059 = vpop.xlane.xlu0 %2058
        %2060 = vmax.xlane.f32.xlu0 %v2006
        %v2061 = vpop.xlane.xlu0 %2060
        %2062 = vmax.xlane.f32.xlu0 %v2009
        %v2063 = vpop.xlane.xlu0 %2062
        %2064 = vmax.xlane.f32.xlu0 %v2014
        %v2065 = vpop.xlane.xlu0 %2064
        %2066 = vmax.xlane.f32.xlu0 %v2017
        %v2067 = vpop.xlane.xlu0 %2066
        %2068 = vmax.xlane.f32.xlu0 %v2022
        %v2069 = vpop.xlane.xlu0 %2068
        %2070 = vmax.xlane.f32.xlu0 %v2025
        %v2071 = vpop.xlane.xlu0 %2070
        %2072 = vmax.xlane.f32.xlu0 %v2030
        %v2073 = vpop.xlane.xlu0 %2072
        %2074 = vmax.xlane.f32.xlu0 %v2033
        %v2075 = vpop.xlane.xlu0 %2074
        %2076 = vmax.xlane.f32.xlu0 %v2038
        %v2077 = vpop.xlane.xlu0 %2076
        %2078 = vmax.xlane.f32.xlu0 %v2041
        %v2079 = vpop.xlane.xlu0 %2078
        %2080 = vmax.xlane.f32.xlu0 %v2046
        %v2081 = vpop.xlane.xlu0 %2080
        %2082 = vmax.xlane.f32.xlu0 %v2049
        %v2083 = vpop.xlane.xlu0 %2082
        %v2084 = vsub.f32 %v1990, %v2053
        %v2085 = vsub.f32 %v1993, %v2055
        %v2086 = vsub.f32 %v1998, %v2057
        %v2087 = vsub.f32 %v2001, %v2059
        %v2088 = vsub.f32 %v2006, %v2061
        %v2089 = vsub.f32 %v2009, %v2063
        %v2090 = vsub.f32 %v2014, %v2065
        %v2091 = vsub.f32 %v2017, %v2067
        %v2092 = vsub.f32 %v2022, %v2069
        %v2093 = vsub.f32 %v2025, %v2071
        %v2094 = vsub.f32 %v2030, %v2073
        %v2095 = vsub.f32 %v2033, %v2075
        %v2096 = vsub.f32 %v2038, %v2077
        %v2097 = vsub.f32 %v2041, %v2079
        %v2098 = vsub.f32 %v2046, %v2081
        %v2099 = vsub.f32 %v2049, %v2083
        %v2100 = vmul.f32 %v2084, 1.442695
        %v2101 = vpow.pop %v2100
        %v2102 = vmul.f32 %v2085, 1.442695
        %v2103 = vpow.pop %v2102
        %v2104 = vmul.f32 %v2086, 1.442695
        %v2105 = vpow.pop %v2104
        %v2106 = vmul.f32 %v2087, 1.442695
        %v2107 = vpow.pop %v2106
        %v2108 = vmul.f32 %v2088, 1.442695
        %v2109 = vpow.pop %v2108
        %v2110 = vmul.f32 %v2089, 1.442695
        %v2111 = vpow.pop %v2110
        %v2112 = vmul.f32 %v2090, 1.442695
        %v2113 = vpow.pop %v2112
        %v2114 = vmul.f32 %v2091, 1.442695
        %v2115 = vpow.pop %v2114
        %v2116 = vmul.f32 %v2092, 1.442695
        %v2117 = vpow.pop %v2116
        %v2118 = vmul.f32 %v2093, 1.442695
        %v2119 = vpow.pop %v2118
        %v2120 = vmul.f32 %v2094, 1.442695
        %v2121 = vpow.pop %v2120
        %v2122 = vmul.f32 %v2095, 1.442695
        %v2123 = vpow.pop %v2122
        %v2124 = vmul.f32 %v2096, 1.442695
        %v2125 = vpow.pop %v2124
        %v2126 = vmul.f32 %v2097, 1.442695
        %v2127 = vpow.pop %v2126
        %v2128 = vmul.f32 %v2098, 1.442695
        %v2129 = vpow.pop %v2128
        %v2130 = vmul.f32 %v2099, 1.442695
        %v2131 = vpow.pop %v2130
        %2132 = vadd.xlane.f32.xlu0 %v2101
        %v2133 = vpop.xlane.xlu0 %2132
        %2134 = vadd.xlane.f32.xlu0 %v2103
        %v2135 = vpop.xlane.xlu0 %2134
        %2136 = vadd.xlane.f32.xlu0 %v2105
        %v2137 = vpop.xlane.xlu0 %2136
        %2138 = vadd.xlane.f32.xlu0 %v2107
        %v2139 = vpop.xlane.xlu0 %2138
        %2140 = vadd.xlane.f32.xlu0 %v2109
        %v2141 = vpop.xlane.xlu0 %2140
        %2142 = vadd.xlane.f32.xlu0 %v2111
        %v2143 = vpop.xlane.xlu0 %2142
        %2144 = vadd.xlane.f32.xlu0 %v2113
        %v2145 = vpop.xlane.xlu0 %2144
        %2146 = vadd.xlane.f32.xlu0 %v2115
        %v2147 = vpop.xlane.xlu0 %2146
        %2148 = vadd.xlane.f32.xlu0 %v2117
        %v2149 = vpop.xlane.xlu0 %2148
        %2150 = vadd.xlane.f32.xlu0 %v2119
        %v2151 = vpop.xlane.xlu0 %2150
        %2152 = vadd.xlane.f32.xlu0 %v2121
        %v2153 = vpop.xlane.xlu0 %2152
        %2154 = vadd.xlane.f32.xlu0 %v2123
        %v2155 = vpop.xlane.xlu0 %2154
        %2156 = vadd.xlane.f32.xlu0 %v2125
        %v2157 = vpop.xlane.xlu0 %2156
        %2158 = vadd.xlane.f32.xlu0 %v2127
        %v2159 = vpop.xlane.xlu0 %2158
        %2160 = vadd.xlane.f32.xlu0 %v2129
        %v2161 = vpop.xlane.xlu0 %2160
        %2162 = vadd.xlane.f32.xlu0 %v2131
        %v2163 = vpop.xlane.xlu0 %2162
        %v2164 = vrcp.pop %v2133
        %v2165 = vrcp.pop %v2135
        %v2166 = vrcp.pop %v2137
        %v2167 = vrcp.pop %v2139
        %v2168 = vrcp.pop %v2141
        %v2169 = vrcp.pop %v2143
        %v2170 = vrcp.pop %v2145
        %v2171 = vrcp.pop %v2147
        %v2172 = vrcp.pop %v2149
        %v2173 = vrcp.pop %v2151
        %v2174 = vrcp.pop %v2153
        %v2175 = vrcp.pop %v2155
        %v2176 = vrcp.pop %v2157
        %v2177 = vrcp.pop %v2159
        %v2178 = vrcp.pop %v2161
        %v2179 = vrcp.pop %v2163
        %v2180 = vmul.f32 %v2101, %v2164
        %v2181 = vmul.f32 %v2103, %v2165
        %v2182 = vmul.f32 %v2105, %v2166
        %v2183 = vmul.f32 %v2107, %v2167
        %v2184 = vmul.f32 %v2109, %v2168
        %v2185 = vmul.f32 %v2111, %v2169
        %v2186 = vmul.f32 %v2113, %v2170
        %v2187 = vmul.f32 %v2115, %v2171
        %v2188 = vmul.f32 %v2117, %v2172
        %v2189 = vmul.f32 %v2119, %v2173
        %v2190 = vmul.f32 %v2121, %v2174
        %v2191 = vmul.f32 %v2123, %v2175
        %v2192 = vmul.f32 %v2125, %v2176
        %v2193 = vmul.f32 %v2127, %v2177
        %v2194 = vmul.f32 %v2129, %v2178
        %v2195 = vmul.f32 %v2131, %v2179
        %v2196 = vpack.c.bf16 %v2181, %v2180
        %v2197 = vpack.c.bf16 %v2183, %v2182
        %v2198 = vpack.c.bf16 %v2185, %v2184
        %v2199 = vpack.c.bf16 %v2187, %v2186
        %v2200 = vpack.c.bf16 %v2189, %v2188
        %v2201 = vpack.c.bf16 %v2191, %v2190
        %v2202 = vpack.c.bf16 %v2193, %v2192
        %v2203 = vpack.c.bf16 %v2195, %v2194
        %2204 = vmatprep.subr.bf16.mxu0 0
        %2205 = vmatpush1.bf16.msra.mxu0 %v1878
        %2206 = vmatprep.subr.bf16.mxu0 0
        %2207 = vmatpush1.bf16.msra.mxu0 %v1881
        %2208 = vmatprep.subr.bf16.mxu0 0
        %2209 = vmatpush1.bf16.msra.mxu0 %v1884
        %2210 = vmatprep.subr.bf16.mxu0 0
        %2211 = vmatpush1.bf16.msra.mxu0 %v1887
        %2212 = vmatprep.subr.bf16.mxu0 0
        %2213 = vmatpush1.bf16.msra.mxu0 %v1890
        %2214 = vmatprep.subr.bf16.mxu0 0
        %2215 = vmatpush1.bf16.msra.mxu0 %v1893
        %2216 = vmatprep.subr.bf16.mxu0 0
        %2217 = vmatpush1.bf16.msra.mxu0 %v1896
        %2218 = vmatprep.subr.bf16.mxu0 0
        %2219 = vmatpush1.bf16.msra.mxu0 %v1899
        %2220 = vmatprep.subr.bf16.mxu0 0
        %2221 = vmatpush1.bf16.msra.mxu0 0
        %2222 = vmatprep.subr.bf16.mxu0 0
        %2223 = vmatpush1.bf16.msra.mxu0 0
        %2224 = vmatprep.subr.bf16.mxu0 0
        %2225 = vmatpush1.bf16.msra.mxu0 0
        %2226 = vmatprep.subr.bf16.mxu0 0
        %2227 = vmatpush1.bf16.msra.mxu0 0
        %2228 = vmatprep.subr.bf16.mxu0 0
        %2229 = vmatpush1.bf16.msra.mxu0 0
        %2230 = vmatprep.subr.bf16.mxu0 0
        %2231 = vmatpush1.bf16.msra.mxu0 0
        %2232 = vmatprep.subr.bf16.mxu0 0
        %2233 = vmatpush1.bf16.msra.mxu0 0
        %2234 = vmatprep.subr.bf16.mxu0 0
        %2235 = vmatpush1.bf16.msra.mxu0 0
        %2236 = vmatprep.mubr.bf16.mxu0 0
        %2237 = vmatmul.mubr.bf16.gmra.mrb[0].mxu0 %v2196
        %v2238 = vpop.f32.mrb[0].mxu0
        %v2239 = vadd.f32 0.0, %v2238
        %v2240 = vpop.f32.mrb[0].mxu0
        %v2241 = vpop.f32.mrb[0].mxu0
        %v2242 = vadd.f32 0.0, %v2241
        %v2243 = vpop.f32.mrb[0].mxu0
        %2244 = vmatprep.mubr.bf16.mxu0 0
        %2245 = vmatmul.mubr.bf16.gmra.mrb[0].mxu0 %v2197
        %v2246 = vpop.f32.mrb[0].mxu0
        %v2247 = vadd.f32 0.0, %v2246
        %v2248 = vpop.f32.mrb[0].mxu0
        %v2249 = vpop.f32.mrb[0].mxu0
        %v2250 = vadd.f32 0.0, %v2249
        %v2251 = vpop.f32.mrb[0].mxu0
        %2252 = vmatprep.mubr.bf16.mxu0 0
        %2253 = vmatmul.mubr.bf16.gmra.mrb[0].mxu0 %v2198
        %v2254 = vpop.f32.mrb[0].mxu0
        %v2255 = vadd.f32 0.0, %v2254
        %v2256 = vpop.f32.mrb[0].mxu0
        %v2257 = vpop.f32.mrb[0].mxu0
        %v2258 = vadd.f32 0.0, %v2257
        %v2259 = vpop.f32.mrb[0].mxu0
        %2260 = vmatprep.mubr.bf16.mxu0 0
        %2261 = vmatmul.mubr.bf16.gmra.mrb[0].mxu0 %v2199
        %v2262 = vpop.f32.mrb[0].mxu0
        %v2263 = vadd.f32 0.0, %v2262
        %v2264 = vpop.f32.mrb[0].mxu0
        %v2265 = vpop.f32.mrb[0].mxu0
        %v2266 = vadd.f32 0.0, %v2265
        %v2267 = vpop.f32.mrb[0].mxu0
        %2268 = vmatprep.mubr.bf16.mxu0 0
        %2269 = vmatmul.mubr.bf16.gmra.mrb[0].mxu0 %v2200
        %v2270 = vpop.f32.mrb[0].mxu0
        %v2271 = vadd.f32 0.0, %v2270
        %v2272 = vpop.f32.mrb[0].mxu0
        %v2273 = vpop.f32.mrb[0].mxu0
        %v2274 = vadd.f32 0.0, %v2273
        %v2275 = vpop.f32.mrb[0].mxu0
        %2276 = vmatprep.mubr.bf16.mxu0 0
        %2277 = vmatmul.mubr.bf16.gmra.mrb[0].mxu0 %v2201
        %v2278 = vpop.f32.mrb[0].mxu0
        %v2279 = vadd.f32 0.0, %v2278
        %v2280 = vpop.f32.mrb[0].mxu0
        %v2281 = vpop.f32.mrb[0].mxu0
        %v2282 = vadd.f32 0.0, %v2281
        %v2283 = vpop.f32.mrb[0].mxu0
        %2284 = vmatprep.mubr.bf16.mxu0 0
        %2285 = vmatmul.mubr.bf16.gmra.mrb[0].mxu0 %v2202
        %v2286 = vpop.f32.mrb[0].mxu0
        %v2287 = vadd.f32 0.0, %v2286
        %v2288 = vpop.f32.mrb[0].mxu0
        %v2289 = vpop.f32.mrb[0].mxu0
        %v2290 = vadd.f32 0.0, %v2289
        %v2291 = vpop.f32.mrb[0].mxu0
        %2292 = vmatprep.mubr.bf16.mxu0 0
        %2293 = vmatmul.mubr.bf16.gmra.mrb[0].mxu0 %v2203
        %v2294 = vpop.f32.mrb[0].mxu0
        %v2295 = vadd.f32 0.0, %v2294
        %v2296 = vpop.f32.mrb[0].mxu0
        %v2297 = vpop.f32.mrb[0].mxu0
        %v2298 = vadd.f32 0.0, %v2297
        %v2299 = vpop.f32.mrb[0].mxu0
        %2300 = vdwg.mxu0
        %v2301 = vpack.c.bf16 %v2242, %v2239
        %v2302 = vpack.c.bf16 %v2250, %v2247
        %v2303 = vpack.c.bf16 %v2258, %v2255
        %v2304 = vpack.c.bf16 %v2266, %v2263
        %v2305 = vpack.c.bf16 %v2274, %v2271
        %v2306 = vpack.c.bf16 %v2282, %v2279
        %v2307 = vpack.c.bf16 %v2290, %v2287
        %v2308 = vpack.c.bf16 %v2298, %v2295
        %2317 = vrot.lane.b32.xlu0 %v1876, 96
        %v2318 = vpop.permute.xlu0 %2317
        %2319 = vrot.lane.b32.xlu0 %v1879, 96
        %v2320 = vpop.permute.xlu0 %2319
        %2321 = vrot.lane.b32.xlu0 %v1882, 96
        %v2322 = vpop.permute.xlu0 %2321
        %2323 = vrot.lane.b32.xlu0 %v1885, 96
        %v2324 = vpop.permute.xlu0 %2323
        %2325 = vrot.lane.b32.xlu0 %v1888, 96
        %v2326 = vpop.permute.xlu0 %2325
        %2327 = vrot.lane.b32.xlu0 %v1891, 96
        %v2328 = vpop.permute.xlu0 %2327
        %2329 = vrot.lane.b32.xlu0 %v1894, 96
        %v2330 = vpop.permute.xlu0 %2329
        %2331 = vrot.lane.b32.xlu0 %v1897, 96
        %v2332 = vpop.permute.xlu0 %2331
        %2341 = vrot.lane.b32.xlu0 %v1877, 96
        %v2342 = vpop.permute.xlu0 %2341
        %2343 = vrot.lane.b32.xlu0 %v1880, 96
        %v2344 = vpop.permute.xlu0 %2343
        %2345 = vrot.lane.b32.xlu0 %v1883, 96
        %v2346 = vpop.permute.xlu0 %2345
        %2347 = vrot.lane.b32.xlu0 %v1886, 96
        %v2348 = vpop.permute.xlu0 %2347
        %2349 = vrot.lane.b32.xlu0 %v1889, 96
        %v2350 = vpop.permute.xlu0 %2349
        %2351 = vrot.lane.b32.xlu0 %v1892, 96
        %v2352 = vpop.permute.xlu0 %2351
        %2353 = vrot.lane.b32.xlu0 %v1895, 96
        %v2354 = vpop.permute.xlu0 %2353
        %2355 = vrot.lane.b32.xlu0 %v1898, 96
        %v2356 = vpop.permute.xlu0 %2355
        %v2358 = vsel %vm1026, %v2318, 0
        %v2361 = vsel %vm1026, %v2320, 0
        %v2364 = vsel %vm1026, %v2322, 0
        %v2367 = vsel %vm1026, %v2324, 0
        %v2370 = vsel %vm1026, %v2326, 0
        %v2373 = vsel %vm1026, %v2328, 0
        %v2376 = vsel %vm1026, %v2330, 0
        %v2379 = vsel %vm1026, %v2332, 0
        %v2382 = vsel %vm1026, %v2342, 0
        %v2385 = vsel %vm1026, %v2344, 0
        %v2388 = vsel %vm1026, %v2346, 0
        %v2391 = vsel %vm1026, %v2348, 0
        %v2394 = vsel %vm1026, %v2350, 0
        %v2397 = vsel %vm1026, %v2352, 0
        %v2400 = vsel %vm1026, %v2354, 0
        %v2403 = vsel %vm1026, %v2356, 0
        %2405 = vmatprep.subr.bf16.mxu0 0
        %2406 = vmatpush1.bf16.xpose.msra.mxu0 %v2382
        %2407 = vmatprep.subr.bf16.mxu0 0
        %2408 = vmatpush1.bf16.xpose.msra.mxu0 %v2385
        %2409 = vmatprep.subr.bf16.mxu0 0
        %2410 = vmatpush1.bf16.xpose.msra.mxu0 %v2388
        %2411 = vmatprep.subr.bf16.mxu0 0
        %2412 = vmatpush1.bf16.xpose.msra.mxu0 %v2391
        %2413 = vmatprep.subr.bf16.mxu0 0
        %2414 = vmatpush1.bf16.xpose.msra.mxu0 %v2394
        %2415 = vmatprep.subr.bf16.mxu0 0
        %2416 = vmatpush1.bf16.xpose.msra.mxu0 %v2397
        %2417 = vmatprep.subr.bf16.mxu0 0
        %2418 = vmatpush1.bf16.xpose.msra.mxu0 %v2400
        %2419 = vmatprep.subr.bf16.mxu0 0
        %2420 = vmatpush1.bf16.xpose.msra.mxu0 %v2403
        %2421 = vmatprep.subr.bf16.mxu0 0
        %2422 = vmatpush1.bf16.xpose.msra.mxu0 0
        %2423 = vmatprep.subr.bf16.mxu0 0
        %2424 = vmatpush1.bf16.xpose.msra.mxu0 0
        %2425 = vmatprep.subr.bf16.mxu0 0
        %2426 = vmatpush1.bf16.xpose.msra.mxu0 0
        %2427 = vmatprep.subr.bf16.mxu0 0
        %2428 = vmatpush1.bf16.xpose.msra.mxu0 0
        %2429 = vmatprep.subr.bf16.mxu0 0
        %2430 = vmatpush1.bf16.xpose.msra.mxu0 0
        %2431 = vmatprep.subr.bf16.mxu0 0
        %2432 = vmatpush1.bf16.xpose.msra.mxu0 0
        %2433 = vmatprep.subr.bf16.mxu0 0
        %2434 = vmatpush1.bf16.xpose.msra.mxu0 0
        %2435 = vmatprep.subr.bf16.mxu0 0
        %2436 = vmatpush1.bf16.xpose.msra.mxu0 0
        %2437 = vmatprep.mubr.bf16.mxu0 0
        %2438 = vmatmul.mubr.bf16.gmra.mrb[0].mxu0 %v2358
        %v2439 = vpop.f32.mrb[0].mxu0
        %v2440 = vadd.f32 %v1905, %v2439
        %v2441 = vpop.f32.mrb[0].mxu0
        %v2442 = vpop.f32.mrb[0].mxu0
        %v2443 = vadd.f32 %v1905, %v2442
        %v2444 = vpop.f32.mrb[0].mxu0
        %2445 = vmatprep.mubr.bf16.mxu0 0
        %2446 = vmatmul.mubr.bf16.gmra.mrb[0].mxu0 %v2361
        %v2447 = vpop.f32.mrb[0].mxu0
        %v2448 = vadd.f32 %v1905, %v2447
        %v2449 = vpop.f32.mrb[0].mxu0
        %v2450 = vpop.f32.mrb[0].mxu0
        %v2451 = vadd.f32 %v1905, %v2450
        %v2452 = vpop.f32.mrb[0].mxu0
        %2453 = vmatprep.mubr.bf16.mxu0 0
        %2454 = vmatmul.mubr.bf16.gmra.mrb[0].mxu0 %v2364
        %v2455 = vpop.f32.mrb[0].mxu0
        %v2456 = vadd.f32 %v1905, %v2455
        %v2457 = vpop.f32.mrb[0].mxu0
        %v2458 = vpop.f32.mrb[0].mxu0
        %v2459 = vadd.f32 %v1905, %v2458
        %v2460 = vpop.f32.mrb[0].mxu0
        %2461 = vmatprep.mubr.bf16.mxu0 0
        %2462 = vmatmul.mubr.bf16.gmra.mrb[0].mxu0 %v2367
        %v2463 = vpop.f32.mrb[0].mxu0
        %v2464 = vadd.f32 %v1905, %v2463
        %v2465 = vpop.f32.mrb[0].mxu0
        %v2466 = vpop.f32.mrb[0].mxu0
        %v2467 = vadd.f32 %v1905, %v2466
        %v2468 = vpop.f32.mrb[0].mxu0
        %2469 = vmatprep.mubr.bf16.mxu0 0
        %2470 = vmatmul.mubr.bf16.gmra.mrb[0].mxu0 %v2370
        %v2471 = vpop.f32.mrb[0].mxu0
        %v2472 = vadd.f32 %v1905, %v2471
        %v2473 = vpop.f32.mrb[0].mxu0
        %v2474 = vpop.f32.mrb[0].mxu0
        %v2475 = vadd.f32 %v1905, %v2474
        %v2476 = vpop.f32.mrb[0].mxu0
        %2477 = vmatprep.mubr.bf16.mxu0 0
        %2478 = vmatmul.mubr.bf16.gmra.mrb[0].mxu0 %v2373
        %v2479 = vpop.f32.mrb[0].mxu0
        %v2480 = vadd.f32 %v1905, %v2479
        %v2481 = vpop.f32.mrb[0].mxu0
        %v2482 = vpop.f32.mrb[0].mxu0
        %v2483 = vadd.f32 %v1905, %v2482
        %v2484 = vpop.f32.mrb[0].mxu0
        %2485 = vmatprep.mubr.bf16.mxu0 0
        %2486 = vmatmul.mubr.bf16.gmra.mrb[0].mxu0 %v2376
        %v2487 = vpop.f32.mrb[0].mxu0
        %v2488 = vadd.f32 %v1905, %v2487
        %v2489 = vpop.f32.mrb[0].mxu0
        %v2490 = vpop.f32.mrb[0].mxu0
        %v2491 = vadd.f32 %v1905, %v2490
        %v2492 = vpop.f32.mrb[0].mxu0
        %2493 = vmatprep.mubr.bf16.mxu0 0
        %2494 = vmatmul.mubr.bf16.gmra.mrb[0].mxu0 %v2379
        %v2495 = vpop.f32.mrb[0].mxu0
        %v2496 = vadd.f32 %v1905, %v2495
        %v2497 = vpop.f32.mrb[0].mxu0
        %v2498 = vpop.f32.mrb[0].mxu0
        %v2499 = vadd.f32 %v1905, %v2498
        %v2500 = vpop.f32.mrb[0].mxu0
        %2501 = vdwg.mxu0
        %2502 = vmax.xlane.f32.xlu0 %v2440
        %v2503 = vpop.xlane.xlu0 %2502
        %2504 = vmax.xlane.f32.xlu0 %v2443
        %v2505 = vpop.xlane.xlu0 %2504
        %2506 = vmax.xlane.f32.xlu0 %v2448
        %v2507 = vpop.xlane.xlu0 %2506
        %2508 = vmax.xlane.f32.xlu0 %v2451
        %v2509 = vpop.xlane.xlu0 %2508
        %2510 = vmax.xlane.f32.xlu0 %v2456
        %v2511 = vpop.xlane.xlu0 %2510
        %2512 = vmax.xlane.f32.xlu0 %v2459
        %v2513 = vpop.xlane.xlu0 %2512
        %2514 = vmax.xlane.f32.xlu0 %v2464
        %v2515 = vpop.xlane.xlu0 %2514
        %2516 = vmax.xlane.f32.xlu0 %v2467
        %v2517 = vpop.xlane.xlu0 %2516
        %2518 = vmax.xlane.f32.xlu0 %v2472
        %v2519 = vpop.xlane.xlu0 %2518
        %2520 = vmax.xlane.f32.xlu0 %v2475
        %v2521 = vpop.xlane.xlu0 %2520
        %2522 = vmax.xlane.f32.xlu0 %v2480
        %v2523 = vpop.xlane.xlu0 %2522
        %2524 = vmax.xlane.f32.xlu0 %v2483
        %v2525 = vpop.xlane.xlu0 %2524
        %2526 = vmax.xlane.f32.xlu0 %v2488
        %v2527 = vpop.xlane.xlu0 %2526
        %2528 = vmax.xlane.f32.xlu0 %v2491
        %v2529 = vpop.xlane.xlu0 %2528
        %2530 = vmax.xlane.f32.xlu0 %v2496
        %v2531 = vpop.xlane.xlu0 %2530
        %2532 = vmax.xlane.f32.xlu0 %v2499
        %v2533 = vpop.xlane.xlu0 %2532
        %v2534 = vsub.f32 %v2440, %v2503
        %v2535 = vsub.f32 %v2443, %v2505
        %v2536 = vsub.f32 %v2448, %v2507
        %v2537 = vsub.f32 %v2451, %v2509
        %v2538 = vsub.f32 %v2456, %v2511
        %v2539 = vsub.f32 %v2459, %v2513
        %v2540 = vsub.f32 %v2464, %v2515
        %v2541 = vsub.f32 %v2467, %v2517
        %v2542 = vsub.f32 %v2472, %v2519
        %v2543 = vsub.f32 %v2475, %v2521
        %v2544 = vsub.f32 %v2480, %v2523
        %v2545 = vsub.f32 %v2483, %v2525
        %v2546 = vsub.f32 %v2488, %v2527
        %v2547 = vsub.f32 %v2491, %v2529
        %v2548 = vsub.f32 %v2496, %v2531
        %v2549 = vsub.f32 %v2499, %v2533
        %v2550 = vmul.f32 %v2534, 1.442695
        %v2551 = vpow.pop %v2550
        %v2552 = vmul.f32 %v2535, 1.442695
        %v2553 = vpow.pop %v2552
        %v2554 = vmul.f32 %v2536, 1.442695
        %v2555 = vpow.pop %v2554
        %v2556 = vmul.f32 %v2537, 1.442695
        %v2557 = vpow.pop %v2556
        %v2558 = vmul.f32 %v2538, 1.442695
        %v2559 = vpow.pop %v2558
        %v2560 = vmul.f32 %v2539, 1.442695
        %v2561 = vpow.pop %v2560
        %v2562 = vmul.f32 %v2540, 1.442695
        %v2563 = vpow.pop %v2562
        %v2564 = vmul.f32 %v2541, 1.442695
        %v2565 = vpow.pop %v2564
        %v2566 = vmul.f32 %v2542, 1.442695
        %v2567 = vpow.pop %v2566
        %v2568 = vmul.f32 %v2543, 1.442695
        %v2569 = vpow.pop %v2568
        %v2570 = vmul.f32 %v2544, 1.442695
        %v2571 = vpow.pop %v2570
        %v2572 = vmul.f32 %v2545, 1.442695
        %v2573 = vpow.pop %v2572
        %v2574 = vmul.f32 %v2546, 1.442695
        %v2575 = vpow.pop %v2574
        %v2576 = vmul.f32 %v2547, 1.442695
        %v2577 = vpow.pop %v2576
        %v2578 = vmul.f32 %v2548, 1.442695
        %v2579 = vpow.pop %v2578
        %v2580 = vmul.f32 %v2549, 1.442695
        %v2581 = vpow.pop %v2580
        %2582 = vadd.xlane.f32.xlu0 %v2551
        %v2583 = vpop.xlane.xlu0 %2582
        %2584 = vadd.xlane.f32.xlu0 %v2553
        %v2585 = vpop.xlane.xlu0 %2584
        %2586 = vadd.xlane.f32.xlu0 %v2555
        %v2587 = vpop.xlane.xlu0 %2586
        %2588 = vadd.xlane.f32.xlu0 %v2557
        %v2589 = vpop.xlane.xlu0 %2588
        %2590 = vadd.xlane.f32.xlu0 %v2559
        %v2591 = vpop.xlane.xlu0 %2590
        %2592 = vadd.xlane.f32.xlu0 %v2561
        %v2593 = vpop.xlane.xlu0 %2592
        %2594 = vadd.xlane.f32.xlu0 %v2563
        %v2595 = vpop.xlane.xlu0 %2594
        %2596 = vadd.xlane.f32.xlu0 %v2565
        %v2597 = vpop.xlane.xlu0 %2596
        %2598 = vadd.xlane.f32.xlu0 %v2567
        %v2599 = vpop.xlane.xlu0 %2598
        %2600 = vadd.xlane.f32.xlu0 %v2569
        %v2601 = vpop.xlane.xlu0 %2600
        %2602 = vadd.xlane.f32.xlu0 %v2571
        %v2603 = vpop.xlane.xlu0 %2602
        %2604 = vadd.xlane.f32.xlu0 %v2573
        %v2605 = vpop.xlane.xlu0 %2604
        %2606 = vadd.xlane.f32.xlu0 %v2575
        %v2607 = vpop.xlane.xlu0 %2606
        %2608 = vadd.xlane.f32.xlu0 %v2577
        %v2609 = vpop.xlane.xlu0 %2608
        %2610 = vadd.xlane.f32.xlu0 %v2579
        %v2611 = vpop.xlane.xlu0 %2610
        %2612 = vadd.xlane.f32.xlu0 %v2581
        %v2613 = vpop.xlane.xlu0 %2612
        %v2614 = vrcp.pop %v2583
        %v2615 = vrcp.pop %v2585
        %v2616 = vrcp.pop %v2587
        %v2617 = vrcp.pop %v2589
        %v2618 = vrcp.pop %v2591
        %v2619 = vrcp.pop %v2593
        %v2620 = vrcp.pop %v2595
        %v2621 = vrcp.pop %v2597
        %v2622 = vrcp.pop %v2599
        %v2623 = vrcp.pop %v2601
        %v2624 = vrcp.pop %v2603
        %v2625 = vrcp.pop %v2605
        %v2626 = vrcp.pop %v2607
        %v2627 = vrcp.pop %v2609
        %v2628 = vrcp.pop %v2611
        %v2629 = vrcp.pop %v2613
        %v2630 = vmul.f32 %v2551, %v2614
        %v2631 = vmul.f32 %v2553, %v2615
        %v2632 = vmul.f32 %v2555, %v2616
        %v2633 = vmul.f32 %v2557, %v2617
        %v2634 = vmul.f32 %v2559, %v2618
        %v2635 = vmul.f32 %v2561, %v2619
        %v2636 = vmul.f32 %v2563, %v2620
        %v2637 = vmul.f32 %v2565, %v2621
        %v2638 = vmul.f32 %v2567, %v2622
        %v2639 = vmul.f32 %v2569, %v2623
        %v2640 = vmul.f32 %v2571, %v2624
        %v2641 = vmul.f32 %v2573, %v2625
        %v2642 = vmul.f32 %v2575, %v2626
        %v2643 = vmul.f32 %v2577, %v2627
        %v2644 = vmul.f32 %v2579, %v2628
        %v2645 = vmul.f32 %v2581, %v2629
        %v2646 = vpack.c.bf16 %v2631, %v2630
        %v2647 = vpack.c.bf16 %v2633, %v2632
        %v2648 = vpack.c.bf16 %v2635, %v2634
        %v2649 = vpack.c.bf16 %v2637, %v2636
        %v2650 = vpack.c.bf16 %v2639, %v2638
        %v2651 = vpack.c.bf16 %v2641, %v2640
        %v2652 = vpack.c.bf16 %v2643, %v2642
        %v2653 = vpack.c.bf16 %v2645, %v2644
        %2662 = vrot.lane.b32.xlu0 %v1878, 96
        %v2663 = vpop.permute.xlu0 %2662
        %2664 = vrot.lane.b32.xlu0 %v1881, 96
        %v2665 = vpop.permute.xlu0 %2664
        %2666 = vrot.lane.b32.xlu0 %v1884, 96
        %v2667 = vpop.permute.xlu0 %2666
        %2668 = vrot.lane.b32.xlu0 %v1887, 96
        %v2669 = vpop.permute.xlu0 %2668
        %2670 = vrot.lane.b32.xlu0 %v1890, 96
        %v2671 = vpop.permute.xlu0 %2670
        %2672 = vrot.lane.b32.xlu0 %v1893, 96
        %v2673 = vpop.permute.xlu0 %2672
        %2674 = vrot.lane.b32.xlu0 %v1896, 96
        %v2675 = vpop.permute.xlu0 %2674
        %2676 = vrot.lane.b32.xlu0 %v1899, 96
        %v2677 = vpop.permute.xlu0 %2676
        %2686 = vmatprep.subr.bf16.mxu0 0
        %2687 = vmatpush1.bf16.msra.mxu0 %v2663
        %2688 = vmatprep.subr.bf16.mxu0 0
        %2689 = vmatpush1.bf16.msra.mxu0 %v2665
        %2690 = vmatprep.subr.bf16.mxu0 0
        %2691 = vmatpush1.bf16.msra.mxu0 %v2667
        %2692 = vmatprep.subr.bf16.mxu0 0
        %2693 = vmatpush1.bf16.msra.mxu0 %v2669
        %2694 = vmatprep.subr.bf16.mxu0 0
        %2695 = vmatpush1.bf16.msra.mxu0 %v2671
        %2696 = vmatprep.subr.bf16.mxu0 0
        %2697 = vmatpush1.bf16.msra.mxu0 %v2673
        %2698 = vmatprep.subr.bf16.mxu0 0
        %2699 = vmatpush1.bf16.msra.mxu0 %v2675
        %2700 = vmatprep.subr.bf16.mxu0 0
        %2701 = vmatpush1.bf16.msra.mxu0 %v2677
        %2702 = vmatprep.subr.bf16.mxu0 0
        %2703 = vmatpush1.bf16.msra.mxu0 0
        %2704 = vmatprep.subr.bf16.mxu0 0
        %2705 = vmatpush1.bf16.msra.mxu0 0
        %2706 = vmatprep.subr.bf16.mxu0 0
        %2707 = vmatpush1.bf16.msra.mxu0 0
        %2708 = vmatprep.subr.bf16.mxu0 0
        %2709 = vmatpush1.bf16.msra.mxu0 0
        %2710 = vmatprep.subr.bf16.mxu0 0
        %2711 = vmatpush1.bf16.msra.mxu0 0
        %2712 = vmatprep.subr.bf16.mxu0 0
        %2713 = vmatpush1.bf16.msra.mxu0 0
        %2714 = vmatprep.subr.bf16.mxu0 0
        %2715 = vmatpush1.bf16.msra.mxu0 0
        %2716 = vmatprep.subr.bf16.mxu0 0
        %2717 = vmatpush1.bf16.msra.mxu0 0
        %2718 = vmatprep.mubr.bf16.mxu0 0
        %2719 = vmatmul.mubr.bf16.gmra.mrb[0].mxu0 %v2646
        %v2720 = vpop.f32.mrb[0].mxu0
        %v2721 = vadd.f32 0.0, %v2720
        %v2722 = vpop.f32.mrb[0].mxu0
        %v2723 = vpop.f32.mrb[0].mxu0
        %v2724 = vadd.f32 0.0, %v2723
        %v2725 = vpop.f32.mrb[0].mxu0
        %2726 = vmatprep.mubr.bf16.mxu0 0
        %2727 = vmatmul.mubr.bf16.gmra.mrb[0].mxu0 %v2647
        %v2728 = vpop.f32.mrb[0].mxu0
        %v2729 = vadd.f32 0.0, %v2728
        %v2730 = vpop.f32.mrb[0].mxu0
        %v2731 = vpop.f32.mrb[0].mxu0
        %v2732 = vadd.f32 0.0, %v2731
        %v2733 = vpop.f32.mrb[0].mxu0
        %2734 = vmatprep.mubr.bf16.mxu0 0
        %2735 = vmatmul.mubr.bf16.gmra.mrb[0].mxu0 %v2648
        %v2736 = vpop.f32.mrb[0].mxu0
        %v2737 = vadd.f32 0.0, %v2736
        %v2738 = vpop.f32.mrb[0].mxu0
        %v2739 = vpop.f32.mrb[0].mxu0
        %v2740 = vadd.f32 0.0, %v2739
        %v2741 = vpop.f32.mrb[0].mxu0
        %2742 = vmatprep.mubr.bf16.mxu0 0
        %2743 = vmatmul.mubr.bf16.gmra.mrb[0].mxu0 %v2649
        %v2744 = vpop.f32.mrb[0].mxu0
        %v2745 = vadd.f32 0.0, %v2744
        %v2746 = vpop.f32.mrb[0].mxu0
        %v2747 = vpop.f32.mrb[0].mxu0
        %v2748 = vadd.f32 0.0, %v2747
        %v2749 = vpop.f32.mrb[0].mxu0
        %2750 = vmatprep.mubr.bf16.mxu0 0
        %2751 = vmatmul.mubr.bf16.gmra.mrb[0].mxu0 %v2650
        %v2752 = vpop.f32.mrb[0].mxu0
        %v2753 = vadd.f32 0.0, %v2752
        %v2754 = vpop.f32.mrb[0].mxu0
        %v2755 = vpop.f32.mrb[0].mxu0
        %v2756 = vadd.f32 0.0, %v2755
        %v2757 = vpop.f32.mrb[0].mxu0
        %2758 = vmatprep.mubr.bf16.mxu0 0
        %2759 = vmatmul.mubr.bf16.gmra.mrb[0].mxu0 %v2651
        %v2760 = vpop.f32.mrb[0].mxu0
        %v2761 = vadd.f32 0.0, %v2760
        %v2762 = vpop.f32.mrb[0].mxu0
        %v2763 = vpop.f32.mrb[0].mxu0
        %v2764 = vadd.f32 0.0, %v2763
        %v2765 = vpop.f32.mrb[0].mxu0
        %2766 = vmatprep.mubr.bf16.mxu0 0
        %2767 = vmatmul.mubr.bf16.gmra.mrb[0].mxu0 %v2652
        %v2768 = vpop.f32.mrb[0].mxu0
        %v2769 = vadd.f32 0.0, %v2768
        %v2770 = vpop.f32.mrb[0].mxu0
        %v2771 = vpop.f32.mrb[0].mxu0
        %v2772 = vadd.f32 0.0, %v2771
        %v2773 = vpop.f32.mrb[0].mxu0
        %2774 = vmatprep.mubr.bf16.mxu0 0
        %2775 = vmatmul.mubr.bf16.gmra.mrb[0].mxu0 %v2653
        %v2776 = vpop.f32.mrb[0].mxu0
        %v2777 = vadd.f32 0.0, %v2776
        %v2778 = vpop.f32.mrb[0].mxu0
        %v2779 = vpop.f32.mrb[0].mxu0
        %v2780 = vadd.f32 0.0, %v2779
        %v2781 = vpop.f32.mrb[0].mxu0
        %2782 = vdwg.mxu0
        %v2783 = vpack.c.bf16 %v2724, %v2721
        %v2784 = vpack.c.bf16 %v2732, %v2729
        %v2785 = vpack.c.bf16 %v2740, %v2737
        %v2786 = vpack.c.bf16 %v2748, %v2745
        %v2787 = vpack.c.bf16 %v2756, %v2753
        %v2788 = vpack.c.bf16 %v2764, %v2761
        %v2789 = vpack.c.bf16 %v2772, %v2769
        %v2790 = vpack.c.bf16 %v2780, %v2777
        %2791 = vrot.lane.b32.xlu0 %v1876, 64
        %v2792 = vpop.permute.xlu0 %2791
        %2793 = vrot.lane.b32.xlu0 %v1879, 64
        %v2794 = vpop.permute.xlu0 %2793
        %2795 = vrot.lane.b32.xlu0 %v1882, 64
        %v2796 = vpop.permute.xlu0 %2795
        %2797 = vrot.lane.b32.xlu0 %v1885, 64
        %v2798 = vpop.permute.xlu0 %2797
        %2799 = vrot.lane.b32.xlu0 %v1888, 64
        %v2800 = vpop.permute.xlu0 %2799
        %2801 = vrot.lane.b32.xlu0 %v1891, 64
        %v2802 = vpop.permute.xlu0 %2801
        %2803 = vrot.lane.b32.xlu0 %v1894, 64
        %v2804 = vpop.permute.xlu0 %2803
        %2805 = vrot.lane.b32.xlu0 %v1897, 64
        %v2806 = vpop.permute.xlu0 %2805
        %2807 = vrot.lane.b32.xlu0 %v1877, 64
        %v2808 = vpop.permute.xlu0 %2807
        %2809 = vrot.lane.b32.xlu0 %v1880, 64
        %v2810 = vpop.permute.xlu0 %2809
        %2811 = vrot.lane.b32.xlu0 %v1883, 64
        %v2812 = vpop.permute.xlu0 %2811
        %2813 = vrot.lane.b32.xlu0 %v1886, 64
        %v2814 = vpop.permute.xlu0 %2813
        %2815 = vrot.lane.b32.xlu0 %v1889, 64
        %v2816 = vpop.permute.xlu0 %2815
        %2817 = vrot.lane.b32.xlu0 %v1892, 64
        %v2818 = vpop.permute.xlu0 %2817
        %2819 = vrot.lane.b32.xlu0 %v1895, 64
        %v2820 = vpop.permute.xlu0 %2819
        %2821 = vrot.lane.b32.xlu0 %v1898, 64
        %v2822 = vpop.permute.xlu0 %2821
        %v2824 = vsel %vm1026, %v2792, 0
        %v2827 = vsel %vm1026, %v2794, 0
        %v2830 = vsel %vm1026, %v2796, 0
        %v2833 = vsel %vm1026, %v2798, 0
        %v2836 = vsel %vm1026, %v2800, 0
        %v2839 = vsel %vm1026, %v2802, 0
        %v2842 = vsel %vm1026, %v2804, 0
        %v2845 = vsel %vm1026, %v2806, 0
        %v2848 = vsel %vm1026, %v2808, 0
        %v2851 = vsel %vm1026, %v2810, 0
        %v2854 = vsel %vm1026, %v2812, 0
        %v2857 = vsel %vm1026, %v2814, 0
        %v2860 = vsel %vm1026, %v2816, 0
        %v2863 = vsel %vm1026, %v2818, 0
        %v2866 = vsel %vm1026, %v2820, 0
        %v2869 = vsel %vm1026, %v2822, 0
        %2871 = vmatprep.subr.bf16.mxu0 0
        %2872 = vmatpush1.bf16.xpose.msra.mxu0 %v2848
        %2873 = vmatprep.subr.bf16.mxu0 0
        %2874 = vmatpush1.bf16.xpose.msra.mxu0 %v2851
        %2875 = vmatprep.subr.bf16.mxu0 0
        %2876 = vmatpush1.bf16.xpose.msra.mxu0 %v2854
        %2877 = vmatprep.subr.bf16.mxu0 0
        %2878 = vmatpush1.bf16.xpose.msra.mxu0 %v2857
        %2879 = vmatprep.subr.bf16.mxu0 0
        %2880 = vmatpush1.bf16.xpose.msra.mxu0 %v2860
        %2881 = vmatprep.subr.bf16.mxu0 0
        %2882 = vmatpush1.bf16.xpose.msra.mxu0 %v2863
        %2883 = vmatprep.subr.bf16.mxu0 0
        %2884 = vmatpush1.bf16.xpose.msra.mxu0 %v2866
        %2885 = vmatprep.subr.bf16.mxu0 0
        %2886 = vmatpush1.bf16.xpose.msra.mxu0 %v2869
        %2887 = vmatprep.subr.bf16.mxu0 0
        %2888 = vmatpush1.bf16.xpose.msra.mxu0 0
        %2889 = vmatprep.subr.bf16.mxu0 0
        %2890 = vmatpush1.bf16.xpose.msra.mxu0 0
        %2891 = vmatprep.subr.bf16.mxu0 0
        %2892 = vmatpush1.bf16.xpose.msra.mxu0 0
        %2893 = vmatprep.subr.bf16.mxu0 0
        %2894 = vmatpush1.bf16.xpose.msra.mxu0 0
        %2895 = vmatprep.subr.bf16.mxu0 0
        %2896 = vmatpush1.bf16.xpose.msra.mxu0 0
        %2897 = vmatprep.subr.bf16.mxu0 0
        %2898 = vmatpush1.bf16.xpose.msra.mxu0 0
        %2899 = vmatprep.subr.bf16.mxu0 0
        %2900 = vmatpush1.bf16.xpose.msra.mxu0 0
        %2901 = vmatprep.subr.bf16.mxu0 0
        %2902 = vmatpush1.bf16.xpose.msra.mxu0 0
        %2903 = vmatprep.mubr.bf16.mxu0 0
        %2904 = vmatmul.mubr.bf16.gmra.mrb[0].mxu0 %v2824
        %v2905 = vpop.f32.mrb[0].mxu0
        %v2906 = vadd.f32 %v1905, %v2905
        %v2907 = vpop.f32.mrb[0].mxu0
        %v2908 = vpop.f32.mrb[0].mxu0
        %v2909 = vadd.f32 %v1905, %v2908
        %v2910 = vpop.f32.mrb[0].mxu0
        %2911 = vmatprep.mubr.bf16.mxu0 0
        %2912 = vmatmul.mubr.bf16.gmra.mrb[0].mxu0 %v2827
        %v2913 = vpop.f32.mrb[0].mxu0
        %v2914 = vadd.f32 %v1905, %v2913
        %v2915 = vpop.f32.mrb[0].mxu0
        %v2916 = vpop.f32.mrb[0].mxu0
        %v2917 = vadd.f32 %v1905, %v2916
        %v2918 = vpop.f32.mrb[0].mxu0
        %2919 = vmatprep.mubr.bf16.mxu0 0
        %2920 = vmatmul.mubr.bf16.gmra.mrb[0].mxu0 %v2830
        %v2921 = vpop.f32.mrb[0].mxu0
        %v2922 = vadd.f32 %v1905, %v2921
        %v2923 = vpop.f32.mrb[0].mxu0
        %v2924 = vpop.f32.mrb[0].mxu0
        %v2925 = vadd.f32 %v1905, %v2924
        %v2926 = vpop.f32.mrb[0].mxu0
        %2927 = vmatprep.mubr.bf16.mxu0 0
        %2928 = vmatmul.mubr.bf16.gmra.mrb[0].mxu0 %v2833
        %v2929 = vpop.f32.mrb[0].mxu0
        %v2930 = vadd.f32 %v1905, %v2929
        %v2931 = vpop.f32.mrb[0].mxu0
        %v2932 = vpop.f32.mrb[0].mxu0
        %v2933 = vadd.f32 %v1905, %v2932
        %v2934 = vpop.f32.mrb[0].mxu0
        %2935 = vmatprep.mubr.bf16.mxu0 0
        %2936 = vmatmul.mubr.bf16.gmra.mrb[0].mxu0 %v2836
        %v2937 = vpop.f32.mrb[0].mxu0
        %v2938 = vadd.f32 %v1905, %v2937
        %v2939 = vpop.f32.mrb[0].mxu0
        %v2940 = vpop.f32.mrb[0].mxu0
        %v2941 = vadd.f32 %v1905, %v2940
        %v2942 = vpop.f32.mrb[0].mxu0
        %2943 = vmatprep.mubr.bf16.mxu0 0
        %2944 = vmatmul.mubr.bf16.gmra.mrb[0].mxu0 %v2839
        %v2945 = vpop.f32.mrb[0].mxu0
        %v2946 = vadd.f32 %v1905, %v2945
        %v2947 = vpop.f32.mrb[0].mxu0
        %v2948 = vpop.f32.mrb[0].mxu0
        %v2949 = vadd.f32 %v1905, %v2948
        %v2950 = vpop.f32.mrb[0].mxu0
        %2951 = vmatprep.mubr.bf16.mxu0 0
        %2952 = vmatmul.mubr.bf16.gmra.mrb[0].mxu0 %v2842
        %v2953 = vpop.f32.mrb[0].mxu0
        %v2954 = vadd.f32 %v1905, %v2953
        %v2955 = vpop.f32.mrb[0].mxu0
        %v2956 = vpop.f32.mrb[0].mxu0
        %v2957 = vadd.f32 %v1905, %v2956
        %v2958 = vpop.f32.mrb[0].mxu0
        %2959 = vmatprep.mubr.bf16.mxu0 0
        %2960 = vmatmul.mubr.bf16.gmra.mrb[0].mxu0 %v2845
        %v2961 = vpop.f32.mrb[0].mxu0
        %v2962 = vadd.f32 %v1905, %v2961
        %v2963 = vpop.f32.mrb[0].mxu0
        %v2964 = vpop.f32.mrb[0].mxu0
        %v2965 = vadd.f32 %v1905, %v2964
        %v2966 = vpop.f32.mrb[0].mxu0
        %2967 = vdwg.mxu0
        %2968 = vmax.xlane.f32.xlu0 %v2906
        %v2969 = vpop.xlane.xlu0 %2968
        %2970 = vmax.xlane.f32.xlu0 %v2909
        %v2971 = vpop.xlane.xlu0 %2970
        %2972 = vmax.xlane.f32.xlu0 %v2914
        %v2973 = vpop.xlane.xlu0 %2972
        %2974 = vmax.xlane.f32.xlu0 %v2917
        %v2975 = vpop.xlane.xlu0 %2974
        %2976 = vmax.xlane.f32.xlu0 %v2922
        %v2977 = vpop.xlane.xlu0 %2976
        %2978 = vmax.xlane.f32.xlu0 %v2925
        %v2979 = vpop.xlane.xlu0 %2978
        %2980 = vmax.xlane.f32.xlu0 %v2930
        %v2981 = vpop.xlane.xlu0 %2980
        %2982 = vmax.xlane.f32.xlu0 %v2933
        %v2983 = vpop.xlane.xlu0 %2982
        %2984 = vmax.xlane.f32.xlu0 %v2938
        %v2985 = vpop.xlane.xlu0 %2984
        %2986 = vmax.xlane.f32.xlu0 %v2941
        %v2987 = vpop.xlane.xlu0 %2986
        %2988 = vmax.xlane.f32.xlu0 %v2946
        %v2989 = vpop.xlane.xlu0 %2988
        %2990 = vmax.xlane.f32.xlu0 %v2949
        %v2991 = vpop.xlane.xlu0 %2990
        %2992 = vmax.xlane.f32.xlu0 %v2954
        %v2993 = vpop.xlane.xlu0 %2992
        %2994 = vmax.xlane.f32.xlu0 %v2957
        %v2995 = vpop.xlane.xlu0 %2994
        %2996 = vmax.xlane.f32.xlu0 %v2962
        %v2997 = vpop.xlane.xlu0 %2996
        %2998 = vmax.xlane.f32.xlu0 %v2965
        %v2999 = vpop.xlane.xlu0 %2998
        %v3000 = vsub.f32 %v2906, %v2969
        %v3001 = vsub.f32 %v2909, %v2971
        %v3002 = vsub.f32 %v2914, %v2973
        %v3003 = vsub.f32 %v2917, %v2975
        %v3004 = vsub.f32 %v2922, %v2977
        %v3005 = vsub.f32 %v2925, %v2979
        %v3006 = vsub.f32 %v2930, %v2981
        %v3007 = vsub.f32 %v2933, %v2983
        %v3008 = vsub.f32 %v2938, %v2985
        %v3009 = vsub.f32 %v2941, %v2987
        %v3010 = vsub.f32 %v2946, %v2989
        %v3011 = vsub.f32 %v2949, %v2991
        %v3012 = vsub.f32 %v2954, %v2993
        %v3013 = vsub.f32 %v2957, %v2995
        %v3014 = vsub.f32 %v2962, %v2997
        %v3015 = vsub.f32 %v2965, %v2999
        %v3016 = vmul.f32 %v3000, 1.442695
        %v3017 = vpow.pop %v3016
        %v3018 = vmul.f32 %v3001, 1.442695
        %v3019 = vpow.pop %v3018
        %v3020 = vmul.f32 %v3002, 1.442695
        %v3021 = vpow.pop %v3020
        %v3022 = vmul.f32 %v3003, 1.442695
        %v3023 = vpow.pop %v3022
        %v3024 = vmul.f32 %v3004, 1.442695
        %v3025 = vpow.pop %v3024
        %v3026 = vmul.f32 %v3005, 1.442695
        %v3027 = vpow.pop %v3026
        %v3028 = vmul.f32 %v3006, 1.442695
        %v3029 = vpow.pop %v3028
        %v3030 = vmul.f32 %v3007, 1.442695
        %v3031 = vpow.pop %v3030
        %v3032 = vmul.f32 %v3008, 1.442695
        %v3033 = vpow.pop %v3032
        %v3034 = vmul.f32 %v3009, 1.442695
        %v3035 = vpow.pop %v3034
        %v3036 = vmul.f32 %v3010, 1.442695
        %v3037 = vpow.pop %v3036
        %v3038 = vmul.f32 %v3011, 1.442695
        %v3039 = vpow.pop %v3038
        %v3040 = vmul.f32 %v3012, 1.442695
        %v3041 = vpow.pop %v3040
        %v3042 = vmul.f32 %v3013, 1.442695
        %v3043 = vpow.pop %v3042
        %v3044 = vmul.f32 %v3014, 1.442695
        %v3045 = vpow.pop %v3044
        %v3046 = vmul.f32 %v3015, 1.442695
        %v3047 = vpow.pop %v3046
        %3048 = vadd.xlane.f32.xlu0 %v3017
        %v3049 = vpop.xlane.xlu0 %3048
        %3050 = vadd.xlane.f32.xlu0 %v3019
        %v3051 = vpop.xlane.xlu0 %3050
        %3052 = vadd.xlane.f32.xlu0 %v3021
        %v3053 = vpop.xlane.xlu0 %3052
        %3054 = vadd.xlane.f32.xlu0 %v3023
        %v3055 = vpop.xlane.xlu0 %3054
        %3056 = vadd.xlane.f32.xlu0 %v3025
        %v3057 = vpop.xlane.xlu0 %3056
        %3058 = vadd.xlane.f32.xlu0 %v3027
        %v3059 = vpop.xlane.xlu0 %3058
        %3060 = vadd.xlane.f32.xlu0 %v3029
        %v3061 = vpop.xlane.xlu0 %3060
        %3062 = vadd.xlane.f32.xlu0 %v3031
        %v3063 = vpop.xlane.xlu0 %3062
        %3064 = vadd.xlane.f32.xlu0 %v3033
        %v3065 = vpop.xlane.xlu0 %3064
        %3066 = vadd.xlane.f32.xlu0 %v3035
        %v3067 = vpop.xlane.xlu0 %3066
        %3068 = vadd.xlane.f32.xlu0 %v3037
        %v3069 = vpop.xlane.xlu0 %3068
        %3070 = vadd.xlane.f32.xlu0 %v3039
        %v3071 = vpop.xlane.xlu0 %3070
        %3072 = vadd.xlane.f32.xlu0 %v3041
        %v3073 = vpop.xlane.xlu0 %3072
        %3074 = vadd.xlane.f32.xlu0 %v3043
        %v3075 = vpop.xlane.xlu0 %3074
        %3076 = vadd.xlane.f32.xlu0 %v3045
        %v3077 = vpop.xlane.xlu0 %3076
        %3078 = vadd.xlane.f32.xlu0 %v3047
        %v3079 = vpop.xlane.xlu0 %3078
        %v3080 = vrcp.pop %v3049
        %v3081 = vrcp.pop %v3051
        %v3082 = vrcp.pop %v3053
        %v3083 = vrcp.pop %v3055
        %v3084 = vrcp.pop %v3057
        %v3085 = vrcp.pop %v3059
        %v3086 = vrcp.pop %v3061
        %v3087 = vrcp.pop %v3063
        %v3088 = vrcp.pop %v3065
        %v3089 = vrcp.pop %v3067
        %v3090 = vrcp.pop %v3069
        %v3091 = vrcp.pop %v3071
        %v3092 = vrcp.pop %v3073
        %v3093 = vrcp.pop %v3075
        %v3094 = vrcp.pop %v3077
        %v3095 = vrcp.pop %v3079
        %v3096 = vmul.f32 %v3017, %v3080
        %v3097 = vmul.f32 %v3019, %v3081
        %v3098 = vmul.f32 %v3021, %v3082
        %v3099 = vmul.f32 %v3023, %v3083
        %v3100 = vmul.f32 %v3025, %v3084
        %v3101 = vmul.f32 %v3027, %v3085
        %v3102 = vmul.f32 %v3029, %v3086
        %v3103 = vmul.f32 %v3031, %v3087
        %v3104 = vmul.f32 %v3033, %v3088
        %v3105 = vmul.f32 %v3035, %v3089
        %v3106 = vmul.f32 %v3037, %v3090
        %v3107 = vmul.f32 %v3039, %v3091
        %v3108 = vmul.f32 %v3041, %v3092
        %v3109 = vmul.f32 %v3043, %v3093
        %v3110 = vmul.f32 %v3045, %v3094
        %v3111 = vmul.f32 %v3047, %v3095
        %v3112 = vpack.c.bf16 %v3097, %v3096
        %v3113 = vpack.c.bf16 %v3099, %v3098
        %v3114 = vpack.c.bf16 %v3101, %v3100
        %v3115 = vpack.c.bf16 %v3103, %v3102
        %v3116 = vpack.c.bf16 %v3105, %v3104
        %v3117 = vpack.c.bf16 %v3107, %v3106
        %v3118 = vpack.c.bf16 %v3109, %v3108
        %v3119 = vpack.c.bf16 %v3111, %v3110
        %3120 = vrot.lane.b32.xlu0 %v1878, 64
        %v3121 = vpop.permute.xlu0 %3120
        %3122 = vrot.lane.b32.xlu0 %v1881, 64
        %v3123 = vpop.permute.xlu0 %3122
        %3124 = vrot.lane.b32.xlu0 %v1884, 64
        %v3125 = vpop.permute.xlu0 %3124
        %3126 = vrot.lane.b32.xlu0 %v1887, 64
        %v3127 = vpop.permute.xlu0 %3126
        %3128 = vrot.lane.b32.xlu0 %v1890, 64
        %v3129 = vpop.permute.xlu0 %3128
        %3130 = vrot.lane.b32.xlu0 %v1893, 64
        %v3131 = vpop.permute.xlu0 %3130
        %3132 = vrot.lane.b32.xlu0 %v1896, 64
        %v3133 = vpop.permute.xlu0 %3132
        %3134 = vrot.lane.b32.xlu0 %v1899, 64
        %v3135 = vpop.permute.xlu0 %3134
        %3144 = vmatprep.subr.bf16.mxu0 0
        %3145 = vmatpush1.bf16.msra.mxu0 %v3121
        %3146 = vmatprep.subr.bf16.mxu0 0
        %3147 = vmatpush1.bf16.msra.mxu0 %v3123
        %3148 = vmatprep.subr.bf16.mxu0 0
        %3149 = vmatpush1.bf16.msra.mxu0 %v3125
        %3150 = vmatprep.subr.bf16.mxu0 0
        %3151 = vmatpush1.bf16.msra.mxu0 %v3127
        %3152 = vmatprep.subr.bf16.mxu0 0
        %3153 = vmatpush1.bf16.msra.mxu0 %v3129
        %3154 = vmatprep.subr.bf16.mxu0 0
        %3155 = vmatpush1.bf16.msra.mxu0 %v3131
        %3156 = vmatprep.subr.bf16.mxu0 0
        %3157 = vmatpush1.bf16.msra.mxu0 %v3133
        %3158 = vmatprep.subr.bf16.mxu0 0
        %3159 = vmatpush1.bf16.msra.mxu0 %v3135
        %3160 = vmatprep.subr.bf16.mxu0 0
        %3161 = vmatpush1.bf16.msra.mxu0 0
        %3162 = vmatprep.subr.bf16.mxu0 0
        %3163 = vmatpush1.bf16.msra.mxu0 0
        %3164 = vmatprep.subr.bf16.mxu0 0
        %3165 = vmatpush1.bf16.msra.mxu0 0
        %3166 = vmatprep.subr.bf16.mxu0 0
        %3167 = vmatpush1.bf16.msra.mxu0 0
        %3168 = vmatprep.subr.bf16.mxu0 0
        %3169 = vmatpush1.bf16.msra.mxu0 0
        %3170 = vmatprep.subr.bf16.mxu0 0
        %3171 = vmatpush1.bf16.msra.mxu0 0
        %3172 = vmatprep.subr.bf16.mxu0 0
        %3173 = vmatpush1.bf16.msra.mxu0 0
        %3174 = vmatprep.subr.bf16.mxu0 0
        %3175 = vmatpush1.bf16.msra.mxu0 0
        %3176 = vmatprep.mubr.bf16.mxu0 0
        %3177 = vmatmul.mubr.bf16.gmra.mrb[0].mxu0 %v3112
        %v3178 = vpop.f32.mrb[0].mxu0
        %v3179 = vadd.f32 0.0, %v3178
        %v3180 = vpop.f32.mrb[0].mxu0
        %v3181 = vpop.f32.mrb[0].mxu0
        %v3182 = vadd.f32 0.0, %v3181
        %v3183 = vpop.f32.mrb[0].mxu0
        %3184 = vmatprep.mubr.bf16.mxu0 0
        %3185 = vmatmul.mubr.bf16.gmra.mrb[0].mxu0 %v3113
        %v3186 = vpop.f32.mrb[0].mxu0
        %v3187 = vadd.f32 0.0, %v3186
        %v3188 = vpop.f32.mrb[0].mxu0
        %v3189 = vpop.f32.mrb[0].mxu0
        %v3190 = vadd.f32 0.0, %v3189
        %v3191 = vpop.f32.mrb[0].mxu0
        %3192 = vmatprep.mubr.bf16.mxu0 0
        %3193 = vmatmul.mubr.bf16.gmra.mrb[0].mxu0 %v3114
        %v3194 = vpop.f32.mrb[0].mxu0
        %v3195 = vadd.f32 0.0, %v3194
        %v3196 = vpop.f32.mrb[0].mxu0
        %v3197 = vpop.f32.mrb[0].mxu0
        %v3198 = vadd.f32 0.0, %v3197
        %v3199 = vpop.f32.mrb[0].mxu0
        %3200 = vmatprep.mubr.bf16.mxu0 0
        %3201 = vmatmul.mubr.bf16.gmra.mrb[0].mxu0 %v3115
        %v3202 = vpop.f32.mrb[0].mxu0
        %v3203 = vadd.f32 0.0, %v3202
        %v3204 = vpop.f32.mrb[0].mxu0
        %v3205 = vpop.f32.mrb[0].mxu0
        %v3206 = vadd.f32 0.0, %v3205
        %v3207 = vpop.f32.mrb[0].mxu0
        %3208 = vmatprep.mubr.bf16.mxu0 0
        %3209 = vmatmul.mubr.bf16.gmra.mrb[0].mxu0 %v3116
        %v3210 = vpop.f32.mrb[0].mxu0
        %v3211 = vadd.f32 0.0, %v3210
        %v3212 = vpop.f32.mrb[0].mxu0
        %v3213 = vpop.f32.mrb[0].mxu0
        %v3214 = vadd.f32 0.0, %v3213
        %v3215 = vpop.f32.mrb[0].mxu0
        %3216 = vmatprep.mubr.bf16.mxu0 0
        %3217 = vmatmul.mubr.bf16.gmra.mrb[0].mxu0 %v3117
        %v3218 = vpop.f32.mrb[0].mxu0
        %v3219 = vadd.f32 0.0, %v3218
        %v3220 = vpop.f32.mrb[0].mxu0
        %v3221 = vpop.f32.mrb[0].mxu0
        %v3222 = vadd.f32 0.0, %v3221
        %v3223 = vpop.f32.mrb[0].mxu0
        %3224 = vmatprep.mubr.bf16.mxu0 0
        %3225 = vmatmul.mubr.bf16.gmra.mrb[0].mxu0 %v3118
        %v3226 = vpop.f32.mrb[0].mxu0
        %v3227 = vadd.f32 0.0, %v3226
        %v3228 = vpop.f32.mrb[0].mxu0
        %v3229 = vpop.f32.mrb[0].mxu0
        %v3230 = vadd.f32 0.0, %v3229
        %v3231 = vpop.f32.mrb[0].mxu0
        %3232 = vmatprep.mubr.bf16.mxu0 0
        %3233 = vmatmul.mubr.bf16.gmra.mrb[0].mxu0 %v3119
        %v3234 = vpop.f32.mrb[0].mxu0
        %v3235 = vadd.f32 0.0, %v3234
        %v3236 = vpop.f32.mrb[0].mxu0
        %v3237 = vpop.f32.mrb[0].mxu0
        %v3238 = vadd.f32 0.0, %v3237
        %v3239 = vpop.f32.mrb[0].mxu0
        %3240 = vdwg.mxu0
        %v3241 = vpack.c.bf16 %v3182, %v3179
        %v3242 = vpack.c.bf16 %v3190, %v3187
        %v3243 = vpack.c.bf16 %v3198, %v3195
        %v3244 = vpack.c.bf16 %v3206, %v3203
        %v3245 = vpack.c.bf16 %v3214, %v3211
        %v3246 = vpack.c.bf16 %v3222, %v3219
        %v3247 = vpack.c.bf16 %v3230, %v3227
        %v3248 = vpack.c.bf16 %v3238, %v3235
        %3249 = vrot.lane.b32.xlu0 %v1876, 32
        %v3250 = vpop.permute.xlu0 %3249
        %3251 = vrot.lane.b32.xlu0 %v1879, 32
        %v3252 = vpop.permute.xlu0 %3251
        %3253 = vrot.lane.b32.xlu0 %v1882, 32
        %v3254 = vpop.permute.xlu0 %3253
        %3255 = vrot.lane.b32.xlu0 %v1885, 32
        %v3256 = vpop.permute.xlu0 %3255
        %3257 = vrot.lane.b32.xlu0 %v1888, 32
        %v3258 = vpop.permute.xlu0 %3257
        %3259 = vrot.lane.b32.xlu0 %v1891, 32
        %v3260 = vpop.permute.xlu0 %3259
        %3261 = vrot.lane.b32.xlu0 %v1894, 32
        %v3262 = vpop.permute.xlu0 %3261
        %3263 = vrot.lane.b32.xlu0 %v1897, 32
        %v3264 = vpop.permute.xlu0 %3263
        %3265 = vrot.lane.b32.xlu0 %v1877, 32
        %v3266 = vpop.permute.xlu0 %3265
        %3267 = vrot.lane.b32.xlu0 %v1880, 32
        %v3268 = vpop.permute.xlu0 %3267
        %3269 = vrot.lane.b32.xlu0 %v1883, 32
        %v3270 = vpop.permute.xlu0 %3269
        %3271 = vrot.lane.b32.xlu0 %v1886, 32
        %v3272 = vpop.permute.xlu0 %3271
        %3273 = vrot.lane.b32.xlu0 %v1889, 32
        %v3274 = vpop.permute.xlu0 %3273
        %3275 = vrot.lane.b32.xlu0 %v1892, 32
        %v3276 = vpop.permute.xlu0 %3275
        %3277 = vrot.lane.b32.xlu0 %v1895, 32
        %v3278 = vpop.permute.xlu0 %3277
        %3279 = vrot.lane.b32.xlu0 %v1898, 32
        %v3280 = vpop.permute.xlu0 %3279
        %v3282 = vsel %vm1026, %v3250, 0
        %v3285 = vsel %vm1026, %v3252, 0
        %v3288 = vsel %vm1026, %v3254, 0
        %v3291 = vsel %vm1026, %v3256, 0
        %v3294 = vsel %vm1026, %v3258, 0
        %v3297 = vsel %vm1026, %v3260, 0
        %v3300 = vsel %vm1026, %v3262, 0
        %v3303 = vsel %vm1026, %v3264, 0
        %v3306 = vsel %vm1026, %v3266, 0
        %v3309 = vsel %vm1026, %v3268, 0
        %v3312 = vsel %vm1026, %v3270, 0
        %v3315 = vsel %vm1026, %v3272, 0
        %v3318 = vsel %vm1026, %v3274, 0
        %v3321 = vsel %vm1026, %v3276, 0
        %v3324 = vsel %vm1026, %v3278, 0
        %v3327 = vsel %vm1026, %v3280, 0
        %3329 = vmatprep.subr.bf16.mxu0 0
        %3330 = vmatpush1.bf16.xpose.msra.mxu0 %v3306
        %3331 = vmatprep.subr.bf16.mxu0 0
        %3332 = vmatpush1.bf16.xpose.msra.mxu0 %v3309
        %3333 = vmatprep.subr.bf16.mxu0 0
        %3334 = vmatpush1.bf16.xpose.msra.mxu0 %v3312
        %3335 = vmatprep.subr.bf16.mxu0 0
        %3336 = vmatpush1.bf16.xpose.msra.mxu0 %v3315
        %3337 = vmatprep.subr.bf16.mxu0 0
        %3338 = vmatpush1.bf16.xpose.msra.mxu0 %v3318
        %3339 = vmatprep.subr.bf16.mxu0 0
        %3340 = vmatpush1.bf16.xpose.msra.mxu0 %v3321
        %3341 = vmatprep.subr.bf16.mxu0 0
        %3342 = vmatpush1.bf16.xpose.msra.mxu0 %v3324
        %3343 = vmatprep.subr.bf16.mxu0 0
        %3344 = vmatpush1.bf16.xpose.msra.mxu0 %v3327
        %3345 = vmatprep.subr.bf16.mxu0 0
        %3346 = vmatpush1.bf16.xpose.msra.mxu0 0
        %3347 = vmatprep.subr.bf16.mxu0 0
        %3348 = vmatpush1.bf16.xpose.msra.mxu0 0
        %3349 = vmatprep.subr.bf16.mxu0 0
        %3350 = vmatpush1.bf16.xpose.msra.mxu0 0
        %3351 = vmatprep.subr.bf16.mxu0 0
        %3352 = vmatpush1.bf16.xpose.msra.mxu0 0
        %3353 = vmatprep.subr.bf16.mxu0 0
        %3354 = vmatpush1.bf16.xpose.msra.mxu0 0
        %3355 = vmatprep.subr.bf16.mxu0 0
        %3356 = vmatpush1.bf16.xpose.msra.mxu0 0
        %3357 = vmatprep.subr.bf16.mxu0 0
        %3358 = vmatpush1.bf16.xpose.msra.mxu0 0
        %3359 = vmatprep.subr.bf16.mxu0 0
        %3360 = vmatpush1.bf16.xpose.msra.mxu0 0
        %3361 = vmatprep.mubr.bf16.mxu0 0
        %3362 = vmatmul.mubr.bf16.gmra.mrb[0].mxu0 %v3282
        %v3363 = vpop.f32.mrb[0].mxu0
        %v3364 = vadd.f32 %v1905, %v3363
        %v3365 = vpop.f32.mrb[0].mxu0
        %v3366 = vpop.f32.mrb[0].mxu0
        %v3367 = vadd.f32 %v1905, %v3366
        %v3368 = vpop.f32.mrb[0].mxu0
        %3369 = vmatprep.mubr.bf16.mxu0 0
        %3370 = vmatmul.mubr.bf16.gmra.mrb[0].mxu0 %v3285
        %v3371 = vpop.f32.mrb[0].mxu0
        %v3372 = vadd.f32 %v1905, %v3371
        %v3373 = vpop.f32.mrb[0].mxu0
        %v3374 = vpop.f32.mrb[0].mxu0
        %v3375 = vadd.f32 %v1905, %v3374
        %v3376 = vpop.f32.mrb[0].mxu0
        %3377 = vmatprep.mubr.bf16.mxu0 0
        %3378 = vmatmul.mubr.bf16.gmra.mrb[0].mxu0 %v3288
        %v3379 = vpop.f32.mrb[0].mxu0
        %v3380 = vadd.f32 %v1905, %v3379
        %v3381 = vpop.f32.mrb[0].mxu0
        %v3382 = vpop.f32.mrb[0].mxu0
        %v3383 = vadd.f32 %v1905, %v3382
        %v3384 = vpop.f32.mrb[0].mxu0
        %3385 = vmatprep.mubr.bf16.mxu0 0
        %3386 = vmatmul.mubr.bf16.gmra.mrb[0].mxu0 %v3291
        %v3387 = vpop.f32.mrb[0].mxu0
        %v3388 = vadd.f32 %v1905, %v3387
        %v3389 = vpop.f32.mrb[0].mxu0
        %v3390 = vpop.f32.mrb[0].mxu0
        %v3391 = vadd.f32 %v1905, %v3390
        %v3392 = vpop.f32.mrb[0].mxu0
        %3393 = vmatprep.mubr.bf16.mxu0 0
        %3394 = vmatmul.mubr.bf16.gmra.mrb[0].mxu0 %v3294
        %v3395 = vpop.f32.mrb[0].mxu0
        %v3396 = vadd.f32 %v1905, %v3395
        %v3397 = vpop.f32.mrb[0].mxu0
        %v3398 = vpop.f32.mrb[0].mxu0
        %v3399 = vadd.f32 %v1905, %v3398
        %v3400 = vpop.f32.mrb[0].mxu0
        %3401 = vmatprep.mubr.bf16.mxu0 0
        %3402 = vmatmul.mubr.bf16.gmra.mrb[0].mxu0 %v3297
        %v3403 = vpop.f32.mrb[0].mxu0
        %v3404 = vadd.f32 %v1905, %v3403
        %v3405 = vpop.f32.mrb[0].mxu0
        %v3406 = vpop.f32.mrb[0].mxu0
        %v3407 = vadd.f32 %v1905, %v3406
        %v3408 = vpop.f32.mrb[0].mxu0
        %3409 = vmatprep.mubr.bf16.mxu0 0
        %3410 = vmatmul.mubr.bf16.gmra.mrb[0].mxu0 %v3300
        %v3411 = vpop.f32.mrb[0].mxu0
        %v3412 = vadd.f32 %v1905, %v3411
        %v3413 = vpop.f32.mrb[0].mxu0
        %v3414 = vpop.f32.mrb[0].mxu0
        %v3415 = vadd.f32 %v1905, %v3414
        %v3416 = vpop.f32.mrb[0].mxu0
        %3417 = vmatprep.mubr.bf16.mxu0 0
        %3418 = vmatmul.mubr.bf16.gmra.mrb[0].mxu0 %v3303
        %v3419 = vpop.f32.mrb[0].mxu0
        %v3420 = vadd.f32 %v1905, %v3419
        %v3421 = vpop.f32.mrb[0].mxu0
        %v3422 = vpop.f32.mrb[0].mxu0
        %v3423 = vadd.f32 %v1905, %v3422
        %v3424 = vpop.f32.mrb[0].mxu0
        %3425 = vdwg.mxu0
        %3426 = vmax.xlane.f32.xlu0 %v3364
        %v3427 = vpop.xlane.xlu0 %3426
        %3428 = vmax.xlane.f32.xlu0 %v3367
        %v3429 = vpop.xlane.xlu0 %3428
        %3430 = vmax.xlane.f32.xlu0 %v3372
        %v3431 = vpop.xlane.xlu0 %3430
        %3432 = vmax.xlane.f32.xlu0 %v3375
        %v3433 = vpop.xlane.xlu0 %3432
        %3434 = vmax.xlane.f32.xlu0 %v3380
        %v3435 = vpop.xlane.xlu0 %3434
        %3436 = vmax.xlane.f32.xlu0 %v3383
        %v3437 = vpop.xlane.xlu0 %3436
        %3438 = vmax.xlane.f32.xlu0 %v3388
        %v3439 = vpop.xlane.xlu0 %3438
        %3440 = vmax.xlane.f32.xlu0 %v3391
        %v3441 = vpop.xlane.xlu0 %3440
        %3442 = vmax.xlane.f32.xlu0 %v3396
        %v3443 = vpop.xlane.xlu0 %3442
        %3444 = vmax.xlane.f32.xlu0 %v3399
        %v3445 = vpop.xlane.xlu0 %3444
        %3446 = vmax.xlane.f32.xlu0 %v3404
        %v3447 = vpop.xlane.xlu0 %3446
        %3448 = vmax.xlane.f32.xlu0 %v3407
        %v3449 = vpop.xlane.xlu0 %3448
        %3450 = vmax.xlane.f32.xlu0 %v3412
        %v3451 = vpop.xlane.xlu0 %3450
        %3452 = vmax.xlane.f32.xlu0 %v3415
        %v3453 = vpop.xlane.xlu0 %3452
        %3454 = vmax.xlane.f32.xlu0 %v3420
        %v3455 = vpop.xlane.xlu0 %3454
        %3456 = vmax.xlane.f32.xlu0 %v3423
        %v3457 = vpop.xlane.xlu0 %3456
        %v3458 = vsub.f32 %v3364, %v3427
        %v3459 = vsub.f32 %v3367, %v3429
        %v3460 = vsub.f32 %v3372, %v3431
        %v3461 = vsub.f32 %v3375, %v3433
        %v3462 = vsub.f32 %v3380, %v3435
        %v3463 = vsub.f32 %v3383, %v3437
        %v3464 = vsub.f32 %v3388, %v3439
        %v3465 = vsub.f32 %v3391, %v3441
        %v3466 = vsub.f32 %v3396, %v3443
        %v3467 = vsub.f32 %v3399, %v3445
        %v3468 = vsub.f32 %v3404, %v3447
        %v3469 = vsub.f32 %v3407, %v3449
        %v3470 = vsub.f32 %v3412, %v3451
        %v3471 = vsub.f32 %v3415, %v3453
        %v3472 = vsub.f32 %v3420, %v3455
        %v3473 = vsub.f32 %v3423, %v3457
        %v3474 = vmul.f32 %v3458, 1.442695
        %v3475 = vpow.pop %v3474
        %v3476 = vmul.f32 %v3459, 1.442695
        %v3477 = vpow.pop %v3476
        %v3478 = vmul.f32 %v3460, 1.442695
        %v3479 = vpow.pop %v3478
        %v3480 = vmul.f32 %v3461, 1.442695
        %v3481 = vpow.pop %v3480
        %v3482 = vmul.f32 %v3462, 1.442695
        %v3483 = vpow.pop %v3482
        %v3484 = vmul.f32 %v3463, 1.442695
        %v3485 = vpow.pop %v3484
        %v3486 = vmul.f32 %v3464, 1.442695
        %v3487 = vpow.pop %v3486
        %v3488 = vmul.f32 %v3465, 1.442695
        %v3489 = vpow.pop %v3488
        %v3490 = vmul.f32 %v3466, 1.442695
        %v3491 = vpow.pop %v3490
        %v3492 = vmul.f32 %v3467, 1.442695
        %v3493 = vpow.pop %v3492
        %v3494 = vmul.f32 %v3468, 1.442695
        %v3495 = vpow.pop %v3494
        %v3496 = vmul.f32 %v3469, 1.442695
        %v3497 = vpow.pop %v3496
        %v3498 = vmul.f32 %v3470, 1.442695
        %v3499 = vpow.pop %v3498
        %v3500 = vmul.f32 %v3471, 1.442695
        %v3501 = vpow.pop %v3500
        %v3502 = vmul.f32 %v3472, 1.442695
        %v3503 = vpow.pop %v3502
        %v3504 = vmul.f32 %v3473, 1.442695
        %v3505 = vpow.pop %v3504
        %3506 = vadd.xlane.f32.xlu0 %v3475
        %v3507 = vpop.xlane.xlu0 %3506
        %3508 = vadd.xlane.f32.xlu0 %v3477
        %v3509 = vpop.xlane.xlu0 %3508
        %3510 = vadd.xlane.f32.xlu0 %v3479
        %v3511 = vpop.xlane.xlu0 %3510
        %3512 = vadd.xlane.f32.xlu0 %v3481
        %v3513 = vpop.xlane.xlu0 %3512
        %3514 = vadd.xlane.f32.xlu0 %v3483
        %v3515 = vpop.xlane.xlu0 %3514
        %3516 = vadd.xlane.f32.xlu0 %v3485
        %v3517 = vpop.xlane.xlu0 %3516
        %3518 = vadd.xlane.f32.xlu0 %v3487
        %v3519 = vpop.xlane.xlu0 %3518
        %3520 = vadd.xlane.f32.xlu0 %v3489
        %v3521 = vpop.xlane.xlu0 %3520
        %3522 = vadd.xlane.f32.xlu0 %v3491
        %v3523 = vpop.xlane.xlu0 %3522
        %3524 = vadd.xlane.f32.xlu0 %v3493
        %v3525 = vpop.xlane.xlu0 %3524
        %3526 = vadd.xlane.f32.xlu0 %v3495
        %v3527 = vpop.xlane.xlu0 %3526
        %3528 = vadd.xlane.f32.xlu0 %v3497
        %v3529 = vpop.xlane.xlu0 %3528
        %3530 = vadd.xlane.f32.xlu0 %v3499
        %v3531 = vpop.xlane.xlu0 %3530
        %3532 = vadd.xlane.f32.xlu0 %v3501
        %v3533 = vpop.xlane.xlu0 %3532
        %3534 = vadd.xlane.f32.xlu0 %v3503
        %v3535 = vpop.xlane.xlu0 %3534
        %3536 = vadd.xlane.f32.xlu0 %v3505
        %v3537 = vpop.xlane.xlu0 %3536
        %v3538 = vrcp.pop %v3507
        %v3539 = vrcp.pop %v3509
        %v3540 = vrcp.pop %v3511
        %v3541 = vrcp.pop %v3513
        %v3542 = vrcp.pop %v3515
        %v3543 = vrcp.pop %v3517
        %v3544 = vrcp.pop %v3519
        %v3545 = vrcp.pop %v3521
        %v3546 = vrcp.pop %v3523
        %v3547 = vrcp.pop %v3525
        %v3548 = vrcp.pop %v3527
        %v3549 = vrcp.pop %v3529
        %v3550 = vrcp.pop %v3531
        %v3551 = vrcp.pop %v3533
        %v3552 = vrcp.pop %v3535
        %v3553 = vrcp.pop %v3537
        %v3554 = vmul.f32 %v3475, %v3538
        %v3555 = vmul.f32 %v3477, %v3539
        %v3556 = vmul.f32 %v3479, %v3540
        %v3557 = vmul.f32 %v3481, %v3541
        %v3558 = vmul.f32 %v3483, %v3542
        %v3559 = vmul.f32 %v3485, %v3543
        %v3560 = vmul.f32 %v3487, %v3544
        %v3561 = vmul.f32 %v3489, %v3545
        %v3562 = vmul.f32 %v3491, %v3546
        %v3563 = vmul.f32 %v3493, %v3547
        %v3564 = vmul.f32 %v3495, %v3548
        %v3565 = vmul.f32 %v3497, %v3549
        %v3566 = vmul.f32 %v3499, %v3550
        %v3567 = vmul.f32 %v3501, %v3551
        %v3568 = vmul.f32 %v3503, %v3552
        %v3569 = vmul.f32 %v3505, %v3553
        %v3570 = vpack.c.bf16 %v3555, %v3554
        %v3571 = vpack.c.bf16 %v3557, %v3556
        %v3572 = vpack.c.bf16 %v3559, %v3558
        %v3573 = vpack.c.bf16 %v3561, %v3560
        %v3574 = vpack.c.bf16 %v3563, %v3562
        %v3575 = vpack.c.bf16 %v3565, %v3564
        %v3576 = vpack.c.bf16 %v3567, %v3566
        %v3577 = vpack.c.bf16 %v3569, %v3568
        %3578 = vrot.lane.b32.xlu0 %v1878, 32
        %v3579 = vpop.permute.xlu0 %3578
        %3580 = vrot.lane.b32.xlu0 %v1881, 32
        %v3581 = vpop.permute.xlu0 %3580
        %3582 = vrot.lane.b32.xlu0 %v1884, 32
        %v3583 = vpop.permute.xlu0 %3582
        %3584 = vrot.lane.b32.xlu0 %v1887, 32
        %v3585 = vpop.permute.xlu0 %3584
        %3586 = vrot.lane.b32.xlu0 %v1890, 32
        %v3587 = vpop.permute.xlu0 %3586
        %3588 = vrot.lane.b32.xlu0 %v1893, 32
        %v3589 = vpop.permute.xlu0 %3588
        %3590 = vrot.lane.b32.xlu0 %v1896, 32
        %v3591 = vpop.permute.xlu0 %3590
        %3592 = vrot.lane.b32.xlu0 %v1899, 32
        %v3593 = vpop.permute.xlu0 %3592
        %3602 = vmatprep.subr.bf16.mxu0 0
        %3603 = vmatpush1.bf16.msra.mxu0 %v3579
        %3604 = vmatprep.subr.bf16.mxu0 0
        %3605 = vmatpush1.bf16.msra.mxu0 %v3581
        %3606 = vmatprep.subr.bf16.mxu0 0
        %3607 = vmatpush1.bf16.msra.mxu0 %v3583
        %3608 = vmatprep.subr.bf16.mxu0 0
        %3609 = vmatpush1.bf16.msra.mxu0 %v3585
        %3610 = vmatprep.subr.bf16.mxu0 0
        %3611 = vmatpush1.bf16.msra.mxu0 %v3587
        %3612 = vmatprep.subr.bf16.mxu0 0
        %3613 = vmatpush1.bf16.msra.mxu0 %v3589
        %3614 = vmatprep.subr.bf16.mxu0 0
        %3615 = vmatpush1.bf16.msra.mxu0 %v3591
        %3616 = vmatprep.subr.bf16.mxu0 0
        %3617 = vmatpush1.bf16.msra.mxu0 %v3593
        %3618 = vmatprep.subr.bf16.mxu0 0
        %3619 = vmatpush1.bf16.msra.mxu0 0
        %3620 = vmatprep.subr.bf16.mxu0 0
        %3621 = vmatpush1.bf16.msra.mxu0 0
        %3622 = vmatprep.subr.bf16.mxu0 0
        %3623 = vmatpush1.bf16.msra.mxu0 0
        %3624 = vmatprep.subr.bf16.mxu0 0
        %3625 = vmatpush1.bf16.msra.mxu0 0
        %3626 = vmatprep.subr.bf16.mxu0 0
        %3627 = vmatpush1.bf16.msra.mxu0 0
        %3628 = vmatprep.subr.bf16.mxu0 0
        %3629 = vmatpush1.bf16.msra.mxu0 0
        %3630 = vmatprep.subr.bf16.mxu0 0
        %3631 = vmatpush1.bf16.msra.mxu0 0
        %3632 = vmatprep.subr.bf16.mxu0 0
        %3633 = vmatpush1.bf16.msra.mxu0 0
        %3634 = vmatprep.mubr.bf16.mxu0 0
        %3635 = vmatmul.mubr.bf16.gmra.mrb[0].mxu0 %v3570
        %v3636 = vpop.f32.mrb[0].mxu0
        %v3637 = vadd.f32 0.0, %v3636
        %v3638 = vpop.f32.mrb[0].mxu0
        %v3639 = vpop.f32.mrb[0].mxu0
        %v3640 = vadd.f32 0.0, %v3639
        %v3641 = vpop.f32.mrb[0].mxu0
        %3642 = vmatprep.mubr.bf16.mxu0 0
        %3643 = vmatmul.mubr.bf16.gmra.mrb[0].mxu0 %v3571
        %v3644 = vpop.f32.mrb[0].mxu0
        %v3645 = vadd.f32 0.0, %v3644
        %v3646 = vpop.f32.mrb[0].mxu0
        %v3647 = vpop.f32.mrb[0].mxu0
        %v3648 = vadd.f32 0.0, %v3647
        %v3649 = vpop.f32.mrb[0].mxu0
        %3650 = vmatprep.mubr.bf16.mxu0 0
        %3651 = vmatmul.mubr.bf16.gmra.mrb[0].mxu0 %v3572
        %v3652 = vpop.f32.mrb[0].mxu0
        %v3653 = vadd.f32 0.0, %v3652
        %v3654 = vpop.f32.mrb[0].mxu0
        %v3655 = vpop.f32.mrb[0].mxu0
        %v3656 = vadd.f32 0.0, %v3655
        %v3657 = vpop.f32.mrb[0].mxu0
        %3658 = vmatprep.mubr.bf16.mxu0 0
        %3659 = vmatmul.mubr.bf16.gmra.mrb[0].mxu0 %v3573
        %v3660 = vpop.f32.mrb[0].mxu0
        %v3661 = vadd.f32 0.0, %v3660
        %v3662 = vpop.f32.mrb[0].mxu0
        %v3663 = vpop.f32.mrb[0].mxu0
        %v3664 = vadd.f32 0.0, %v3663
        %v3665 = vpop.f32.mrb[0].mxu0
        %3666 = vmatprep.mubr.bf16.mxu0 0
        %3667 = vmatmul.mubr.bf16.gmra.mrb[0].mxu0 %v3574
        %v3668 = vpop.f32.mrb[0].mxu0
        %v3669 = vadd.f32 0.0, %v3668
        %v3670 = vpop.f32.mrb[0].mxu0
        %v3671 = vpop.f32.mrb[0].mxu0
        %v3672 = vadd.f32 0.0, %v3671
        %v3673 = vpop.f32.mrb[0].mxu0
        %3674 = vmatprep.mubr.bf16.mxu0 0
        %3675 = vmatmul.mubr.bf16.gmra.mrb[0].mxu0 %v3575
        %v3676 = vpop.f32.mrb[0].mxu0
        %v3677 = vadd.f32 0.0, %v3676
        %v3678 = vpop.f32.mrb[0].mxu0
        %v3679 = vpop.f32.mrb[0].mxu0
        %v3680 = vadd.f32 0.0, %v3679
        %v3681 = vpop.f32.mrb[0].mxu0
        %3682 = vmatprep.mubr.bf16.mxu0 0
        %3683 = vmatmul.mubr.bf16.gmra.mrb[0].mxu0 %v3576
        %v3684 = vpop.f32.mrb[0].mxu0
        %v3685 = vadd.f32 0.0, %v3684
        %v3686 = vpop.f32.mrb[0].mxu0
        %v3687 = vpop.f32.mrb[0].mxu0
        %v3688 = vadd.f32 0.0, %v3687
        %v3689 = vpop.f32.mrb[0].mxu0
        %3690 = vmatprep.mubr.bf16.mxu0 0
        %3691 = vmatmul.mubr.bf16.gmra.mrb[0].mxu0 %v3577
        %v3692 = vpop.f32.mrb[0].mxu0
        %v3693 = vadd.f32 0.0, %v3692
        %v3694 = vpop.f32.mrb[0].mxu0
        %v3695 = vpop.f32.mrb[0].mxu0
        %v3696 = vadd.f32 0.0, %v3695
        %v3697 = vpop.f32.mrb[0].mxu0
        %3698 = vdwg.mxu0
        %v3699 = vpack.c.bf16 %v3640, %v3637
        %v3700 = vpack.c.bf16 %v3648, %v3645
        %v3701 = vpack.c.bf16 %v3656, %v3653
        %v3702 = vpack.c.bf16 %v3664, %v3661
        %v3703 = vpack.c.bf16 %v3672, %v3669
        %v3704 = vpack.c.bf16 %v3680, %v3677
        %v3705 = vpack.c.bf16 %v3688, %v3685
        %v3706 = vpack.c.bf16 %v3696, %v3693
        %3715 = vrot.lane.b32.xlu0 %v2783, 32
        %v3716 = vpop.permute.xlu0 %3715
        %3717 = vrot.lane.b32.xlu0 %v2784, 32
        %v3718 = vpop.permute.xlu0 %3717
        %3719 = vrot.lane.b32.xlu0 %v2785, 32
        %v3720 = vpop.permute.xlu0 %3719
        %3721 = vrot.lane.b32.xlu0 %v2786, 32
        %v3722 = vpop.permute.xlu0 %3721
        %3723 = vrot.lane.b32.xlu0 %v2787, 32
        %v3724 = vpop.permute.xlu0 %3723
        %3725 = vrot.lane.b32.xlu0 %v2788, 32
        %v3726 = vpop.permute.xlu0 %3725
        %3727 = vrot.lane.b32.xlu0 %v2789, 32
        %v3728 = vpop.permute.xlu0 %3727
        %3729 = vrot.lane.b32.xlu0 %v2790, 32
        %v3730 = vpop.permute.xlu0 %3729
        %3739 = vrot.lane.b32.xlu0 %v3241, 64
        %v3740 = vpop.permute.xlu0 %3739
        %3741 = vrot.lane.b32.xlu0 %v3242, 64
        %v3742 = vpop.permute.xlu0 %3741
        %3743 = vrot.lane.b32.xlu0 %v3243, 64
        %v3744 = vpop.permute.xlu0 %3743
        %3745 = vrot.lane.b32.xlu0 %v3244, 64
        %v3746 = vpop.permute.xlu0 %3745
        %3747 = vrot.lane.b32.xlu0 %v3245, 64
        %v3748 = vpop.permute.xlu0 %3747
        %3749 = vrot.lane.b32.xlu0 %v3246, 64
        %v3750 = vpop.permute.xlu0 %3749
        %3751 = vrot.lane.b32.xlu0 %v3247, 64
        %v3752 = vpop.permute.xlu0 %3751
        %3753 = vrot.lane.b32.xlu0 %v3248, 64
        %v3754 = vpop.permute.xlu0 %3753
        %3763 = vrot.lane.b32.xlu0 %v3699, 96
        %v3764 = vpop.permute.xlu0 %3763
        %3765 = vrot.lane.b32.xlu0 %v3700, 96
        %v3766 = vpop.permute.xlu0 %3765
        %3767 = vrot.lane.b32.xlu0 %v3701, 96
        %v3768 = vpop.permute.xlu0 %3767
        %3769 = vrot.lane.b32.xlu0 %v3702, 96
        %v3770 = vpop.permute.xlu0 %3769
        %3771 = vrot.lane.b32.xlu0 %v3703, 96
        %v3772 = vpop.permute.xlu0 %3771
        %3773 = vrot.lane.b32.xlu0 %v3704, 96
        %v3774 = vpop.permute.xlu0 %3773
        %3775 = vrot.lane.b32.xlu0 %v3705, 96
        %v3776 = vpop.permute.xlu0 %3775
        %3777 = vrot.lane.b32.xlu0 %v3706, 96
        %v3778 = vpop.permute.xlu0 %3777
        %v3781 = vsel %vm1026, %v2301, %v3716
        %v3784 = vsel %vm1026, %v2302, %v3718
        %v3787 = vsel %vm1026, %v2303, %v3720
        %v3790 = vsel %vm1026, %v2304, %v3722
        %v3793 = vsel %vm1026, %v2305, %v3724
        %v3796 = vsel %vm1026, %v2306, %v3726
        %v3799 = vsel %vm1026, %v2307, %v3728
        %v3802 = vsel %vm1026, %v2308, %v3730
        %vm3803 = vcmask 523264
        %v3805 = vsel %vm3803, %v3781, %v3740
        %v3807 = vsel %vm3803, %v3784, %v3742
        %v3809 = vsel %vm3803, %v3787, %v3744
        %v3811 = vsel %vm3803, %v3790, %v3746
        %v3813 = vsel %vm3803, %v3793, %v3748
        %v3815 = vsel %vm3803, %v3796, %v3750
        %v3817 = vsel %vm3803, %v3799, %v3752
        %v3819 = vsel %vm3803, %v3802, %v3754
        %vm3820 = vcmask 785408
        %v3822 = vsel %vm3820, %v3805, %v3764
        %v3825 = vsel %vm3820, %v3807, %v3766
        %v3828 = vsel %vm3820, %v3809, %v3768
        %v3831 = vsel %vm3820, %v3811, %v3770
        %v3834 = vsel %vm3820, %v3813, %v3772
        %v3837 = vsel %vm3820, %v3815, %v3774
        %v3840 = vsel %vm3820, %v3817, %v3776
        %v3843 = vsel %vm3820, %v3819, %v3778
        %v3845 = vld [vmem:[%s563] sm:$0xf]
        %v3846 = vld [vmem:[%s563 + $0x4] sm:$0xf]
        %v3847 = vld [vmem:[%s563 + $0x8] sm:$0xf]
        %v3848 = vld [vmem:[%s563 + $0xc] sm:$0xf]
        %v3849 = vld [vmem:[%s563 + $0x10] sm:$0xf]
        %v3850 = vld [vmem:[%s563 + $0x14] sm:$0xf]
        %v3851 = vld [vmem:[%s563 + $0x18] sm:$0xf]
        %v3852 = vld [vmem:[%s563 + $0x1c] sm:$0xf]
        %v3853 = vld [vmem:[%s563 + $0x20] sm:$0xf]
        %v3854 = vld [vmem:[%s563 + $0x24] sm:$0xf]
        %v3855 = vld [vmem:[%s563 + $0x28] sm:$0xf]
        %v3856 = vld [vmem:[%s563 + $0x2c] sm:$0xf]
        %v3857 = vld [vmem:[%s563 + $0x30] sm:$0xf]
        %v3858 = vld [vmem:[%s563 + $0x34] sm:$0xf]
        %v3859 = vld [vmem:[%s563 + $0x38] sm:$0xf]
        %v3860 = vld [vmem:[%s563 + $0x3c] sm:$0xf]
        %v3861 = vld [vmem:[%s566] sm:$0x1]
        %v3863 = vlaneseq
        %v3864 = vshrl.u32 %v3863, 7
        %v3865 = vsub.s32 0, %v3864
        %v3866 = vrot.slane %v3861, %v3865
        %v3884 = vunpack.c.l.b16 %v3845
        %v3885 = vunpack.c.l.b16 %v3846
        %v3886 = vunpack.c.l.b16 %v3847
        %v3887 = vunpack.c.l.b16 %v3848
        %v3888 = vunpack.c.l.b16 %v3849
        %v3889 = vunpack.c.l.b16 %v3850
        %v3890 = vunpack.c.l.b16 %v3851
        %v3891 = vunpack.c.l.b16 %v3852
        %v3892 = vunpack.c.l.b16 %v3853
        %v3893 = vunpack.c.l.b16 %v3854
        %v3894 = vunpack.c.l.b16 %v3855
        %v3895 = vunpack.c.l.b16 %v3856
        %v3896 = vunpack.c.l.b16 %v3857
        %v3897 = vunpack.c.l.b16 %v3858
        %v3898 = vunpack.c.l.b16 %v3859
        %v3899 = vunpack.c.l.b16 %v3860
        %v3900 = vpack.c.b16 %v3885, %v3884
        %v3901 = vpack.c.b16 %v3887, %v3886
        %v3902 = vpack.c.b16 %v3889, %v3888
        %v3903 = vpack.c.b16 %v3891, %v3890
        %v3904 = vpack.c.b16 %v3893, %v3892
        %v3905 = vpack.c.b16 %v3895, %v3894
        %v3906 = vpack.c.b16 %v3897, %v3896
        %v3907 = vpack.c.b16 %v3899, %v3898
        %3916 = vmatprep.subr.bf16.mxu0 0
        %3917 = vmatpush1.bf16.msra.mxu0 %v3900
        %3918 = vmatprep.subr.bf16.mxu0 0
        %3919 = vmatpush1.bf16.msra.mxu0 %v3901
        %3920 = vmatprep.subr.bf16.mxu0 0
        %3921 = vmatpush1.bf16.msra.mxu0 %v3902
        %3922 = vmatprep.subr.bf16.mxu0 0
        %3923 = vmatpush1.bf16.msra.mxu0 %v3903
        %3924 = vmatprep.subr.bf16.mxu0 0
        %3925 = vmatpush1.bf16.msra.mxu0 %v3904
        %3926 = vmatprep.subr.bf16.mxu0 0
        %3927 = vmatpush1.bf16.msra.mxu0 %v3905
        %3928 = vmatprep.subr.bf16.mxu0 0
        %3929 = vmatpush1.bf16.msra.mxu0 %v3906
        %3930 = vmatprep.subr.bf16.mxu0 0
        %3931 = vmatpush1.bf16.msra.mxu0 %v3907
        %3932 = vmatprep.subr.bf16.mxu0 0
        %3933 = vmatpush1.bf16.msra.mxu0 0
        %3934 = vmatprep.subr.bf16.mxu0 0
        %3935 = vmatpush1.bf16.msra.mxu0 0
        %3936 = vmatprep.subr.bf16.mxu0 0
        %3937 = vmatpush1.bf16.msra.mxu0 0
        %3938 = vmatprep.subr.bf16.mxu0 0
        %3939 = vmatpush1.bf16.msra.mxu0 0
        %3940 = vmatprep.subr.bf16.mxu0 0
        %3941 = vmatpush1.bf16.msra.mxu0 0
        %3942 = vmatprep.subr.bf16.mxu0 0
        %3943 = vmatpush1.bf16.msra.mxu0 0
        %3944 = vmatprep.subr.bf16.mxu0 0
        %3945 = vmatpush1.bf16.msra.mxu0 0
        %3946 = vmatprep.subr.bf16.mxu0 0
        %3947 = vmatpush1.bf16.msra.mxu0 0
        %3948 = vmatprep.mubr.bf16.mxu0 0
        %3949 = vmatmul.mubr.bf16.gmra.mrb[0].mxu0 %v3822
        %v3950 = vpop.f32.mrb[0].mxu0
        %v3951 = vadd.f32 %v3866, %v3950
        %v3952 = vpop.f32.mrb[0].mxu0
        %v3953 = vpop.f32.mrb[0].mxu0
        %v3954 = vadd.f32 %v3866, %v3953
        %v3955 = vpop.f32.mrb[0].mxu0
        %3956 = vmatprep.mubr.bf16.mxu0 0
        %3957 = vmatmul.mubr.bf16.gmra.mrb[0].mxu0 %v3825
        %v3958 = vpop.f32.mrb[0].mxu0
        %v3959 = vadd.f32 %v3866, %v3958
        %v3960 = vpop.f32.mrb[0].mxu0
        %v3961 = vpop.f32.mrb[0].mxu0
        %v3962 = vadd.f32 %v3866, %v3961
        %v3963 = vpop.f32.mrb[0].mxu0
        %3964 = vmatprep.mubr.bf16.mxu0 0
        %3965 = vmatmul.mubr.bf16.gmra.mrb[0].mxu0 %v3828
        %v3966 = vpop.f32.mrb[0].mxu0
        %v3967 = vadd.f32 %v3866, %v3966
        %v3968 = vpop.f32.mrb[0].mxu0
        %v3969 = vpop.f32.mrb[0].mxu0
        %v3970 = vadd.f32 %v3866, %v3969
        %v3971 = vpop.f32.mrb[0].mxu0
        %3972 = vmatprep.mubr.bf16.mxu0 0
        %3973 = vmatmul.mubr.bf16.gmra.mrb[0].mxu0 %v3831
        %v3974 = vpop.f32.mrb[0].mxu0
        %v3975 = vadd.f32 %v3866, %v3974
        %v3976 = vpop.f32.mrb[0].mxu0
        %v3977 = vpop.f32.mrb[0].mxu0
        %v3978 = vadd.f32 %v3866, %v3977
        %v3979 = vpop.f32.mrb[0].mxu0
        %3980 = vmatprep.mubr.bf16.mxu0 0
        %3981 = vmatmul.mubr.bf16.gmra.mrb[0].mxu0 %v3834
        %v3982 = vpop.f32.mrb[0].mxu0
        %v3983 = vadd.f32 %v3866, %v3982
        %v3984 = vpop.f32.mrb[0].mxu0
        %v3985 = vpop.f32.mrb[0].mxu0
        %v3986 = vadd.f32 %v3866, %v3985
        %v3987 = vpop.f32.mrb[0].mxu0
        %3988 = vmatprep.mubr.bf16.mxu0 0
        %3989 = vmatmul.mubr.bf16.gmra.mrb[0].mxu0 %v3837
        %v3990 = vpop.f32.mrb[0].mxu0
        %v3991 = vadd.f32 %v3866, %v3990
        %v3992 = vpop.f32.mrb[0].mxu0
        %v3993 = vpop.f32.mrb[0].mxu0
        %v3994 = vadd.f32 %v3866, %v3993
        %v3995 = vpop.f32.mrb[0].mxu0
        %3996 = vmatprep.mubr.bf16.mxu0 0
        %3997 = vmatmul.mubr.bf16.gmra.mrb[0].mxu0 %v3840
        %v3998 = vpop.f32.mrb[0].mxu0
        %v3999 = vadd.f32 %v3866, %v3998
        %v4000 = vpop.f32.mrb[0].mxu0
        %v4001 = vpop.f32.mrb[0].mxu0
        %v4002 = vadd.f32 %v3866, %v4001
        %v4003 = vpop.f32.mrb[0].mxu0
        %4004 = vmatprep.mubr.bf16.mxu0 0
        %4005 = vmatmul.mubr.bf16.gmra.mrb[0].mxu0 %v3843
        %v4006 = vpop.f32.mrb[0].mxu0
        %v4007 = vadd.f32 %v3866, %v4006
        %v4008 = vpop.f32.mrb[0].mxu0
        %v4009 = vpop.f32.mrb[0].mxu0
        %v4010 = vadd.f32 %v3866, %v4009
        %v4011 = vpop.f32.mrb[0].mxu0
        %4012 = vdwg.mxu0
        %v4013 = vadd.f32 %v1465, %v3951
        %v4014 = vadd.f32 %v1466, %v3954
        %v4015 = vadd.f32 %v1467, %v3959
        %v4016 = vadd.f32 %v1468, %v3962
        %v4017 = vadd.f32 %v1469, %v3967
        %v4018 = vadd.f32 %v1470, %v3970
        %v4019 = vadd.f32 %v1471, %v3975
        %v4020 = vadd.f32 %v1472, %v3978
        %v4021 = vadd.f32 %v1473, %v3983
        %v4022 = vadd.f32 %v1474, %v3986
        %v4023 = vadd.f32 %v1475, %v3991
        %v4024 = vadd.f32 %v1476, %v3994
        %v4025 = vadd.f32 %v1477, %v3999
        %v4026 = vadd.f32 %v1478, %v4002
        %v4027 = vadd.f32 %v1479, %v4007
        %v4028 = vadd.f32 %v1480, %v4010
        %v4029 = vmul.f32 %v4013, %v1139
        %v4030 = vmul.f32 %v4014, %v1144
        %v4031 = vmul.f32 %v4015, %v1149
        %v4032 = vmul.f32 %v4016, %v1154
        %v4033 = vmul.f32 %v4017, %v1159
        %v4034 = vmul.f32 %v4018, %v1164
        %v4035 = vmul.f32 %v4019, %v1169
        %v4036 = vmul.f32 %v4020, %v1174
        %v4037 = vmul.f32 %v4021, %v1179
        %v4038 = vmul.f32 %v4022, %v1184
        %v4039 = vmul.f32 %v4023, %v1189
        %v4040 = vmul.f32 %v4024, %v1194
        %v4041 = vmul.f32 %v4025, %v1199
        %v4042 = vmul.f32 %v4026, %v1204
        %v4043 = vmul.f32 %v4027, %v1209
        %v4044 = vmul.f32 %v4028, %v1214
        %4045 = vst [vmem:[%s571] sm:$0xff] %v4029
        %4046 = vst [vmem:[%s571 + $0x8] sm:$0xff] %v4030
        %4047 = vst [vmem:[%s571 + $0x10] sm:$0xff] %v4031
        %4048 = vst [vmem:[%s571 + $0x18] sm:$0xff] %v4032
        %4049 = vst [vmem:[%s571 + $0x20] sm:$0xff] %v4033
        %4050 = vst [vmem:[%s571 + $0x28] sm:$0xff] %v4034
        %4051 = vst [vmem:[%s571 + $0x30] sm:$0xff] %v4035
        %4052 = vst [vmem:[%s571 + $0x38] sm:$0xff] %v4036
        %4053 = vst [vmem:[%s571 + $0x40] sm:$0xff] %v4037
        %4054 = vst [vmem:[%s571 + $0x48] sm:$0xff] %v4038
        %4055 = vst [vmem:[%s571 + $0x50] sm:$0xff] %v4039
        %4056 = vst [vmem:[%s571 + $0x58] sm:$0xff] %v4040
        %4057 = vst [vmem:[%s571 + $0x60] sm:$0xff] %v4041
        %4058 = vst [vmem:[%s571 + $0x68] sm:$0xff] %v4042
        %4059 = vst [vmem:[%s571 + $0x70] sm:$0xff] %v4043
        %4060 = vst [vmem:[%s571 + $0x78] sm:$0xff] %v4044
        %p4061 = scmp.lt.s32.totalorder %s31, 1
        %s4062 = scalar_select %p4061, %s31, 1
        %s4063 = smul.addr %s4062, 16
        %s4064 = smul.addr %s4063, 8
        %s4065 = scalar_lea.vmem %s13, %s4064
        // Predicated region
        $region81: #{conditioning_encoder.1} parent=71 // pred_check
          %p4066 = pneg %p365
        $region82: #{conditioning_encoder.1} parent=71 // pred_check_branch
          %4068 = sbr.rel (%p4066) target = $region84
        $region83: #{conditioning_encoder.1} parent=71 // pred_region
          _
        $region84: #{conditioning_encoder.1} parent=71 // pred_fallthru
          _
      $region72: #{conditioning_encoder.1} parent=5 // pred_fallthru
        _
      %p4069 = scmp.le.s32.totalorder 2, %s22
      // Predicated region
      $region85: #{conditioning_encoder.1} parent=5 // pred_check
        %p4070 = pneg %p4069
      $region86: #{conditioning_encoder.1} parent=5 // pred_check_branch
        %4072 = sbr.rel (%p4070) target = $region88
      $region87: #{conditioning_encoder.1} parent=5 // pred_region
        %s4073 = ssub.s32 %s22, 2
        // Predicated region
        $region89: #{conditioning_encoder.1} parent=87 // pred_check
          %p4074 = pneg %p371
        $region90: #{conditioning_encoder.1} parent=87 // pred_check_branch
          %4076 = sbr.rel (%p4074) target = $region92
        $region91: #{conditioning_encoder.1} parent=87 // pred_region
          %p4077 = scmp.lt.s32.totalorder %s33, 1
          %s4078 = scalar_select %p4077, %s33, 1
          %s4079 = smul.addr %s4078, 16
          %s4080 = smul.addr %s4079, 8
          %s4081 = scalar_lea.vmem %s13, %s4080
        $region92: #{conditioning_encoder.1} parent=87 // pred_fallthru
          _
      $region88: #{conditioning_encoder.1} parent=5 // pred_fallthru
        _
    $region6: #{conditioning_encoder.1} parent=1 // loop_footer
      %s26 = sadd.s32 1, %s22
    $region7: #{conditioning_encoder.1} parent=1 // loop_footer_branch
      %21 = sbr.rel target = $region3
    $region8: #{conditioning_encoder.1} parent=1 // loop_exit
      _
    %4082 = vsyncpa [#allocation3], 1
    %s4083 = scalar_lea.sflag [#allocation3], 1
    %4084 = vsyncpa %s4083, 1

</llo_original>
